<compile_context>
chip_gen: v5e
topology: v5e:2x2
jax: 0.10.0
libtpu: 0.0.40
codegen_flags: <defaults>
</compile_context>

<pallas_src>
import jax
import jax.numpy as jnp
from jax import lax
from jax.experimental import pallas as pl
from jax.experimental.pallas import tpu as pltpu

# ----------------------------- configuration --------------------------------
BS = 2              # batch size
NPOINTS = 512       # points per shape  (BS*NPOINTS = 1024, multiple of 256)
DIM = 3             # xyz
Z_DIM = 8           # latent code dim
SIGMA_CONDITION = True
C_DIM = Z_DIM + DIM + (1 if SIGMA_CONDITION else 0)   # conditional channels = 12
C_PAD = 16          # cxyz rows padded to 16: [xyz(3), c(9), ones(1), zeros(3)]
HIDDEN = 32         # hidden_size
OUT_DIM = 3         # output (gradient) dim
N_BLOCKS = 2        # number of CResnetBlockConv1d blocks
BN_EPS = 1e-5       # PyTorch BatchNorm1d default eps

# packed-slab geometry
N_CPROJ = 1 + 4 * N_BLOCKS + 2            # conv_p + 4 gamma/beta per block + final = 11
N_PROJ_USED = N_CPROJ * HIDDEN + OUT_DIM  # 355 (incl. conv_out-bias rows)
WCT_LANES = 384                           # padded to a multiple of 128 lanes
N_HCONV = 2 * N_BLOCKS + 1                # fc_0/fc_1 per block + conv_out = 5
WHT_LANES = N_HCONV * HIDDEN              # 160 (conv_out padded to 32 outputs)

# Elementwise BN/affine/ReLU dtype: bf16 on chips with a bf16 VALU (v6e/v7x),
# f32 on older generations (v2-v5 have no bf16 VALU).  Stats are always f32.
_KIND = jax.devices()[0].device_kind.lower()
EW_DTYPE = jnp.float32 if any(v in _KIND for v in ("v2", "v3", "v4", "v5")) else jnp.bfloat16


# ------------------------------ shared math ----------------------------------
def _decoder_math(cxyz, wct, wht):
    """Decoder forward on the transposed (C, B*N) layout.

    cxyz: (C_PAD, R) bf16      -- [xyz ; c ; ones ; 0-pad] rows
    wct:  (C_PAD, WCT_LANES) bf16 -- fused cxyz projections (biases folded) + conv_out bias rows
    wht:  (HIDDEN, WHT_LANES) bf16 -- fc_0/fc_1/conv_out weights, Cin x Cout-groups
    returns: (OUT_DIM, R) f32
    """
    # One fused MXU pass for conv_p + every CBN gamma/beta (+ conv_out bias rows).
    proj = lax.dot_general(wct, cxyz, (((0,), (0,)), ((), ())),
                           preferred_element_type=jnp.float32
                           ).astype(jnp.bfloat16)                    # (WCT_LANES, R)

    def csl(k):                                   # k-th (HIDDEN, R) cxyz projection
        return proj[k * HIDDEN:(k + 1) * HIDDEN]

    def conv(x_bf16, k):                          # k-th hidden 1x1 conv (bias-free)
        w = wht[:, k * HIDDEN:(k + 1) * HIDDEN]   # (Cin=HIDDEN, Cout=HIDDEN)
        return lax.dot_general(w, x_bf16, (((0,), (0,)), ((), ())),
                               preferred_element_type=jnp.float32)   # (HIDDEN, R) f32

    def cbn_relu(x_f32, k):
        # nn.BatchNorm1d(affine=False), training mode, stats over batch*points
        # (the lane axis).  Two-pass variance to avoid cancellation.
        mean = jnp.mean(x_f32, axis=1, keepdims=True)
        d = x_f32 - mean
        var = jnp.mean(d * d, axis=1, keepdims=True)
        xn = (d * lax.rsqrt(var + BN_EPS)).astype(EW_DTYPE)
        gamma = csl(k).astype(EW_DTYPE)
        beta = csl(k + 1).astype(EW_DTYPE)
        return jnp.maximum(gamma * xn + beta, 0).astype(jnp.bfloat16)

    net = csl(0).astype(jnp.float32)              # conv_p (bias dead: cancelled by BN)
    for blk in range(N_BLOCKS):                   # CResnetBlockConv1d
        cb = 1 + 4 * blk
        h = conv(cbn_relu(net, cb), 2 * blk)              # fc_0(relu(bn_0(net)))
        dx = conv(cbn_relu(h, cb + 2), 2 * blk + 1)       # fc_1(relu(bn_1(h)))
        net = net + dx                                    # identity shortcut
    y = cbn_relu(net, 1 + 4 * N_BLOCKS)                   # final CBN + ReLU
    out32 = conv(y, 2 * N_BLOCKS)                         # conv_out (Cout padded to 32)
    bias = proj[N_CPROJ * HIDDEN:N_CPROJ * HIDDEN + OUT_DIM].astype(jnp.float32)
    return out32[:OUT_DIM] + bias                         # (OUT_DIM, R) f32


# ------------------------------ Pallas kernel --------------------------------
def decoder_kernel(cxyz_ref, wct_ref, wht_ref, out_ref):
    out_ref[...] = _decoder_math(
        cxyz_ref[...], wct_ref[...], wht_ref[...]
    ).astype(out_ref.dtype)


def _build_cxyz(x, c):
    """c_xyz = cat([p, c_expand], channel) in (C_PAD, B*N) layout, plus a ones
    row (bias folding) and zero pad rows (sublane alignment)."""
    bs, npts, dim = x.shape
    rows = bs * npts
    cdim = c.shape[1]
    p_t = x.reshape(rows, dim).T                                          # (3, R)
    c_t = jnp.broadcast_to(c.T[:, :, None], (cdim, bs, npts)).reshape(cdim, rows)
    ones = jnp.ones((1, rows), jnp.float32)
    zpad = jnp.zeros((C_PAD - C_DIM - 1, rows), jnp.float32)
    return jnp.concatenate([p_t, c_t, ones, zpad], axis=0).astype(jnp.bfloat16)


@jax.jit
def decoder_forward(x, c, wct, wht):
    """x: (BS, NPOINTS, DIM), c: (BS, Z_DIM+1) -> (BS, NPOINTS, OUT_DIM)."""
    bs, npts, _ = x.shape
    rows = bs * npts
    # Training-mode BN couples every (batch, point) column, so the whole batch
    # stays in one grid point; the lane axis must stay unpadded.
    assert rows % 128 == 0, "batch*npoints must be a multiple of 128"
    cxyz = _build_cxyz(x, c)                                  # (C_PAD, R) bf16

    flops = 2 * rows * (C_PAD * WCT_LANES + N_HCONV * HIDDEN * HIDDEN)
    bytes_accessed = (cxyz.size + wct.size + wht.size) * 2 + OUT_DIM * rows * 4
    transcendentals = (2 * N_BLOCKS + 1) * HIDDEN             # rsqrt per BN channel

    # proj (bf16) dominates the resident footprint; only raise the scoped VMEM
    # limit when a large R actually needs it (v7x has 64 MiB physical VMEM).
    resident = 3 * WCT_LANES * rows * 2 + 4 * HIDDEN * rows * 4
    cparams = None
    if resident > 32 * 1024 * 1024:
        cparams = pltpu.CompilerParams(vmem_limit_bytes=min(resident, 60 * 1024 * 1024))

    vspec = pl.BlockSpec(memory_space=pltpu.MemorySpace.VMEM)
    out_t = pl.pallas_call(
        decoder_kernel,
        out_shape=jax.ShapeDtypeStruct((OUT_DIM, rows), jnp.float32),
        in_specs=[vspec, vspec, vspec],
        out_specs=vspec,
        compiler_params=cparams,
        cost_estimate=pl.CostEstimate(flops=flops, transcendentals=transcendentals,
                                      bytes_accessed=bytes_accessed),
    )(cxyz, wct, wht)
    # (OUT_DIM, B*N) -> (BS, NPOINTS, OUT_DIM)
    return out_t.T.reshape(bs, npts, OUT_DIM)


# ------------------------------ parameter init --------------------------------
def init_params(key):
    """Deterministic synthetic weights (shapes match the nn.Module __init__).

    NOTE: the PyTorch module zero-inits conv_gamma/conv_beta and fc_1 weights
    (gamma bias = 1); small random values are used here so the matmul path is
    actually exercised (shapes/dataflow identical)."""
    keys = iter(jax.random.split(key, 64))

    def w(shape, scale=0.1):
        return scale * jax.random.normal(next(keys), shape, jnp.float32)

    p = {"conv_p": (w((HIDDEN, C_DIM)), w((HIDDEN,))), "blocks": []}
    for _ in range(N_BLOCKS):
        p["blocks"].append({
            "bn0_gamma": (w((HIDDEN, C_DIM)), w((HIDDEN,))),
            "bn0_beta":  (w((HIDDEN, C_DIM)), w((HIDDEN,))),
            "bn1_gamma": (w((HIDDEN, C_DIM)), w((HIDDEN,))),
            "bn1_beta":  (w((HIDDEN, C_DIM)), w((HIDDEN,))),
            "fc0": (w((HIDDEN, HIDDEN)), w((HIDDEN,))),
            "fc1": (w((HIDDEN, HIDDEN)), w((HIDDEN,))),
        })
    p["bn_gamma"] = (w((HIDDEN, C_DIM)), w((HIDDEN,)))
    p["bn_beta"] = (w((HIDDEN, C_DIM)), w((HIDDEN,)))
    p["conv_out"] = (w((OUT_DIM, HIDDEN)), w((OUT_DIM,)))
    return p


def pack_params(p):
    """Host-side packing into 2 wide, contiguous bf16 slabs."""
    # --- fused cxyz-projection slab: transposed + padded -> (C_PAD, WCT_LANES)
    def aug(wb_w, wb_b):            # (H, C_DIM), (H,) -> (H, C_PAD) augmented row-block
        z = jnp.zeros((wb_w.shape[0], C_PAD - C_DIM - 1), jnp.float32)
        return jnp.concatenate([wb_w, wb_b[:, None], z], axis=1)

    rows = [aug(p["conv_p"][0], jnp.zeros((HIDDEN,), jnp.float32))]  # bias dead (cancelled by BN)
    for blk in p["blocks"]:
        for name in ("bn0_gamma", "bn0_beta", "bn1_gamma", "bn1_beta"):
            rows.append(aug(*blk[name]))
    rows.append(aug(*p["bn_gamma"]))
    rows.append(aug(*p["bn_beta"]))
    wc = jnp.concatenate(rows, axis=0)                               # (352, C_PAD)
    # conv_out's bias rides the ones-row as 3 extra projection outputs.
    bias_rows = jnp.zeros((OUT_DIM, C_PAD), jnp.float32).at[:, C_DIM].set(p["conv_out"][1])
    wc = jnp.concatenate([wc, bias_rows], axis=0)                    # (355, C_PAD)
    wc = jnp.pad(wc, ((0, WCT_LANES - wc.shape[0]), (0, 0)))         # (384, C_PAD)
    wct = wc.T.astype(jnp.bfloat16)                                  # (16, 384): wide HBM rows

    # --- hidden convs: (Cin=32, 5*32) bf16, Cout groups along lanes; biases of
    # fc_0/fc_1 are mathematically dead (cancelled by the next BN) -> dropped.
    mats = []
    for blk in p["blocks"]:
        mats += [blk["fc0"][0], blk["fc1"][0]]
    mats.append(jnp.pad(p["conv_out"][0], ((0, HIDDEN - OUT_DIM), (0, 0))))  # pad Cout 3->32
    wht = jnp.concatenate([m.T for m in mats], axis=1).astype(jnp.bfloat16)  # (32, 160)

    assert wct.shape == (C_PAD, WCT_LANES)
    assert wht.shape == (HIDDEN, WHT_LANES)
    return wct, wht


# ------------------------------ references -----------------------------------
def decoder_ref_f32(params, x, c):
    """Faithful f32 reference mirroring the PyTorch module (with all biases)."""
    bs, npts, _ = x.shape
    hp = jax.lax.Precision.HIGHEST
    p = jnp.transpose(x, (0, 2, 1))                                    # (bs, 3, npts)
    c_exp = jnp.broadcast_to(c[:, :, None], (bs, c.shape[1], npts))
    c_xyz = jnp.concatenate([p, c_exp], axis=1)                        # (bs, C_DIM, npts)

    def conv1d(wb, h):
        w, b = wb
        return jnp.einsum('oc,bcn->bon', w, h, precision=hp) + b[None, :, None]

    def bn(h):  # BatchNorm1d training mode, affine=False (biased variance)
        mean = jnp.mean(h, axis=(0, 2), keepdims=True)
        var = jnp.mean((h - mean) ** 2, axis=(0, 2), keepdims=True)
        return (h - mean) * lax.rsqrt(var + BN_EPS)

    def cbn(h, gwb, bwb):
        return conv1d(gwb, c_xyz) * bn(h) + conv1d(bwb, c_xyz)

    net = conv1d(params["conv_p"], c_xyz)
    for blk in params["blocks"]:
        hh = conv1d(blk["fc0"], jax.nn.relu(cbn(net, blk["bn0_gamma"], blk["bn0_beta"])))
        dx = conv1d(blk["fc1"], jax.nn.relu(cbn(hh, blk["bn1_gamma"], blk["bn1_beta"])))
        net = net + dx
    out = conv1d(params["conv_out"], jax.nn.relu(cbn(net, params["bn_gamma"], params["bn_beta"])))
    return jnp.transpose(out, (0, 2, 1))                               # (bs, npts, 3)


def decoder_ref_kernelmath(x, c, wct, wht):
    """Identical-math XLA reference (same packed slabs / dtypes as the kernel)."""
    bs, npts, _ = x.shape
    out_t = _decoder_math(_build_cxyz(x, c), wct, wht)
    return out_t.T.reshape(bs, npts, OUT_DIM)


# ---------------------------------- main --------------------------------------
if __name__ == "__main__":
    key = jax.random.PRNGKey(0)
    kx, kc, kw = jax.random.split(key, 3)

    x = jax.random.normal(kx, (BS, NPOINTS, DIM), jnp.float32)               # xyz
    c = jax.random.normal(kc, (BS, Z_DIM + int(SIGMA_CONDITION)), jnp.float32)
    params = init_params(kw)
    wct, wht = pack_params(params)

    out = jax.block_until_ready(decoder_forward(x, c, wct, wht))
    assert out.shape == (BS, NPOINTS, OUT_DIM), out.shape
    assert bool(jnp.all(jnp.isfinite(out)))

    # 1) identical-math XLA reference (catches Pallas lowering bugs)
    ref_fast = jax.block_until_ready(decoder_ref_kernelmath(x, c, wct, wht))
    err_fast = float(jnp.max(jnp.abs(out - ref_fast)))
    assert jnp.allclose(out, ref_fast, rtol=1e-2, atol=1e-2), err_fast

    # 2) faithful f32 module reference (catches packing / semantics bugs; the
    #    dropped conv_p/fc biases are exactly cancelled by BN, so this matches
    #    up to bf16 rounding of the kernel path)
    ref_full = jax.block_until_ready(decoder_ref_f32(params, x, c))
    err_full = float(jnp.max(jnp.abs(out - ref_full)))
    assert jnp.allclose(out, ref_full, rtol=5e-2, atol=5e-2), err_full

    print("KERNEL_OK")
</pallas_src>

<mosaic_0001>
module attributes {stable_mosaic.version = 11 : i64} {
  func.func @decoder_kernel(%arg0: memref<16x1024xbf16, #tpu.memory_space<vmem>>, %arg1: memref<16x384xbf16, #tpu.memory_space<vmem>>, %arg2: memref<32x160xbf16, #tpu.memory_space<vmem>>, %arg3: memref<3x1024xf32, #tpu.memory_space<vmem>>) attributes {dimension_semantics = [], scalar_prefetch = 0 : i64, scratch_operands = 0 : i64, tpu.core_type = #tpu.core_type<tc>} {
    %c0 = arith.constant 0 : index
    %c0_0 = arith.constant 0 : index
    %0 = vector.load %arg0[%c0, %c0_0] : memref<16x1024xbf16, #tpu.memory_space<vmem>>, vector<16x1024xbf16>
    %c0_1 = arith.constant 0 : index
    %c0_2 = arith.constant 0 : index
    %1 = vector.load %arg1[%c0_1, %c0_2] : memref<16x384xbf16, #tpu.memory_space<vmem>>, vector<16x384xbf16>
    %c0_3 = arith.constant 0 : index
    %c0_4 = arith.constant 0 : index
    %2 = vector.load %arg2[%c0_3, %c0_4] : memref<32x160xbf16, #tpu.memory_space<vmem>>, vector<32x160xbf16>
    %cst = arith.constant dense<0.000000e+00> : vector<384x1024xf32>
    %3 = tpu.matmul %1, %0, %cst {dimension_numbers = #tpu.dot_dimension_numbers<[0], [0], [1], [1], [0, 1, 1, 1], [], []>} : vector<16x384xbf16>, vector<16x1024xbf16>, vector<384x1024xf32> -> vector<384x1024xf32>
    %4 = arith.truncf %3 : vector<384x1024xf32> to vector<384x1024xbf16>
    %5 = vector.extract_strided_slice %4 {offsets = [0, 0], sizes = [32, 1024], strides = [1, 1]} : vector<384x1024xbf16> to vector<32x1024xbf16>
    %6 = arith.extf %5 : vector<32x1024xbf16> to vector<32x1024xf32>
    %cst_5 = arith.constant dense<0.000000e+00> : vector<32xf32>
    %7 = vector.multi_reduction <add>, %6, %cst_5 [1] : vector<32x1024xf32> to vector<32xf32>
    %8 = vector.shape_cast %7 : vector<32xf32> to vector<32x1xf32>
    %cst_6 = arith.constant 1.024000e+03 : f32
    %9 = vector.broadcast %cst_6 : f32 to vector<32x1xf32>
    %10 = arith.divf %8, %9 : vector<32x1xf32>
    %11 = vector.broadcast %10 : vector<32x1xf32> to vector<32x1024xf32>
    %12 = arith.subf %6, %11 : vector<32x1024xf32>
    %13 = arith.mulf %12, %12 : vector<32x1024xf32>
    %cst_7 = arith.constant dense<0.000000e+00> : vector<32xf32>
    %14 = vector.multi_reduction <add>, %13, %cst_7 [1] : vector<32x1024xf32> to vector<32xf32>
    %15 = vector.shape_cast %14 : vector<32xf32> to vector<32x1xf32>
    %cst_8 = arith.constant 1.024000e+03 : f32
    %16 = vector.broadcast %cst_8 : f32 to vector<32x1xf32>
    %17 = arith.divf %15, %16 : vector<32x1xf32>
    %cst_9 = arith.constant 9.99999974E-6 : f32
    %18 = vector.broadcast %cst_9 : f32 to vector<32x1xf32>
    %19 = arith.addf %17, %18 : vector<32x1xf32>
    %20 = math.rsqrt %19 : vector<32x1xf32>
    %21 = vector.broadcast %20 : vector<32x1xf32> to vector<32x1024xf32>
    %22 = arith.mulf %12, %21 : vector<32x1024xf32>
    %23 = arith.truncf %22 : vector<32x1024xf32> to vector<32x1024xbf16>
    %24 = vector.extract_strided_slice %4 {offsets = [32, 0], sizes = [32, 1024], strides = [1, 1]} : vector<384x1024xbf16> to vector<32x1024xbf16>
    %25 = vector.extract_strided_slice %4 {offsets = [64, 0], sizes = [32, 1024], strides = [1, 1]} : vector<384x1024xbf16> to vector<32x1024xbf16>
    %26 = arith.mulf %24, %23 : vector<32x1024xbf16>
    %27 = arith.addf %26, %25 : vector<32x1024xbf16>
    %cst_10 = arith.constant 0.000000e+00 : bf16
    %28 = vector.broadcast %cst_10 : bf16 to vector<32x1024xbf16>
    %29 = arith.maximumf %27, %28 : vector<32x1024xbf16>
    %30 = vector.extract_strided_slice %2 {offsets = [0, 0], sizes = [32, 32], strides = [1, 1]} : vector<32x160xbf16> to vector<32x32xbf16>
    %cst_11 = arith.constant dense<0.000000e+00> : vector<32x1024xf32>
    %31 = tpu.matmul %30, %29, %cst_11 {dimension_numbers = #tpu.dot_dimension_numbers<[0], [0], [1], [1], [0, 1, 1, 1], [], []>} : vector<32x32xbf16>, vector<32x1024xbf16>, vector<32x1024xf32> -> vector<32x1024xf32>
    %cst_12 = arith.constant dense<0.000000e+00> : vector<32xf32>
    %32 = vector.multi_reduction <add>, %31, %cst_12 [1] : vector<32x1024xf32> to vector<32xf32>
    %33 = vector.shape_cast %32 : vector<32xf32> to vector<32x1xf32>
    %cst_13 = arith.constant 1.024000e+03 : f32
    %34 = vector.broadcast %cst_13 : f32 to vector<32x1xf32>
    %35 = arith.divf %33, %34 : vector<32x1xf32>
    %36 = vector.broadcast %35 : vector<32x1xf32> to vector<32x1024xf32>
    %37 = arith.subf %31, %36 : vector<32x1024xf32>
    %38 = arith.mulf %37, %37 : vector<32x1024xf32>
    %cst_14 = arith.constant dense<0.000000e+00> : vector<32xf32>
    %39 = vector.multi_reduction <add>, %38, %cst_14 [1] : vector<32x1024xf32> to vector<32xf32>
    %40 = vector.shape_cast %39 : vector<32xf32> to vector<32x1xf32>
    %cst_15 = arith.constant 1.024000e+03 : f32
    %41 = vector.broadcast %cst_15 : f32 to vector<32x1xf32>
    %42 = arith.divf %40, %41 : vector<32x1xf32>
    %cst_16 = arith.constant 9.99999974E-6 : f32
    %43 = vector.broadcast %cst_16 : f32 to vector<32x1xf32>
    %44 = arith.addf %42, %43 : vector<32x1xf32>
    %45 = math.rsqrt %44 : vector<32x1xf32>
    %46 = vector.broadcast %45 : vector<32x1xf32> to vector<32x1024xf32>
    %47 = arith.mulf %37, %46 : vector<32x1024xf32>
    %48 = arith.truncf %47 : vector<32x1024xf32> to vector<32x1024xbf16>
    %49 = vector.extract_strided_slice %4 {offsets = [96, 0], sizes = [32, 1024], strides = [1, 1]} : vector<384x1024xbf16> to vector<32x1024xbf16>
    %50 = vector.extract_strided_slice %4 {offsets = [128, 0], sizes = [32, 1024], strides = [1, 1]} : vector<384x1024xbf16> to vector<32x1024xbf16>
    %51 = arith.mulf %49, %48 : vector<32x1024xbf16>
    %52 = arith.addf %51, %50 : vector<32x1024xbf16>
    %cst_17 = arith.constant 0.000000e+00 : bf16
    %53 = vector.broadcast %cst_17 : bf16 to vector<32x1024xbf16>
    %54 = arith.maximumf %52, %53 : vector<32x1024xbf16>
    %55 = vector.extract_strided_slice %2 {offsets = [0, 32], sizes = [32, 32], strides = [1, 1]} : vector<32x160xbf16> to vector<32x32xbf16>
    %cst_18 = arith.constant dense<0.000000e+00> : vector<32x1024xf32>
    %56 = tpu.matmul %55, %54, %cst_18 {dimension_numbers = #tpu.dot_dimension_numbers<[0], [0], [1], [1], [0, 1, 1, 1], [], []>} : vector<32x32xbf16>, vector<32x1024xbf16>, vector<32x1024xf32> -> vector<32x1024xf32>
    %57 = arith.addf %6, %56 : vector<32x1024xf32>
    %cst_19 = arith.constant dense<0.000000e+00> : vector<32xf32>
    %58 = vector.multi_reduction <add>, %57, %cst_19 [1] : vector<32x1024xf32> to vector<32xf32>
    %59 = vector.shape_cast %58 : vector<32xf32> to vector<32x1xf32>
    %cst_20 = arith.constant 1.024000e+03 : f32
    %60 = vector.broadcast %cst_20 : f32 to vector<32x1xf32>
    %61 = arith.divf %59, %60 : vector<32x1xf32>
    %62 = vector.broadcast %61 : vector<32x1xf32> to vector<32x1024xf32>
    %63 = arith.subf %57, %62 : vector<32x1024xf32>
    %64 = arith.mulf %63, %63 : vector<32x1024xf32>
    %cst_21 = arith.constant dense<0.000000e+00> : vector<32xf32>
    %65 = vector.multi_reduction <add>, %64, %cst_21 [1] : vector<32x1024xf32> to vector<32xf32>
    %66 = vector.shape_cast %65 : vector<32xf32> to vector<32x1xf32>
    %cst_22 = arith.constant 1.024000e+03 : f32
    %67 = vector.broadcast %cst_22 : f32 to vector<32x1xf32>
    %68 = arith.divf %66, %67 : vector<32x1xf32>
    %cst_23 = arith.constant 9.99999974E-6 : f32
    %69 = vector.broadcast %cst_23 : f32 to vector<32x1xf32>
    %70 = arith.addf %68, %69 : vector<32x1xf32>
    %71 = math.rsqrt %70 : vector<32x1xf32>
    %72 = vector.broadcast %71 : vector<32x1xf32> to vector<32x1024xf32>
    %73 = arith.mulf %63, %72 : vector<32x1024xf32>
    %74 = arith.truncf %73 : vector<32x1024xf32> to vector<32x1024xbf16>
    %75 = vector.extract_strided_slice %4 {offsets = [160, 0], sizes = [32, 1024], strides = [1, 1]} : vector<384x1024xbf16> to vector<32x1024xbf16>
    %76 = vector.extract_strided_slice %4 {offsets = [192, 0], sizes = [32, 1024], strides = [1, 1]} : vector<384x1024xbf16> to vector<32x1024xbf16>
    %77 = arith.mulf %75, %74 : vector<32x1024xbf16>
    %78 = arith.addf %77, %76 : vector<32x1024xbf16>
    %cst_24 = arith.constant 0.000000e+00 : bf16
    %79 = vector.broadcast %cst_24 : bf16 to vector<32x1024xbf16>
    %80 = arith.maximumf %78, %79 : vector<32x1024xbf16>
    %81 = vector.extract_strided_slice %2 {offsets = [0, 64], sizes = [32, 32], strides = [1, 1]} : vector<32x160xbf16> to vector<32x32xbf16>
    %cst_25 = arith.constant dense<0.000000e+00> : vector<32x1024xf32>
    %82 = tpu.matmul %81, %80, %cst_25 {dimension_numbers = #tpu.dot_dimension_numbers<[0], [0], [1], [1], [0, 1, 1, 1], [], []>} : vector<32x32xbf16>, vector<32x1024xbf16>, vector<32x1024xf32> -> vector<32x1024xf32>
    %cst_26 = arith.constant dense<0.000000e+00> : vector<32xf32>
    %83 = vector.multi_reduction <add>, %82, %cst_26 [1] : vector<32x1024xf32> to vector<32xf32>
    %84 = vector.shape_cast %83 : vector<32xf32> to vector<32x1xf32>
    %cst_27 = arith.constant 1.024000e+03 : f32
    %85 = vector.broadcast %cst_27 : f32 to vector<32x1xf32>
    %86 = arith.divf %84, %85 : vector<32x1xf32>
    %87 = vector.broadcast %86 : vector<32x1xf32> to vector<32x1024xf32>
    %88 = arith.subf %82, %87 : vector<32x1024xf32>
    %89 = arith.mulf %88, %88 : vector<32x1024xf32>
    %cst_28 = arith.constant dense<0.000000e+00> : vector<32xf32>
    %90 = vector.multi_reduction <add>, %89, %cst_28 [1] : vector<32x1024xf32> to vector<32xf32>
    %91 = vector.shape_cast %90 : vector<32xf32> to vector<32x1xf32>
    %cst_29 = arith.constant 1.024000e+03 : f32
    %92 = vector.broadcast %cst_29 : f32 to vector<32x1xf32>
    %93 = arith.divf %91, %92 : vector<32x1xf32>
    %cst_30 = arith.constant 9.99999974E-6 : f32
    %94 = vector.broadcast %cst_30 : f32 to vector<32x1xf32>
    %95 = arith.addf %93, %94 : vector<32x1xf32>
    %96 = math.rsqrt %95 : vector<32x1xf32>
    %97 = vector.broadcast %96 : vector<32x1xf32> to vector<32x1024xf32>
    %98 = arith.mulf %88, %97 : vector<32x1024xf32>
    %99 = arith.truncf %98 : vector<32x1024xf32> to vector<32x1024xbf16>
    %100 = vector.extract_strided_slice %4 {offsets = [224, 0], sizes = [32, 1024], strides = [1, 1]} : vector<384x1024xbf16> to vector<32x1024xbf16>
    %101 = vector.extract_strided_slice %4 {offsets = [256, 0], sizes = [32, 1024], strides = [1, 1]} : vector<384x1024xbf16> to vector<32x1024xbf16>
    %102 = arith.mulf %100, %99 : vector<32x1024xbf16>
    %103 = arith.addf %102, %101 : vector<32x1024xbf16>
    %cst_31 = arith.constant 0.000000e+00 : bf16
    %104 = vector.broadcast %cst_31 : bf16 to vector<32x1024xbf16>
    %105 = arith.maximumf %103, %104 : vector<32x1024xbf16>
    %106 = vector.extract_strided_slice %2 {offsets = [0, 96], sizes = [32, 32], strides = [1, 1]} : vector<32x160xbf16> to vector<32x32xbf16>
    %cst_32 = arith.constant dense<0.000000e+00> : vector<32x1024xf32>
    %107 = tpu.matmul %106, %105, %cst_32 {dimension_numbers = #tpu.dot_dimension_numbers<[0], [0], [1], [1], [0, 1, 1, 1], [], []>} : vector<32x32xbf16>, vector<32x1024xbf16>, vector<32x1024xf32> -> vector<32x1024xf32>
    %108 = arith.addf %57, %107 : vector<32x1024xf32>
    %cst_33 = arith.constant dense<0.000000e+00> : vector<32xf32>
    %109 = vector.multi_reduction <add>, %108, %cst_33 [1] : vector<32x1024xf32> to vector<32xf32>
    %110 = vector.shape_cast %109 : vector<32xf32> to vector<32x1xf32>
    %cst_34 = arith.constant 1.024000e+03 : f32
    %111 = vector.broadcast %cst_34 : f32 to vector<32x1xf32>
    %112 = arith.divf %110, %111 : vector<32x1xf32>
    %113 = vector.broadcast %112 : vector<32x1xf32> to vector<32x1024xf32>
    %114 = arith.subf %108, %113 : vector<32x1024xf32>
    %115 = arith.mulf %114, %114 : vector<32x1024xf32>
    %cst_35 = arith.constant dense<0.000000e+00> : vector<32xf32>
    %116 = vector.multi_reduction <add>, %115, %cst_35 [1] : vector<32x1024xf32> to vector<32xf32>
    %117 = vector.shape_cast %116 : vector<32xf32> to vector<32x1xf32>
    %cst_36 = arith.constant 1.024000e+03 : f32
    %118 = vector.broadcast %cst_36 : f32 to vector<32x1xf32>
    %119 = arith.divf %117, %118 : vector<32x1xf32>
    %cst_37 = arith.constant 9.99999974E-6 : f32
    %120 = vector.broadcast %cst_37 : f32 to vector<32x1xf32>
    %121 = arith.addf %119, %120 : vector<32x1xf32>
    %122 = math.rsqrt %121 : vector<32x1xf32>
    %123 = vector.broadcast %122 : vector<32x1xf32> to vector<32x1024xf32>
    %124 = arith.mulf %114, %123 : vector<32x1024xf32>
    %125 = arith.truncf %124 : vector<32x1024xf32> to vector<32x1024xbf16>
    %126 = vector.extract_strided_slice %4 {offsets = [288, 0], sizes = [32, 1024], strides = [1, 1]} : vector<384x1024xbf16> to vector<32x1024xbf16>
    %127 = vector.extract_strided_slice %4 {offsets = [320, 0], sizes = [32, 1024], strides = [1, 1]} : vector<384x1024xbf16> to vector<32x1024xbf16>
    %128 = arith.mulf %126, %125 : vector<32x1024xbf16>
    %129 = arith.addf %128, %127 : vector<32x1024xbf16>
    %cst_38 = arith.constant 0.000000e+00 : bf16
    %130 = vector.broadcast %cst_38 : bf16 to vector<32x1024xbf16>
    %131 = arith.maximumf %129, %130 : vector<32x1024xbf16>
    %132 = vector.extract_strided_slice %2 {offsets = [0, 128], sizes = [32, 32], strides = [1, 1]} : vector<32x160xbf16> to vector<32x32xbf16>
    %cst_39 = arith.constant dense<0.000000e+00> : vector<32x1024xf32>
    %133 = tpu.matmul %132, %131, %cst_39 {dimension_numbers = #tpu.dot_dimension_numbers<[0], [0], [1], [1], [0, 1, 1, 1], [], []>} : vector<32x32xbf16>, vector<32x1024xbf16>, vector<32x1024xf32> -> vector<32x1024xf32>
    %134 = vector.extract_strided_slice %4 {offsets = [352, 0], sizes = [3, 1024], strides = [1, 1]} : vector<384x1024xbf16> to vector<3x1024xbf16>
    %135 = arith.extf %134 : vector<3x1024xbf16> to vector<3x1024xf32>
    %136 = vector.extract_strided_slice %133 {offsets = [0, 0], sizes = [3, 1024], strides = [1, 1]} : vector<32x1024xf32> to vector<3x1024xf32>
    %137 = arith.addf %136, %135 : vector<3x1024xf32>
    %c0_40 = arith.constant 0 : index
    %c0_41 = arith.constant 0 : index
    %138 = vector.load %arg3[%c0_40, %c0_41] : memref<3x1024xf32, #tpu.memory_space<vmem>>, vector<3x1024xf32>
    tpu.vector_store %arg3[%c0_40, %c0_41], %137 {strides = array<i32>} : memref<3x1024xf32, #tpu.memory_space<vmem>>, vector<3x1024xf32>,
    return
  }
}

</mosaic_0001>

<llo_original>
// kernel: decoder_forward.1
$region0: #{decoder_forward.1}
  #allocation0 [shape = 'u32[]', space=smem, size = 0x4, offset = 0x4, fixed_abs, tag = 'smem constant byte address 0x4 - core index']
  #allocation1 [shape = 'u32[72,128]{1,0:T(1,128)}', space=vmem, size = 0x9000, scoped, tag = 'internal scratch']
  %s0 = inlined_call_operand.vmem [shape: bf16[16,1024], index: 0, kind: input, shape index: {}]
  %s1 = inlined_call_operand.vmem [shape: bf16[16,384], index: 1, kind: input, shape index: {}]
  %s2 = inlined_call_operand.vmem [shape: bf16[32,160], index: 2, kind: input, shape index: {}]
  %s3 = inlined_call_operand.vmem [shape: f32[3,1024], index: 3, kind: output, shape index: {}]
  %s4 = sld [smem:[#allocation0]]
  $region22: #{decoder_forward.1} parent=0
    _
  %s6 = ssub.s32 1, %s4
  %s7 = scalar_select 0, %s6, %s4
  // Predicated region
  $region2: #{decoder_forward.1} parent=0 // pred_check
    _
  $region3: #{decoder_forward.1} parent=0 // pred_check_branch
    %9 = sbr.rel (0) target = $region5
  $region4: #{decoder_forward.1} parent=0 // pred_region
    _
  $region5: #{decoder_forward.1} parent=0 // pred_fallthru
    _
  // Predicated region
  $region6: #{decoder_forward.1} parent=0 // pred_check
    _
  $region7: #{decoder_forward.1} parent=0 // pred_check_branch
    %11 = sbr.rel (0) target = $region9
  $region8: #{decoder_forward.1} parent=0 // pred_region
    _
  $region9: #{decoder_forward.1} parent=0 // pred_fallthru
    _
  // Predicated region
  $region10: #{decoder_forward.1} parent=0 // pred_check
    _
  $region11: #{decoder_forward.1} parent=0 // pred_check_branch
    %13 = sbr.rel (0) target = $region13
  $region12: #{decoder_forward.1} parent=0 // pred_region
    _
  $region13: #{decoder_forward.1} parent=0 // pred_fallthru
    _
  %v15 = vld [vmem:[%s0] sm:$0xff]
  %v16 = vld [vmem:[%s0 + $0x8] sm:$0xff]
  %v17 = vld [vmem:[%s0 + $0x10] sm:$0xff]
  %v18 = vld [vmem:[%s0 + $0x18] sm:$0xff]
  %v19 = vld [vmem:[%s0 + $0x20] sm:$0xff]
  %v20 = vld [vmem:[%s0 + $0x28] sm:$0xff]
  %v21 = vld [vmem:[%s0 + $0x30] sm:$0xff]
  %v22 = vld [vmem:[%s0 + $0x38] sm:$0xff]
  %v23 = vld [vmem:[%s1] sm:$0xff]
  %v24 = vld [vmem:[%s1 + $0x8] sm:$0xf]
  %v25 = vld [vmem:[%s1 + $0xc] sm:$0xff]
  %v26 = vld [vmem:[%s1 + $0x14] sm:$0xf]
  %v27 = vld [vmem:[%s2] sm:$0xff]
  %v28 = vld [vmem:[%s2 + $0x8] sm:$0xff]
  %v29 = vld [vmem:[%s2 + $0x10] sm:$0xff]
  %v30 = vld [vmem:[%s2 + $0x18] sm:$0xff]
  %v35 = vunpack.c.l.b16 %v23
  %v36 = vunpack.c.h.b16 %v23
  %v37 = vunpack.c.l.b16 %v24
  %v38 = vunpack.c.l.b16 %v25
  %v39 = vunpack.c.h.b16 %v25
  %v40 = vunpack.c.l.b16 %v26
  %v41 = vpack.c.b16 %v38, %v35
  %v42 = vpack.c.b16 %v39, %v36
  %v43 = vpack.c.b16 %v40, %v37
  %47 = vxpose.binary.xlu0.c.b16.start [1/16] %v42, %v41, 128
  %48 = vxpose.binary.xlu0.c.b16.cont [2/16] 0, 0, 128
  %49 = vxpose.binary.xlu0.c.b16.cont [3/16] 0, 0, 128
  %50 = vxpose.binary.xlu0.c.b16.cont [4/16] 0, 0, 128
  %51 = vxpose.binary.xlu0.c.b16.cont [5/16] 0, 0, 128
  %52 = vxpose.binary.xlu0.c.b16.cont [6/16] 0, 0, 128
  %53 = vxpose.binary.xlu0.c.b16.cont [7/16] 0, 0, 128
  %54 = vxpose.binary.xlu0.c.b16.end [8/16] 0, 0, 128
  %v55 = vpop.trf.xlu0
  %v56 = vpop.trf.xlu0
  %v57 = vpop.trf.xlu0
  %v58 = vpop.trf.xlu0
  %v59 = vpop.trf.xlu0
  %v60 = vpop.trf.xlu0
  %v61 = vpop.trf.xlu0
  %v62 = vpop.trf.xlu0
  %v63 = vpop.trf.xlu0
  %v64 = vpop.trf.xlu0
  %v65 = vpop.trf.xlu0
  %v66 = vpop.trf.xlu0
  %v67 = vpop.trf.xlu0
  %v68 = vpop.trf.xlu0
  %v69 = vpop.trf.xlu0
  %v70 = vpop.trf.xlu0
  %71 = vxpose.xlu0.c.b16.start [1/8] %v43, 128
  %72 = vxpose.xlu0.c.b16.cont [2/8] 0, 128
  %73 = vxpose.xlu0.c.b16.cont [3/8] 0, 128
  %74 = vxpose.xlu0.c.b16.cont [4/8] 0, 128
  %75 = vxpose.xlu0.c.b16.cont [5/8] 0, 128
  %76 = vxpose.xlu0.c.b16.cont [6/8] 0, 128
  %77 = vxpose.xlu0.c.b16.cont [7/8] 0, 128
  %78 = vxpose.xlu0.c.b16.end [8/8] 0, 128
  %v79 = vpop.trf.xlu0
  %v80 = vpop.trf.xlu0
  %v81 = vpop.trf.xlu0
  %v82 = vpop.trf.xlu0
  %v83 = vpop.trf.xlu0
  %v84 = vpop.trf.xlu0
  %v85 = vpop.trf.xlu0
  %v86 = vpop.trf.xlu0
  %v95 = vunpack.c.l.b16 %v15
  %v96 = vunpack.c.h.b16 %v15
  %v97 = vunpack.c.l.b16 %v16
  %v98 = vunpack.c.h.b16 %v16
  %v99 = vunpack.c.l.b16 %v17
  %v100 = vunpack.c.h.b16 %v17
  %v101 = vunpack.c.l.b16 %v18
  %v102 = vunpack.c.h.b16 %v18
  %v103 = vunpack.c.l.b16 %v19
  %v104 = vunpack.c.h.b16 %v19
  %v105 = vunpack.c.l.b16 %v20
  %v106 = vunpack.c.h.b16 %v20
  %v107 = vunpack.c.l.b16 %v21
  %v108 = vunpack.c.h.b16 %v21
  %v109 = vunpack.c.l.b16 %v22
  %v110 = vunpack.c.h.b16 %v22
  %v111 = vpack.c.b16 %v103, %v95
  %v112 = vpack.c.b16 %v104, %v96
  %v113 = vpack.c.b16 %v105, %v97
  %v114 = vpack.c.b16 %v106, %v98
  %v115 = vpack.c.b16 %v107, %v99
  %v116 = vpack.c.b16 %v108, %v100
  %v117 = vpack.c.b16 %v109, %v101
  %v118 = vpack.c.b16 %v110, %v102
  %vm127 = vcmask 130048
  %v129 = vsel %vm127, %v55, 0
  %v132 = vsel %vm127, %v57, 0
  %v135 = vsel %vm127, %v59, 0
  %v138 = vsel %vm127, %v61, 0
  %v141 = vsel %vm127, %v63, 0
  %v144 = vsel %vm127, %v65, 0
  %v147 = vsel %vm127, %v67, 0
  %v150 = vsel %vm127, %v69, 0
  %v153 = vsel %vm127, %v56, 0
  %v156 = vsel %vm127, %v58, 0
  %v159 = vsel %vm127, %v60, 0
  %v162 = vsel %vm127, %v62, 0
  %v165 = vsel %vm127, %v64, 0
  %v168 = vsel %vm127, %v66, 0
  %v171 = vsel %vm127, %v68, 0
  %v174 = vsel %vm127, %v70, 0
  %v177 = vsel %vm127, %v79, 0
  %v180 = vsel %vm127, %v80, 0
  %v183 = vsel %vm127, %v81, 0
  %v186 = vsel %vm127, %v82, 0
  %v189 = vsel %vm127, %v83, 0
  %v192 = vsel %vm127, %v84, 0
  %v195 = vsel %vm127, %v85, 0
  %v198 = vsel %vm127, %v86, 0
  %200 = vmatpush.bf16.msra.mxu0 0
  %201 = vmatpush.bf16.msra.mxu0 0
  %202 = vmatpush.bf16.msra.mxu0 0
  %203 = vmatpush.bf16.msra.mxu0 0
  %204 = vmatpush.bf16.msra.mxu0 0
  %205 = vmatpush.bf16.msra.mxu0 0
  %206 = vmatpush.bf16.msra.mxu0 0
  %207 = vmatpush.bf16.msra.mxu0 %v111
  %208 = vmatmul.bf16.gmra.mxu0 %v129
  %v209 = vpop.f32.mrf.mxu0
  %v210 = vadd.f32 0.0, %v209
  %v211 = vpop.f32.mrf.mxu0
  %v212 = vadd.f32 0.0, %v211
  %213 = vmatmul.bf16.gmra.mxu0 %v132
  %v214 = vpop.f32.mrf.mxu0
  %v215 = vadd.f32 0.0, %v214
  %v216 = vpop.f32.mrf.mxu0
  %v217 = vadd.f32 0.0, %v216
  %218 = vmatmul.bf16.gmra.mxu0 %v135
  %v219 = vpop.f32.mrf.mxu0
  %v220 = vadd.f32 0.0, %v219
  %v221 = vpop.f32.mrf.mxu0
  %v222 = vadd.f32 0.0, %v221
  %223 = vmatmul.bf16.gmra.mxu0 %v138
  %v224 = vpop.f32.mrf.mxu0
  %v225 = vadd.f32 0.0, %v224
  %v226 = vpop.f32.mrf.mxu0
  %v227 = vadd.f32 0.0, %v226
  %228 = vmatmul.bf16.gmra.mxu0 %v141
  %v229 = vpop.f32.mrf.mxu0
  %v230 = vadd.f32 0.0, %v229
  %v231 = vpop.f32.mrf.mxu0
  %v232 = vadd.f32 0.0, %v231
  %233 = vmatmul.bf16.gmra.mxu0 %v144
  %v234 = vpop.f32.mrf.mxu0
  %v235 = vadd.f32 0.0, %v234
  %v236 = vpop.f32.mrf.mxu0
  %v237 = vadd.f32 0.0, %v236
  %238 = vmatmul.bf16.gmra.mxu0 %v147
  %v239 = vpop.f32.mrf.mxu0
  %v240 = vadd.f32 0.0, %v239
  %v241 = vpop.f32.mrf.mxu0
  %v242 = vadd.f32 0.0, %v241
  %243 = vmatmul.bf16.gmra.mxu0 %v150
  %v244 = vpop.f32.mrf.mxu0
  %v245 = vadd.f32 0.0, %v244
  %v246 = vpop.f32.mrf.mxu0
  %v247 = vadd.f32 0.0, %v246
  %248 = vmatmul.bf16.gmra.mxu0 %v153
  %v249 = vpop.f32.mrf.mxu0
  %v250 = vadd.f32 0.0, %v249
  %v251 = vpop.f32.mrf.mxu0
  %v252 = vadd.f32 0.0, %v251
  %253 = vmatmul.bf16.gmra.mxu0 %v156
  %v254 = vpop.f32.mrf.mxu0
  %v255 = vadd.f32 0.0, %v254
  %v256 = vpop.f32.mrf.mxu0
  %v257 = vadd.f32 0.0, %v256
  %258 = vmatmul.bf16.gmra.mxu0 %v159
  %v259 = vpop.f32.mrf.mxu0
  %v260 = vadd.f32 0.0, %v259
  %v261 = vpop.f32.mrf.mxu0
  %v262 = vadd.f32 0.0, %v261
  %263 = vmatmul.bf16.gmra.mxu0 %v162
  %v264 = vpop.f32.mrf.mxu0
  %v265 = vadd.f32 0.0, %v264
  %v266 = vpop.f32.mrf.mxu0
  %v267 = vadd.f32 0.0, %v266
  %268 = vmatmul.bf16.gmra.mxu0 %v165
  %v269 = vpop.f32.mrf.mxu0
  %v270 = vadd.f32 0.0, %v269
  %v271 = vpop.f32.mrf.mxu0
  %v272 = vadd.f32 0.0, %v271
  %273 = vmatmul.bf16.gmra.mxu0 %v168
  %v274 = vpop.f32.mrf.mxu0
  %v275 = vadd.f32 0.0, %v274
  %v276 = vpop.f32.mrf.mxu0
  %v277 = vadd.f32 0.0, %v276
  %278 = vmatmul.bf16.gmra.mxu0 %v171
  %v279 = vpop.f32.mrf.mxu0
  %v280 = vadd.f32 0.0, %v279
  %v281 = vpop.f32.mrf.mxu0
  %v282 = vadd.f32 0.0, %v281
  %283 = vmatmul.bf16.gmra.mxu0 %v174
  %v284 = vpop.f32.mrf.mxu0
  %v285 = vadd.f32 0.0, %v284
  %v286 = vpop.f32.mrf.mxu0
  %v287 = vadd.f32 0.0, %v286
  %288 = vmatmul.bf16.gmra.mxu0 %v177
  %v289 = vpop.f32.mrf.mxu0
  %v290 = vadd.f32 0.0, %v289
  %v291 = vpop.f32.mrf.mxu0
  %v292 = vadd.f32 0.0, %v291
  %293 = vmatmul.bf16.gmra.mxu0 %v180
  %v294 = vpop.f32.mrf.mxu0
  %v295 = vadd.f32 0.0, %v294
  %v296 = vpop.f32.mrf.mxu0
  %v297 = vadd.f32 0.0, %v296
  %298 = vmatmul.bf16.gmra.mxu0 %v183
  %v299 = vpop.f32.mrf.mxu0
  %v300 = vadd.f32 0.0, %v299
  %v301 = vpop.f32.mrf.mxu0
  %v302 = vadd.f32 0.0, %v301
  %303 = vmatmul.bf16.gmra.mxu0 %v186
  %v304 = vpop.f32.mrf.mxu0
  %v305 = vadd.f32 0.0, %v304
  %v306 = vpop.f32.mrf.mxu0
  %v307 = vadd.f32 0.0, %v306
  %308 = vmatmul.bf16.gmra.mxu0 %v189
  %v309 = vpop.f32.mrf.mxu0
  %v310 = vadd.f32 0.0, %v309
  %v311 = vpop.f32.mrf.mxu0
  %v312 = vadd.f32 0.0, %v311
  %313 = vmatmul.bf16.gmra.mxu0 %v192
  %v314 = vpop.f32.mrf.mxu0
  %v315 = vadd.f32 0.0, %v314
  %v316 = vpop.f32.mrf.mxu0
  %v317 = vadd.f32 0.0, %v316
  %318 = vmatmul.bf16.gmra.mxu0 %v195
  %v319 = vpop.f32.mrf.mxu0
  %v320 = vadd.f32 0.0, %v319
  %v321 = vpop.f32.mrf.mxu0
  %322 = vmatmul.bf16.gmra.mxu0 %v198
  %v323 = vpop.f32.mrf.mxu0
  %v324 = vpop.f32.mrf.mxu0
  %325 = vdwg.mxu0
  %326 = vmatpush.bf16.msra.mxu0 0
  %327 = vmatpush.bf16.msra.mxu0 0
  %328 = vmatpush.bf16.msra.mxu0 0
  %329 = vmatpush.bf16.msra.mxu0 0
  %330 = vmatpush.bf16.msra.mxu0 0
  %331 = vmatpush.bf16.msra.mxu0 0
  %332 = vmatpush.bf16.msra.mxu0 0
  %333 = vmatpush.bf16.msra.mxu0 %v112
  %334 = vmatmul.bf16.gmra.mxu0 %v129
  %v335 = vpop.f32.mrf.mxu0
  %v336 = vadd.f32 0.0, %v335
  %v337 = vpop.f32.mrf.mxu0
  %v338 = vadd.f32 0.0, %v337
  %339 = vmatmul.bf16.gmra.mxu0 %v132
  %v340 = vpop.f32.mrf.mxu0
  %v341 = vadd.f32 0.0, %v340
  %v342 = vpop.f32.mrf.mxu0
  %v343 = vadd.f32 0.0, %v342
  %344 = vmatmul.bf16.gmra.mxu0 %v135
  %v345 = vpop.f32.mrf.mxu0
  %v346 = vadd.f32 0.0, %v345
  %v347 = vpop.f32.mrf.mxu0
  %v348 = vadd.f32 0.0, %v347
  %349 = vmatmul.bf16.gmra.mxu0 %v138
  %v350 = vpop.f32.mrf.mxu0
  %v351 = vadd.f32 0.0, %v350
  %v352 = vpop.f32.mrf.mxu0
  %v353 = vadd.f32 0.0, %v352
  %354 = vmatmul.bf16.gmra.mxu0 %v141
  %v355 = vpop.f32.mrf.mxu0
  %v356 = vadd.f32 0.0, %v355
  %v357 = vpop.f32.mrf.mxu0
  %v358 = vadd.f32 0.0, %v357
  %359 = vmatmul.bf16.gmra.mxu0 %v144
  %v360 = vpop.f32.mrf.mxu0
  %v361 = vadd.f32 0.0, %v360
  %v362 = vpop.f32.mrf.mxu0
  %v363 = vadd.f32 0.0, %v362
  %364 = vmatmul.bf16.gmra.mxu0 %v147
  %v365 = vpop.f32.mrf.mxu0
  %v366 = vadd.f32 0.0, %v365
  %v367 = vpop.f32.mrf.mxu0
  %v368 = vadd.f32 0.0, %v367
  %369 = vmatmul.bf16.gmra.mxu0 %v150
  %v370 = vpop.f32.mrf.mxu0
  %v371 = vadd.f32 0.0, %v370
  %v372 = vpop.f32.mrf.mxu0
  %v373 = vadd.f32 0.0, %v372
  %374 = vmatmul.bf16.gmra.mxu0 %v153
  %v375 = vpop.f32.mrf.mxu0
  %v376 = vadd.f32 0.0, %v375
  %v377 = vpop.f32.mrf.mxu0
  %v378 = vadd.f32 0.0, %v377
  %379 = vmatmul.bf16.gmra.mxu0 %v156
  %v380 = vpop.f32.mrf.mxu0
  %v381 = vadd.f32 0.0, %v380
  %v382 = vpop.f32.mrf.mxu0
  %v383 = vadd.f32 0.0, %v382
  %384 = vmatmul.bf16.gmra.mxu0 %v159
  %v385 = vpop.f32.mrf.mxu0
  %v386 = vadd.f32 0.0, %v385
  %v387 = vpop.f32.mrf.mxu0
  %v388 = vadd.f32 0.0, %v387
  %389 = vmatmul.bf16.gmra.mxu0 %v162
  %v390 = vpop.f32.mrf.mxu0
  %v391 = vadd.f32 0.0, %v390
  %v392 = vpop.f32.mrf.mxu0
  %v393 = vadd.f32 0.0, %v392
  %394 = vmatmul.bf16.gmra.mxu0 %v165
  %v395 = vpop.f32.mrf.mxu0
  %v396 = vadd.f32 0.0, %v395
  %v397 = vpop.f32.mrf.mxu0
  %v398 = vadd.f32 0.0, %v397
  %399 = vmatmul.bf16.gmra.mxu0 %v168
  %v400 = vpop.f32.mrf.mxu0
  %v401 = vadd.f32 0.0, %v400
  %v402 = vpop.f32.mrf.mxu0
  %v403 = vadd.f32 0.0, %v402
  %404 = vmatmul.bf16.gmra.mxu0 %v171
  %v405 = vpop.f32.mrf.mxu0
  %v406 = vadd.f32 0.0, %v405
  %v407 = vpop.f32.mrf.mxu0
  %v408 = vadd.f32 0.0, %v407
  %409 = vmatmul.bf16.gmra.mxu0 %v174
  %v410 = vpop.f32.mrf.mxu0
  %v411 = vadd.f32 0.0, %v410
  %v412 = vpop.f32.mrf.mxu0
  %v413 = vadd.f32 0.0, %v412
  %414 = vmatmul.bf16.gmra.mxu0 %v177
  %v415 = vpop.f32.mrf.mxu0
  %v416 = vadd.f32 0.0, %v415
  %v417 = vpop.f32.mrf.mxu0
  %v418 = vadd.f32 0.0, %v417
  %419 = vmatmul.bf16.gmra.mxu0 %v180
  %v420 = vpop.f32.mrf.mxu0
  %v421 = vadd.f32 0.0, %v420
  %v422 = vpop.f32.mrf.mxu0
  %v423 = vadd.f32 0.0, %v422
  %424 = vmatmul.bf16.gmra.mxu0 %v183
  %v425 = vpop.f32.mrf.mxu0
  %v426 = vadd.f32 0.0, %v425
  %v427 = vpop.f32.mrf.mxu0
  %v428 = vadd.f32 0.0, %v427
  %429 = vmatmul.bf16.gmra.mxu0 %v186
  %v430 = vpop.f32.mrf.mxu0
  %v431 = vadd.f32 0.0, %v430
  %v432 = vpop.f32.mrf.mxu0
  %v433 = vadd.f32 0.0, %v432
  %434 = vmatmul.bf16.gmra.mxu0 %v189
  %v435 = vpop.f32.mrf.mxu0
  %v436 = vadd.f32 0.0, %v435
  %v437 = vpop.f32.mrf.mxu0
  %v438 = vadd.f32 0.0, %v437
  %439 = vmatmul.bf16.gmra.mxu0 %v192
  %v440 = vpop.f32.mrf.mxu0
  %v441 = vadd.f32 0.0, %v440
  %v442 = vpop.f32.mrf.mxu0
  %v443 = vadd.f32 0.0, %v442
  %444 = vmatmul.bf16.gmra.mxu0 %v195
  %v445 = vpop.f32.mrf.mxu0
  %v446 = vadd.f32 0.0, %v445
  %v447 = vpop.f32.mrf.mxu0
  %448 = vmatmul.bf16.gmra.mxu0 %v198
  %v449 = vpop.f32.mrf.mxu0
  %v450 = vpop.f32.mrf.mxu0
  %451 = vdwg.mxu0
  %452 = vmatpush.bf16.msra.mxu0 0
  %453 = vmatpush.bf16.msra.mxu0 0
  %454 = vmatpush.bf16.msra.mxu0 0
  %455 = vmatpush.bf16.msra.mxu0 0
  %456 = vmatpush.bf16.msra.mxu0 0
  %457 = vmatpush.bf16.msra.mxu0 0
  %458 = vmatpush.bf16.msra.mxu0 0
  %459 = vmatpush.bf16.msra.mxu0 %v113
  %460 = vmatmul.bf16.gmra.mxu0 %v129
  %v461 = vpop.f32.mrf.mxu0
  %v462 = vadd.f32 0.0, %v461
  %v463 = vpop.f32.mrf.mxu0
  %v464 = vadd.f32 0.0, %v463
  %465 = vmatmul.bf16.gmra.mxu0 %v132
  %v466 = vpop.f32.mrf.mxu0
  %v467 = vadd.f32 0.0, %v466
  %v468 = vpop.f32.mrf.mxu0
  %v469 = vadd.f32 0.0, %v468
  %470 = vmatmul.bf16.gmra.mxu0 %v135
  %v471 = vpop.f32.mrf.mxu0
  %v472 = vadd.f32 0.0, %v471
  %v473 = vpop.f32.mrf.mxu0
  %v474 = vadd.f32 0.0, %v473
  %475 = vmatmul.bf16.gmra.mxu0 %v138
  %v476 = vpop.f32.mrf.mxu0
  %v477 = vadd.f32 0.0, %v476
  %v478 = vpop.f32.mrf.mxu0
  %v479 = vadd.f32 0.0, %v478
  %480 = vmatmul.bf16.gmra.mxu0 %v141
  %v481 = vpop.f32.mrf.mxu0
  %v482 = vadd.f32 0.0, %v481
  %v483 = vpop.f32.mrf.mxu0
  %v484 = vadd.f32 0.0, %v483
  %485 = vmatmul.bf16.gmra.mxu0 %v144
  %v486 = vpop.f32.mrf.mxu0
  %v487 = vadd.f32 0.0, %v486
  %v488 = vpop.f32.mrf.mxu0
  %v489 = vadd.f32 0.0, %v488
  %490 = vmatmul.bf16.gmra.mxu0 %v147
  %v491 = vpop.f32.mrf.mxu0
  %v492 = vadd.f32 0.0, %v491
  %v493 = vpop.f32.mrf.mxu0
  %v494 = vadd.f32 0.0, %v493
  %495 = vmatmul.bf16.gmra.mxu0 %v150
  %v496 = vpop.f32.mrf.mxu0
  %v497 = vadd.f32 0.0, %v496
  %v498 = vpop.f32.mrf.mxu0
  %v499 = vadd.f32 0.0, %v498
  %500 = vmatmul.bf16.gmra.mxu0 %v153
  %v501 = vpop.f32.mrf.mxu0
  %v502 = vadd.f32 0.0, %v501
  %v503 = vpop.f32.mrf.mxu0
  %v504 = vadd.f32 0.0, %v503
  %505 = vmatmul.bf16.gmra.mxu0 %v156
  %v506 = vpop.f32.mrf.mxu0
  %v507 = vadd.f32 0.0, %v506
  %v508 = vpop.f32.mrf.mxu0
  %v509 = vadd.f32 0.0, %v508
  %510 = vmatmul.bf16.gmra.mxu0 %v159
  %v511 = vpop.f32.mrf.mxu0
  %v512 = vadd.f32 0.0, %v511
  %v513 = vpop.f32.mrf.mxu0
  %v514 = vadd.f32 0.0, %v513
  %515 = vmatmul.bf16.gmra.mxu0 %v162
  %v516 = vpop.f32.mrf.mxu0
  %v517 = vadd.f32 0.0, %v516
  %v518 = vpop.f32.mrf.mxu0
  %v519 = vadd.f32 0.0, %v518
  %520 = vmatmul.bf16.gmra.mxu0 %v165
  %v521 = vpop.f32.mrf.mxu0
  %v522 = vadd.f32 0.0, %v521
  %v523 = vpop.f32.mrf.mxu0
  %v524 = vadd.f32 0.0, %v523
  %525 = vmatmul.bf16.gmra.mxu0 %v168
  %v526 = vpop.f32.mrf.mxu0
  %v527 = vadd.f32 0.0, %v526
  %v528 = vpop.f32.mrf.mxu0
  %v529 = vadd.f32 0.0, %v528
  %530 = vmatmul.bf16.gmra.mxu0 %v171
  %v531 = vpop.f32.mrf.mxu0
  %v532 = vadd.f32 0.0, %v531
  %v533 = vpop.f32.mrf.mxu0
  %v534 = vadd.f32 0.0, %v533
  %535 = vmatmul.bf16.gmra.mxu0 %v174
  %v536 = vpop.f32.mrf.mxu0
  %v537 = vadd.f32 0.0, %v536
  %v538 = vpop.f32.mrf.mxu0
  %v539 = vadd.f32 0.0, %v538
  %540 = vmatmul.bf16.gmra.mxu0 %v177
  %v541 = vpop.f32.mrf.mxu0
  %v542 = vadd.f32 0.0, %v541
  %v543 = vpop.f32.mrf.mxu0
  %v544 = vadd.f32 0.0, %v543
  %545 = vmatmul.bf16.gmra.mxu0 %v180
  %v546 = vpop.f32.mrf.mxu0
  %v547 = vadd.f32 0.0, %v546
  %v548 = vpop.f32.mrf.mxu0
  %v549 = vadd.f32 0.0, %v548
  %550 = vmatmul.bf16.gmra.mxu0 %v183
  %v551 = vpop.f32.mrf.mxu0
  %v552 = vadd.f32 0.0, %v551
  %v553 = vpop.f32.mrf.mxu0
  %v554 = vadd.f32 0.0, %v553
  %555 = vmatmul.bf16.gmra.mxu0 %v186
  %v556 = vpop.f32.mrf.mxu0
  %v557 = vadd.f32 0.0, %v556
  %v558 = vpop.f32.mrf.mxu0
  %v559 = vadd.f32 0.0, %v558
  %560 = vmatmul.bf16.gmra.mxu0 %v189
  %v561 = vpop.f32.mrf.mxu0
  %v562 = vadd.f32 0.0, %v561
  %v563 = vpop.f32.mrf.mxu0
  %v564 = vadd.f32 0.0, %v563
  %565 = vmatmul.bf16.gmra.mxu0 %v192
  %v566 = vpop.f32.mrf.mxu0
  %v567 = vadd.f32 0.0, %v566
  %v568 = vpop.f32.mrf.mxu0
  %v569 = vadd.f32 0.0, %v568
  %570 = vmatmul.bf16.gmra.mxu0 %v195
  %v571 = vpop.f32.mrf.mxu0
  %v572 = vadd.f32 0.0, %v571
  %v573 = vpop.f32.mrf.mxu0
  %574 = vmatmul.bf16.gmra.mxu0 %v198
  %v575 = vpop.f32.mrf.mxu0
  %v576 = vpop.f32.mrf.mxu0
  %577 = vdwg.mxu0
  %578 = vmatpush.bf16.msra.mxu0 0
  %579 = vmatpush.bf16.msra.mxu0 0
  %580 = vmatpush.bf16.msra.mxu0 0
  %581 = vmatpush.bf16.msra.mxu0 0
  %582 = vmatpush.bf16.msra.mxu0 0
  %583 = vmatpush.bf16.msra.mxu0 0
  %584 = vmatpush.bf16.msra.mxu0 0
  %585 = vmatpush.bf16.msra.mxu0 %v114
  %586 = vmatmul.bf16.gmra.mxu0 %v129
  %v587 = vpop.f32.mrf.mxu0
  %v588 = vadd.f32 0.0, %v587
  %v589 = vpop.f32.mrf.mxu0
  %v590 = vadd.f32 0.0, %v589
  %591 = vmatmul.bf16.gmra.mxu0 %v132
  %v592 = vpop.f32.mrf.mxu0
  %v593 = vadd.f32 0.0, %v592
  %v594 = vpop.f32.mrf.mxu0
  %v595 = vadd.f32 0.0, %v594
  %596 = vmatmul.bf16.gmra.mxu0 %v135
  %v597 = vpop.f32.mrf.mxu0
  %v598 = vadd.f32 0.0, %v597
  %v599 = vpop.f32.mrf.mxu0
  %v600 = vadd.f32 0.0, %v599
  %601 = vmatmul.bf16.gmra.mxu0 %v138
  %v602 = vpop.f32.mrf.mxu0
  %v603 = vadd.f32 0.0, %v602
  %v604 = vpop.f32.mrf.mxu0
  %v605 = vadd.f32 0.0, %v604
  %606 = vmatmul.bf16.gmra.mxu0 %v141
  %v607 = vpop.f32.mrf.mxu0
  %v608 = vadd.f32 0.0, %v607
  %v609 = vpop.f32.mrf.mxu0
  %v610 = vadd.f32 0.0, %v609
  %611 = vmatmul.bf16.gmra.mxu0 %v144
  %v612 = vpop.f32.mrf.mxu0
  %v613 = vadd.f32 0.0, %v612
  %v614 = vpop.f32.mrf.mxu0
  %v615 = vadd.f32 0.0, %v614
  %616 = vmatmul.bf16.gmra.mxu0 %v147
  %v617 = vpop.f32.mrf.mxu0
  %v618 = vadd.f32 0.0, %v617
  %v619 = vpop.f32.mrf.mxu0
  %v620 = vadd.f32 0.0, %v619
  %621 = vmatmul.bf16.gmra.mxu0 %v150
  %v622 = vpop.f32.mrf.mxu0
  %v623 = vadd.f32 0.0, %v622
  %v624 = vpop.f32.mrf.mxu0
  %v625 = vadd.f32 0.0, %v624
  %626 = vmatmul.bf16.gmra.mxu0 %v153
  %v627 = vpop.f32.mrf.mxu0
  %v628 = vadd.f32 0.0, %v627
  %v629 = vpop.f32.mrf.mxu0
  %v630 = vadd.f32 0.0, %v629
  %631 = vmatmul.bf16.gmra.mxu0 %v156
  %v632 = vpop.f32.mrf.mxu0
  %v633 = vadd.f32 0.0, %v632
  %v634 = vpop.f32.mrf.mxu0
  %v635 = vadd.f32 0.0, %v634
  %636 = vmatmul.bf16.gmra.mxu0 %v159
  %v637 = vpop.f32.mrf.mxu0
  %v638 = vadd.f32 0.0, %v637
  %v639 = vpop.f32.mrf.mxu0
  %v640 = vadd.f32 0.0, %v639
  %641 = vmatmul.bf16.gmra.mxu0 %v162
  %v642 = vpop.f32.mrf.mxu0
  %v643 = vadd.f32 0.0, %v642
  %v644 = vpop.f32.mrf.mxu0
  %v645 = vadd.f32 0.0, %v644
  %646 = vmatmul.bf16.gmra.mxu0 %v165
  %v647 = vpop.f32.mrf.mxu0
  %v648 = vadd.f32 0.0, %v647
  %v649 = vpop.f32.mrf.mxu0
  %v650 = vadd.f32 0.0, %v649
  %651 = vmatmul.bf16.gmra.mxu0 %v168
  %v652 = vpop.f32.mrf.mxu0
  %v653 = vadd.f32 0.0, %v652
  %v654 = vpop.f32.mrf.mxu0
  %v655 = vadd.f32 0.0, %v654
  %656 = vmatmul.bf16.gmra.mxu0 %v171
  %v657 = vpop.f32.mrf.mxu0
  %v658 = vadd.f32 0.0, %v657
  %v659 = vpop.f32.mrf.mxu0
  %v660 = vadd.f32 0.0, %v659
  %661 = vmatmul.bf16.gmra.mxu0 %v174
  %v662 = vpop.f32.mrf.mxu0
  %v663 = vadd.f32 0.0, %v662
  %v664 = vpop.f32.mrf.mxu0
  %v665 = vadd.f32 0.0, %v664
  %666 = vmatmul.bf16.gmra.mxu0 %v177
  %v667 = vpop.f32.mrf.mxu0
  %v668 = vadd.f32 0.0, %v667
  %v669 = vpop.f32.mrf.mxu0
  %v670 = vadd.f32 0.0, %v669
  %671 = vmatmul.bf16.gmra.mxu0 %v180
  %v672 = vpop.f32.mrf.mxu0
  %v673 = vadd.f32 0.0, %v672
  %v674 = vpop.f32.mrf.mxu0
  %v675 = vadd.f32 0.0, %v674
  %676 = vmatmul.bf16.gmra.mxu0 %v183
  %v677 = vpop.f32.mrf.mxu0
  %v678 = vadd.f32 0.0, %v677
  %v679 = vpop.f32.mrf.mxu0
  %v680 = vadd.f32 0.0, %v679
  %681 = vmatmul.bf16.gmra.mxu0 %v186
  %v682 = vpop.f32.mrf.mxu0
  %v683 = vadd.f32 0.0, %v682
  %v684 = vpop.f32.mrf.mxu0
  %v685 = vadd.f32 0.0, %v684
  %686 = vmatmul.bf16.gmra.mxu0 %v189
  %v687 = vpop.f32.mrf.mxu0
  %v688 = vadd.f32 0.0, %v687
  %v689 = vpop.f32.mrf.mxu0
  %v690 = vadd.f32 0.0, %v689
  %691 = vmatmul.bf16.gmra.mxu0 %v192
  %v692 = vpop.f32.mrf.mxu0
  %v693 = vadd.f32 0.0, %v692
  %v694 = vpop.f32.mrf.mxu0
  %v695 = vadd.f32 0.0, %v694
  %696 = vmatmul.bf16.gmra.mxu0 %v195
  %v697 = vpop.f32.mrf.mxu0
  %v698 = vadd.f32 0.0, %v697
  %v699 = vpop.f32.mrf.mxu0
  %700 = vmatmul.bf16.gmra.mxu0 %v198
  %v701 = vpop.f32.mrf.mxu0
  %v702 = vpop.f32.mrf.mxu0
  %703 = vdwg.mxu0
  %704 = vmatpush.bf16.msra.mxu0 0
  %705 = vmatpush.bf16.msra.mxu0 0
  %706 = vmatpush.bf16.msra.mxu0 0
  %707 = vmatpush.bf16.msra.mxu0 0
  %708 = vmatpush.bf16.msra.mxu0 0
  %709 = vmatpush.bf16.msra.mxu0 0
  %710 = vmatpush.bf16.msra.mxu0 0
  %711 = vmatpush.bf16.msra.mxu0 %v115
  %712 = vmatmul.bf16.gmra.mxu0 %v129
  %v713 = vpop.f32.mrf.mxu0
  %v714 = vadd.f32 0.0, %v713
  %v715 = vpop.f32.mrf.mxu0
  %v716 = vadd.f32 0.0, %v715
  %717 = vmatmul.bf16.gmra.mxu0 %v132
  %v718 = vpop.f32.mrf.mxu0
  %v719 = vadd.f32 0.0, %v718
  %v720 = vpop.f32.mrf.mxu0
  %v721 = vadd.f32 0.0, %v720
  %722 = vmatmul.bf16.gmra.mxu0 %v135
  %v723 = vpop.f32.mrf.mxu0
  %v724 = vadd.f32 0.0, %v723
  %v725 = vpop.f32.mrf.mxu0
  %v726 = vadd.f32 0.0, %v725
  %727 = vmatmul.bf16.gmra.mxu0 %v138
  %v728 = vpop.f32.mrf.mxu0
  %v729 = vadd.f32 0.0, %v728
  %v730 = vpop.f32.mrf.mxu0
  %v731 = vadd.f32 0.0, %v730
  %732 = vmatmul.bf16.gmra.mxu0 %v141
  %v733 = vpop.f32.mrf.mxu0
  %v734 = vadd.f32 0.0, %v733
  %v735 = vpop.f32.mrf.mxu0
  %v736 = vadd.f32 0.0, %v735
  %737 = vmatmul.bf16.gmra.mxu0 %v144
  %v738 = vpop.f32.mrf.mxu0
  %v739 = vadd.f32 0.0, %v738
  %v740 = vpop.f32.mrf.mxu0
  %v741 = vadd.f32 0.0, %v740
  %742 = vmatmul.bf16.gmra.mxu0 %v147
  %v743 = vpop.f32.mrf.mxu0
  %v744 = vadd.f32 0.0, %v743
  %v745 = vpop.f32.mrf.mxu0
  %v746 = vadd.f32 0.0, %v745
  %747 = vmatmul.bf16.gmra.mxu0 %v150
  %v748 = vpop.f32.mrf.mxu0
  %v749 = vadd.f32 0.0, %v748
  %v750 = vpop.f32.mrf.mxu0
  %v751 = vadd.f32 0.0, %v750
  %752 = vmatmul.bf16.gmra.mxu0 %v153
  %v753 = vpop.f32.mrf.mxu0
  %v754 = vadd.f32 0.0, %v753
  %v755 = vpop.f32.mrf.mxu0
  %v756 = vadd.f32 0.0, %v755
  %757 = vmatmul.bf16.gmra.mxu0 %v156
  %v758 = vpop.f32.mrf.mxu0
  %v759 = vadd.f32 0.0, %v758
  %v760 = vpop.f32.mrf.mxu0
  %v761 = vadd.f32 0.0, %v760
  %762 = vmatmul.bf16.gmra.mxu0 %v159
  %v763 = vpop.f32.mrf.mxu0
  %v764 = vadd.f32 0.0, %v763
  %v765 = vpop.f32.mrf.mxu0
  %v766 = vadd.f32 0.0, %v765
  %767 = vmatmul.bf16.gmra.mxu0 %v162
  %v768 = vpop.f32.mrf.mxu0
  %v769 = vadd.f32 0.0, %v768
  %v770 = vpop.f32.mrf.mxu0
  %v771 = vadd.f32 0.0, %v770
  %772 = vmatmul.bf16.gmra.mxu0 %v165
  %v773 = vpop.f32.mrf.mxu0
  %v774 = vadd.f32 0.0, %v773
  %v775 = vpop.f32.mrf.mxu0
  %v776 = vadd.f32 0.0, %v775
  %777 = vmatmul.bf16.gmra.mxu0 %v168
  %v778 = vpop.f32.mrf.mxu0
  %v779 = vadd.f32 0.0, %v778
  %v780 = vpop.f32.mrf.mxu0
  %v781 = vadd.f32 0.0, %v780
  %782 = vmatmul.bf16.gmra.mxu0 %v171
  %v783 = vpop.f32.mrf.mxu0
  %v784 = vadd.f32 0.0, %v783
  %v785 = vpop.f32.mrf.mxu0
  %v786 = vadd.f32 0.0, %v785
  %787 = vmatmul.bf16.gmra.mxu0 %v174
  %v788 = vpop.f32.mrf.mxu0
  %v789 = vadd.f32 0.0, %v788
  %v790 = vpop.f32.mrf.mxu0
  %v791 = vadd.f32 0.0, %v790
  %792 = vmatmul.bf16.gmra.mxu0 %v177
  %v793 = vpop.f32.mrf.mxu0
  %v794 = vadd.f32 0.0, %v793
  %v795 = vpop.f32.mrf.mxu0
  %v796 = vadd.f32 0.0, %v795
  %797 = vmatmul.bf16.gmra.mxu0 %v180
  %v798 = vpop.f32.mrf.mxu0
  %v799 = vadd.f32 0.0, %v798
  %v800 = vpop.f32.mrf.mxu0
  %v801 = vadd.f32 0.0, %v800
  %802 = vmatmul.bf16.gmra.mxu0 %v183
  %v803 = vpop.f32.mrf.mxu0
  %v804 = vadd.f32 0.0, %v803
  %v805 = vpop.f32.mrf.mxu0
  %v806 = vadd.f32 0.0, %v805
  %807 = vmatmul.bf16.gmra.mxu0 %v186
  %v808 = vpop.f32.mrf.mxu0
  %v809 = vadd.f32 0.0, %v808
  %v810 = vpop.f32.mrf.mxu0
  %v811 = vadd.f32 0.0, %v810
  %812 = vmatmul.bf16.gmra.mxu0 %v189
  %v813 = vpop.f32.mrf.mxu0
  %v814 = vadd.f32 0.0, %v813
  %v815 = vpop.f32.mrf.mxu0
  %v816 = vadd.f32 0.0, %v815
  %817 = vmatmul.bf16.gmra.mxu0 %v192
  %v818 = vpop.f32.mrf.mxu0
  %v819 = vadd.f32 0.0, %v818
  %v820 = vpop.f32.mrf.mxu0
  %v821 = vadd.f32 0.0, %v820
  %822 = vmatmul.bf16.gmra.mxu0 %v195
  %v823 = vpop.f32.mrf.mxu0
  %v824 = vadd.f32 0.0, %v823
  %v825 = vpop.f32.mrf.mxu0
  %826 = vmatmul.bf16.gmra.mxu0 %v198
  %v827 = vpop.f32.mrf.mxu0
  %v828 = vpop.f32.mrf.mxu0
  %829 = vdwg.mxu0
  %830 = vmatpush.bf16.msra.mxu0 0
  %831 = vmatpush.bf16.msra.mxu0 0
  %832 = vmatpush.bf16.msra.mxu0 0
  %833 = vmatpush.bf16.msra.mxu0 0
  %834 = vmatpush.bf16.msra.mxu0 0
  %835 = vmatpush.bf16.msra.mxu0 0
  %836 = vmatpush.bf16.msra.mxu0 0
  %837 = vmatpush.bf16.msra.mxu0 %v116
  %838 = vmatmul.bf16.gmra.mxu0 %v129
  %v839 = vpop.f32.mrf.mxu0
  %v840 = vadd.f32 0.0, %v839
  %v841 = vpop.f32.mrf.mxu0
  %v842 = vadd.f32 0.0, %v841
  %843 = vmatmul.bf16.gmra.mxu0 %v132
  %v844 = vpop.f32.mrf.mxu0
  %v845 = vadd.f32 0.0, %v844
  %v846 = vpop.f32.mrf.mxu0
  %v847 = vadd.f32 0.0, %v846
  %848 = vmatmul.bf16.gmra.mxu0 %v135
  %v849 = vpop.f32.mrf.mxu0
  %v850 = vadd.f32 0.0, %v849
  %v851 = vpop.f32.mrf.mxu0
  %v852 = vadd.f32 0.0, %v851
  %853 = vmatmul.bf16.gmra.mxu0 %v138
  %v854 = vpop.f32.mrf.mxu0
  %v855 = vadd.f32 0.0, %v854
  %v856 = vpop.f32.mrf.mxu0
  %v857 = vadd.f32 0.0, %v856
  %858 = vmatmul.bf16.gmra.mxu0 %v141
  %v859 = vpop.f32.mrf.mxu0
  %v860 = vadd.f32 0.0, %v859
  %v861 = vpop.f32.mrf.mxu0
  %v862 = vadd.f32 0.0, %v861
  %863 = vmatmul.bf16.gmra.mxu0 %v144
  %v864 = vpop.f32.mrf.mxu0
  %v865 = vadd.f32 0.0, %v864
  %v866 = vpop.f32.mrf.mxu0
  %v867 = vadd.f32 0.0, %v866
  %868 = vmatmul.bf16.gmra.mxu0 %v147
  %v869 = vpop.f32.mrf.mxu0
  %v870 = vadd.f32 0.0, %v869
  %v871 = vpop.f32.mrf.mxu0
  %v872 = vadd.f32 0.0, %v871
  %873 = vmatmul.bf16.gmra.mxu0 %v150
  %v874 = vpop.f32.mrf.mxu0
  %v875 = vadd.f32 0.0, %v874
  %v876 = vpop.f32.mrf.mxu0
  %v877 = vadd.f32 0.0, %v876
  %878 = vmatmul.bf16.gmra.mxu0 %v153
  %v879 = vpop.f32.mrf.mxu0
  %v880 = vadd.f32 0.0, %v879
  %v881 = vpop.f32.mrf.mxu0
  %v882 = vadd.f32 0.0, %v881
  %883 = vmatmul.bf16.gmra.mxu0 %v156
  %v884 = vpop.f32.mrf.mxu0
  %v885 = vadd.f32 0.0, %v884
  %v886 = vpop.f32.mrf.mxu0
  %v887 = vadd.f32 0.0, %v886
  %888 = vmatmul.bf16.gmra.mxu0 %v159
  %v889 = vpop.f32.mrf.mxu0
  %v890 = vadd.f32 0.0, %v889
  %v891 = vpop.f32.mrf.mxu0
  %v892 = vadd.f32 0.0, %v891
  %893 = vmatmul.bf16.gmra.mxu0 %v162
  %v894 = vpop.f32.mrf.mxu0
  %v895 = vadd.f32 0.0, %v894
  %v896 = vpop.f32.mrf.mxu0
  %v897 = vadd.f32 0.0, %v896
  %898 = vmatmul.bf16.gmra.mxu0 %v165
  %v899 = vpop.f32.mrf.mxu0
  %v900 = vadd.f32 0.0, %v899
  %v901 = vpop.f32.mrf.mxu0
  %v902 = vadd.f32 0.0, %v901
  %903 = vmatmul.bf16.gmra.mxu0 %v168
  %v904 = vpop.f32.mrf.mxu0
  %v905 = vadd.f32 0.0, %v904
  %v906 = vpop.f32.mrf.mxu0
  %v907 = vadd.f32 0.0, %v906
  %908 = vmatmul.bf16.gmra.mxu0 %v171
  %v909 = vpop.f32.mrf.mxu0
  %v910 = vadd.f32 0.0, %v909
  %v911 = vpop.f32.mrf.mxu0
  %v912 = vadd.f32 0.0, %v911
  %913 = vmatmul.bf16.gmra.mxu0 %v174
  %v914 = vpop.f32.mrf.mxu0
  %v915 = vadd.f32 0.0, %v914
  %v916 = vpop.f32.mrf.mxu0
  %v917 = vadd.f32 0.0, %v916
  %918 = vmatmul.bf16.gmra.mxu0 %v177
  %v919 = vpop.f32.mrf.mxu0
  %v920 = vadd.f32 0.0, %v919
  %v921 = vpop.f32.mrf.mxu0
  %v922 = vadd.f32 0.0, %v921
  %923 = vmatmul.bf16.gmra.mxu0 %v180
  %v924 = vpop.f32.mrf.mxu0
  %v925 = vadd.f32 0.0, %v924
  %v926 = vpop.f32.mrf.mxu0
  %v927 = vadd.f32 0.0, %v926
  %928 = vmatmul.bf16.gmra.mxu0 %v183
  %v929 = vpop.f32.mrf.mxu0
  %v930 = vadd.f32 0.0, %v929
  %v931 = vpop.f32.mrf.mxu0
  %v932 = vadd.f32 0.0, %v931
  %933 = vmatmul.bf16.gmra.mxu0 %v186
  %v934 = vpop.f32.mrf.mxu0
  %v935 = vadd.f32 0.0, %v934
  %v936 = vpop.f32.mrf.mxu0
  %v937 = vadd.f32 0.0, %v936
  %938 = vmatmul.bf16.gmra.mxu0 %v189
  %v939 = vpop.f32.mrf.mxu0
  %v940 = vadd.f32 0.0, %v939
  %v941 = vpop.f32.mrf.mxu0
  %v942 = vadd.f32 0.0, %v941
  %943 = vmatmul.bf16.gmra.mxu0 %v192
  %v944 = vpop.f32.mrf.mxu0
  %v945 = vadd.f32 0.0, %v944
  %v946 = vpop.f32.mrf.mxu0
  %v947 = vadd.f32 0.0, %v946
  %948 = vmatmul.bf16.gmra.mxu0 %v195
  %v949 = vpop.f32.mrf.mxu0
  %v950 = vadd.f32 0.0, %v949
  %v951 = vpop.f32.mrf.mxu0
  %952 = vmatmul.bf16.gmra.mxu0 %v198
  %v953 = vpop.f32.mrf.mxu0
  %v954 = vpop.f32.mrf.mxu0
  %955 = vdwg.mxu0
  %956 = vmatpush.bf16.msra.mxu0 0
  %957 = vmatpush.bf16.msra.mxu0 0
  %958 = vmatpush.bf16.msra.mxu0 0
  %959 = vmatpush.bf16.msra.mxu0 0
  %960 = vmatpush.bf16.msra.mxu0 0
  %961 = vmatpush.bf16.msra.mxu0 0
  %962 = vmatpush.bf16.msra.mxu0 0
  %963 = vmatpush.bf16.msra.mxu0 %v117
  %964 = vmatmul.bf16.gmra.mxu0 %v129
  %v965 = vpop.f32.mrf.mxu0
  %v966 = vadd.f32 0.0, %v965
  %v967 = vpop.f32.mrf.mxu0
  %v968 = vadd.f32 0.0, %v967
  %969 = vmatmul.bf16.gmra.mxu0 %v132
  %v970 = vpop.f32.mrf.mxu0
  %v971 = vadd.f32 0.0, %v970
  %v972 = vpop.f32.mrf.mxu0
  %v973 = vadd.f32 0.0, %v972
  %974 = vmatmul.bf16.gmra.mxu0 %v135
  %v975 = vpop.f32.mrf.mxu0
  %v976 = vadd.f32 0.0, %v975
  %v977 = vpop.f32.mrf.mxu0
  %v978 = vadd.f32 0.0, %v977
  %979 = vmatmul.bf16.gmra.mxu0 %v138
  %v980 = vpop.f32.mrf.mxu0
  %v981 = vadd.f32 0.0, %v980
  %v982 = vpop.f32.mrf.mxu0
  %v983 = vadd.f32 0.0, %v982
  %984 = vmatmul.bf16.gmra.mxu0 %v141
  %v985 = vpop.f32.mrf.mxu0
  %v986 = vadd.f32 0.0, %v985
  %v987 = vpop.f32.mrf.mxu0
  %v988 = vadd.f32 0.0, %v987
  %989 = vmatmul.bf16.gmra.mxu0 %v144
  %v990 = vpop.f32.mrf.mxu0
  %v991 = vadd.f32 0.0, %v990
  %v992 = vpop.f32.mrf.mxu0
  %v993 = vadd.f32 0.0, %v992
  %994 = vmatmul.bf16.gmra.mxu0 %v147
  %v995 = vpop.f32.mrf.mxu0
  %v996 = vadd.f32 0.0, %v995
  %v997 = vpop.f32.mrf.mxu0
  %v998 = vadd.f32 0.0, %v997
  %999 = vmatmul.bf16.gmra.mxu0 %v150
  %v1000 = vpop.f32.mrf.mxu0
  %v1001 = vadd.f32 0.0, %v1000
  %v1002 = vpop.f32.mrf.mxu0
  %v1003 = vadd.f32 0.0, %v1002
  %1004 = vmatmul.bf16.gmra.mxu0 %v153
  %v1005 = vpop.f32.mrf.mxu0
  %v1006 = vadd.f32 0.0, %v1005
  %v1007 = vpop.f32.mrf.mxu0
  %v1008 = vadd.f32 0.0, %v1007
  %1009 = vmatmul.bf16.gmra.mxu0 %v156
  %v1010 = vpop.f32.mrf.mxu0
  %v1011 = vadd.f32 0.0, %v1010
  %v1012 = vpop.f32.mrf.mxu0
  %v1013 = vadd.f32 0.0, %v1012
  %1014 = vmatmul.bf16.gmra.mxu0 %v159
  %v1015 = vpop.f32.mrf.mxu0
  %v1016 = vadd.f32 0.0, %v1015
  %v1017 = vpop.f32.mrf.mxu0
  %v1018 = vadd.f32 0.0, %v1017
  %1019 = vmatmul.bf16.gmra.mxu0 %v162
  %v1020 = vpop.f32.mrf.mxu0
  %v1021 = vadd.f32 0.0, %v1020
  %v1022 = vpop.f32.mrf.mxu0
  %v1023 = vadd.f32 0.0, %v1022
  %1024 = vmatmul.bf16.gmra.mxu0 %v165
  %v1025 = vpop.f32.mrf.mxu0
  %v1026 = vadd.f32 0.0, %v1025
  %v1027 = vpop.f32.mrf.mxu0
  %v1028 = vadd.f32 0.0, %v1027
  %1029 = vmatmul.bf16.gmra.mxu0 %v168
  %v1030 = vpop.f32.mrf.mxu0
  %v1031 = vadd.f32 0.0, %v1030
  %v1032 = vpop.f32.mrf.mxu0
  %v1033 = vadd.f32 0.0, %v1032
  %1034 = vmatmul.bf16.gmra.mxu0 %v171
  %v1035 = vpop.f32.mrf.mxu0
  %v1036 = vadd.f32 0.0, %v1035
  %v1037 = vpop.f32.mrf.mxu0
  %v1038 = vadd.f32 0.0, %v1037
  %1039 = vmatmul.bf16.gmra.mxu0 %v174
  %v1040 = vpop.f32.mrf.mxu0
  %v1041 = vadd.f32 0.0, %v1040
  %v1042 = vpop.f32.mrf.mxu0
  %v1043 = vadd.f32 0.0, %v1042
  %1044 = vmatmul.bf16.gmra.mxu0 %v177
  %v1045 = vpop.f32.mrf.mxu0
  %v1046 = vadd.f32 0.0, %v1045
  %v1047 = vpop.f32.mrf.mxu0
  %v1048 = vadd.f32 0.0, %v1047
  %1049 = vmatmul.bf16.gmra.mxu0 %v180
  %v1050 = vpop.f32.mrf.mxu0
  %v1051 = vadd.f32 0.0, %v1050
  %v1052 = vpop.f32.mrf.mxu0
  %v1053 = vadd.f32 0.0, %v1052
  %1054 = vmatmul.bf16.gmra.mxu0 %v183
  %v1055 = vpop.f32.mrf.mxu0
  %v1056 = vadd.f32 0.0, %v1055
  %v1057 = vpop.f32.mrf.mxu0
  %v1058 = vadd.f32 0.0, %v1057
  %1059 = vmatmul.bf16.gmra.mxu0 %v186
  %v1060 = vpop.f32.mrf.mxu0
  %v1061 = vadd.f32 0.0, %v1060
  %v1062 = vpop.f32.mrf.mxu0
  %v1063 = vadd.f32 0.0, %v1062
  %1064 = vmatmul.bf16.gmra.mxu0 %v189
  %v1065 = vpop.f32.mrf.mxu0
  %v1066 = vadd.f32 0.0, %v1065
  %v1067 = vpop.f32.mrf.mxu0
  %v1068 = vadd.f32 0.0, %v1067
  %1069 = vmatmul.bf16.gmra.mxu0 %v192
  %v1070 = vpop.f32.mrf.mxu0
  %v1071 = vadd.f32 0.0, %v1070
  %v1072 = vpop.f32.mrf.mxu0
  %v1073 = vadd.f32 0.0, %v1072
  %1074 = vmatmul.bf16.gmra.mxu0 %v195
  %v1075 = vpop.f32.mrf.mxu0
  %v1076 = vadd.f32 0.0, %v1075
  %v1077 = vpop.f32.mrf.mxu0
  %1078 = vmatmul.bf16.gmra.mxu0 %v198
  %v1079 = vpop.f32.mrf.mxu0
  %v1080 = vpop.f32.mrf.mxu0
  %1081 = vdwg.mxu0
  %1082 = vmatpush.bf16.msra.mxu0 0
  %1083 = vmatpush.bf16.msra.mxu0 0
  %1084 = vmatpush.bf16.msra.mxu0 0
  %1085 = vmatpush.bf16.msra.mxu0 0
  %1086 = vmatpush.bf16.msra.mxu0 0
  %1087 = vmatpush.bf16.msra.mxu0 0
  %1088 = vmatpush.bf16.msra.mxu0 0
  %1089 = vmatpush.bf16.msra.mxu0 %v118
  %1090 = vmatmul.bf16.gmra.mxu0 %v129
  %v1091 = vpop.f32.mrf.mxu0
  %v1092 = vadd.f32 0.0, %v1091
  %v1093 = vpop.f32.mrf.mxu0
  %v1094 = vadd.f32 0.0, %v1093
  %1095 = vmatmul.bf16.gmra.mxu0 %v132
  %v1096 = vpop.f32.mrf.mxu0
  %v1097 = vadd.f32 0.0, %v1096
  %v1098 = vpop.f32.mrf.mxu0
  %v1099 = vadd.f32 0.0, %v1098
  %1100 = vmatmul.bf16.gmra.mxu0 %v135
  %v1101 = vpop.f32.mrf.mxu0
  %v1102 = vadd.f32 0.0, %v1101
  %v1103 = vpop.f32.mrf.mxu0
  %v1104 = vadd.f32 0.0, %v1103
  %1105 = vmatmul.bf16.gmra.mxu0 %v138
  %v1106 = vpop.f32.mrf.mxu0
  %v1107 = vadd.f32 0.0, %v1106
  %v1108 = vpop.f32.mrf.mxu0
  %v1109 = vadd.f32 0.0, %v1108
  %1110 = vmatmul.bf16.gmra.mxu0 %v141
  %v1111 = vpop.f32.mrf.mxu0
  %v1112 = vadd.f32 0.0, %v1111
  %v1113 = vpop.f32.mrf.mxu0
  %v1114 = vadd.f32 0.0, %v1113
  %1115 = vmatmul.bf16.gmra.mxu0 %v144
  %v1116 = vpop.f32.mrf.mxu0
  %v1117 = vadd.f32 0.0, %v1116
  %v1118 = vpop.f32.mrf.mxu0
  %v1119 = vadd.f32 0.0, %v1118
  %1120 = vmatmul.bf16.gmra.mxu0 %v147
  %v1121 = vpop.f32.mrf.mxu0
  %v1122 = vadd.f32 0.0, %v1121
  %v1123 = vpop.f32.mrf.mxu0
  %v1124 = vadd.f32 0.0, %v1123
  %1125 = vmatmul.bf16.gmra.mxu0 %v150
  %v1126 = vpop.f32.mrf.mxu0
  %v1127 = vadd.f32 0.0, %v1126
  %v1128 = vpop.f32.mrf.mxu0
  %v1129 = vadd.f32 0.0, %v1128
  %1130 = vmatmul.bf16.gmra.mxu0 %v153
  %v1131 = vpop.f32.mrf.mxu0
  %v1132 = vadd.f32 0.0, %v1131
  %v1133 = vpop.f32.mrf.mxu0
  %v1134 = vadd.f32 0.0, %v1133
  %1135 = vmatmul.bf16.gmra.mxu0 %v156
  %v1136 = vpop.f32.mrf.mxu0
  %v1137 = vadd.f32 0.0, %v1136
  %v1138 = vpop.f32.mrf.mxu0
  %v1139 = vadd.f32 0.0, %v1138
  %1140 = vmatmul.bf16.gmra.mxu0 %v159
  %v1141 = vpop.f32.mrf.mxu0
  %v1142 = vadd.f32 0.0, %v1141
  %v1143 = vpop.f32.mrf.mxu0
  %v1144 = vadd.f32 0.0, %v1143
  %1145 = vmatmul.bf16.gmra.mxu0 %v162
  %v1146 = vpop.f32.mrf.mxu0
  %v1147 = vadd.f32 0.0, %v1146
  %v1148 = vpop.f32.mrf.mxu0
  %v1149 = vadd.f32 0.0, %v1148
  %1150 = vmatmul.bf16.gmra.mxu0 %v165
  %v1151 = vpop.f32.mrf.mxu0
  %v1152 = vadd.f32 0.0, %v1151
  %v1153 = vpop.f32.mrf.mxu0
  %v1154 = vadd.f32 0.0, %v1153
  %1155 = vmatmul.bf16.gmra.mxu0 %v168
  %v1156 = vpop.f32.mrf.mxu0
  %v1157 = vadd.f32 0.0, %v1156
  %v1158 = vpop.f32.mrf.mxu0
  %v1159 = vadd.f32 0.0, %v1158
  %1160 = vmatmul.bf16.gmra.mxu0 %v171
  %v1161 = vpop.f32.mrf.mxu0
  %v1162 = vadd.f32 0.0, %v1161
  %v1163 = vpop.f32.mrf.mxu0
  %v1164 = vadd.f32 0.0, %v1163
  %1165 = vmatmul.bf16.gmra.mxu0 %v174
  %v1166 = vpop.f32.mrf.mxu0
  %v1167 = vadd.f32 0.0, %v1166
  %v1168 = vpop.f32.mrf.mxu0
  %v1169 = vadd.f32 0.0, %v1168
  %1170 = vmatmul.bf16.gmra.mxu0 %v177
  %v1171 = vpop.f32.mrf.mxu0
  %v1172 = vadd.f32 0.0, %v1171
  %v1173 = vpop.f32.mrf.mxu0
  %v1174 = vadd.f32 0.0, %v1173
  %1175 = vmatmul.bf16.gmra.mxu0 %v180
  %v1176 = vpop.f32.mrf.mxu0
  %v1177 = vadd.f32 0.0, %v1176
  %v1178 = vpop.f32.mrf.mxu0
  %v1179 = vadd.f32 0.0, %v1178
  %1180 = vmatmul.bf16.gmra.mxu0 %v183
  %v1181 = vpop.f32.mrf.mxu0
  %v1182 = vadd.f32 0.0, %v1181
  %v1183 = vpop.f32.mrf.mxu0
  %v1184 = vadd.f32 0.0, %v1183
  %1185 = vmatmul.bf16.gmra.mxu0 %v186
  %v1186 = vpop.f32.mrf.mxu0
  %v1187 = vadd.f32 0.0, %v1186
  %v1188 = vpop.f32.mrf.mxu0
  %v1189 = vadd.f32 0.0, %v1188
  %1190 = vmatmul.bf16.gmra.mxu0 %v189
  %v1191 = vpop.f32.mrf.mxu0
  %v1192 = vadd.f32 0.0, %v1191
  %v1193 = vpop.f32.mrf.mxu0
  %v1194 = vadd.f32 0.0, %v1193
  %1195 = vmatmul.bf16.gmra.mxu0 %v192
  %v1196 = vpop.f32.mrf.mxu0
  %v1197 = vadd.f32 0.0, %v1196
  %v1198 = vpop.f32.mrf.mxu0
  %v1199 = vadd.f32 0.0, %v1198
  %1200 = vmatmul.bf16.gmra.mxu0 %v195
  %v1201 = vpop.f32.mrf.mxu0
  %v1202 = vadd.f32 0.0, %v1201
  %v1203 = vpop.f32.mrf.mxu0
  %1204 = vmatmul.bf16.gmra.mxu0 %v198
  %v1205 = vpop.f32.mrf.mxu0
  %v1206 = vpop.f32.mrf.mxu0
  %1207 = vdwg.mxu0
  %v1208 = vpack.c.bf16 %v336, %v210
  %v1209 = vpack.c.bf16 %v588, %v462
  %v1210 = vpack.c.bf16 %v840, %v714
  %v1211 = vpack.c.bf16 %v1092, %v966
  %v1212 = vpack.c.bf16 %v338, %v212
  %v1213 = vpack.c.bf16 %v590, %v464
  %v1214 = vpack.c.bf16 %v842, %v716
  %v1215 = vpack.c.bf16 %v1094, %v968
  %v1216 = vpack.c.bf16 %v341, %v215
  %v1217 = vpack.c.bf16 %v593, %v467
  %v1218 = vpack.c.bf16 %v845, %v719
  %v1219 = vpack.c.bf16 %v1097, %v971
  %v1220 = vpack.c.bf16 %v343, %v217
  %v1221 = vpack.c.bf16 %v595, %v469
  %v1222 = vpack.c.bf16 %v847, %v721
  %v1223 = vpack.c.bf16 %v1099, %v973
  %v1224 = vpack.c.bf16 %v346, %v220
  %v1225 = vpack.c.bf16 %v598, %v472
  %v1226 = vpack.c.bf16 %v850, %v724
  %v1227 = vpack.c.bf16 %v1102, %v976
  %v1228 = vpack.c.bf16 %v348, %v222
  %v1229 = vpack.c.bf16 %v600, %v474
  %v1230 = vpack.c.bf16 %v852, %v726
  %v1231 = vpack.c.bf16 %v1104, %v978
  %v1232 = vpack.c.bf16 %v351, %v225
  %v1233 = vpack.c.bf16 %v603, %v477
  %v1234 = vpack.c.bf16 %v855, %v729
  %v1235 = vpack.c.bf16 %v1107, %v981
  %v1236 = vpack.c.bf16 %v353, %v227
  %v1237 = vpack.c.bf16 %v605, %v479
  %v1238 = vpack.c.bf16 %v857, %v731
  %v1239 = vpack.c.bf16 %v1109, %v983
  %v1240 = vpack.c.bf16 %v356, %v230
  %v1241 = vpack.c.bf16 %v608, %v482
  %v1242 = vpack.c.bf16 %v860, %v734
  %v1243 = vpack.c.bf16 %v1112, %v986
  %v1244 = vpack.c.bf16 %v358, %v232
  %v1245 = vpack.c.bf16 %v610, %v484
  %v1246 = vpack.c.bf16 %v862, %v736
  %v1247 = vpack.c.bf16 %v1114, %v988
  %v1248 = vpack.c.bf16 %v361, %v235
  %v1249 = vpack.c.bf16 %v613, %v487
  %v1250 = vpack.c.bf16 %v865, %v739
  %v1251 = vpack.c.bf16 %v1117, %v991
  %v1252 = vpack.c.bf16 %v363, %v237
  %v1253 = vpack.c.bf16 %v615, %v489
  %v1254 = vpack.c.bf16 %v867, %v741
  %v1255 = vpack.c.bf16 %v1119, %v993
  %v1256 = vpack.c.bf16 %v366, %v240
  %v1257 = vpack.c.bf16 %v618, %v492
  %v1258 = vpack.c.bf16 %v870, %v744
  %v1259 = vpack.c.bf16 %v1122, %v996
  %v1260 = vpack.c.bf16 %v368, %v242
  %v1261 = vpack.c.bf16 %v620, %v494
  %v1262 = vpack.c.bf16 %v872, %v746
  %v1263 = vpack.c.bf16 %v1124, %v998
  %v1264 = vpack.c.bf16 %v371, %v245
  %v1265 = vpack.c.bf16 %v623, %v497
  %v1266 = vpack.c.bf16 %v875, %v749
  %v1267 = vpack.c.bf16 %v1127, %v1001
  %v1268 = vpack.c.bf16 %v373, %v247
  %v1269 = vpack.c.bf16 %v625, %v499
  %v1270 = vpack.c.bf16 %v877, %v751
  %v1271 = vpack.c.bf16 %v1129, %v1003
  %v1272 = vpack.c.bf16 %v376, %v250
  %v1273 = vpack.c.bf16 %v628, %v502
  %v1274 = vpack.c.bf16 %v880, %v754
  %v1275 = vpack.c.bf16 %v1132, %v1006
  %v1276 = vpack.c.bf16 %v378, %v252
  %v1277 = vpack.c.bf16 %v630, %v504
  %v1278 = vpack.c.bf16 %v882, %v756
  %v1279 = vpack.c.bf16 %v1134, %v1008
  %v1280 = vpack.c.bf16 %v381, %v255
  %v1281 = vpack.c.bf16 %v633, %v507
  %v1282 = vpack.c.bf16 %v885, %v759
  %v1283 = vpack.c.bf16 %v1137, %v1011
  %v1284 = vpack.c.bf16 %v383, %v257
  %v1285 = vpack.c.bf16 %v635, %v509
  %v1286 = vpack.c.bf16 %v887, %v761
  %v1287 = vpack.c.bf16 %v1139, %v1013
  %v1288 = vpack.c.bf16 %v386, %v260
  %v1289 = vpack.c.bf16 %v638, %v512
  %v1290 = vpack.c.bf16 %v890, %v764
  %v1291 = vpack.c.bf16 %v1142, %v1016
  %v1292 = vpack.c.bf16 %v388, %v262
  %v1293 = vpack.c.bf16 %v640, %v514
  %v1294 = vpack.c.bf16 %v892, %v766
  %v1295 = vpack.c.bf16 %v1144, %v1018
  %v1296 = vpack.c.bf16 %v391, %v265
  %v1297 = vpack.c.bf16 %v643, %v517
  %v1298 = vpack.c.bf16 %v895, %v769
  %v1299 = vpack.c.bf16 %v1147, %v1021
  %v1300 = vpack.c.bf16 %v393, %v267
  %v1301 = vpack.c.bf16 %v645, %v519
  %v1302 = vpack.c.bf16 %v897, %v771
  %v1303 = vpack.c.bf16 %v1149, %v1023
  %v1304 = vpack.c.bf16 %v396, %v270
  %v1305 = vpack.c.bf16 %v648, %v522
  %v1306 = vpack.c.bf16 %v900, %v774
  %v1307 = vpack.c.bf16 %v1152, %v1026
  %v1308 = vpack.c.bf16 %v398, %v272
  %v1309 = vpack.c.bf16 %v650, %v524
  %v1310 = vpack.c.bf16 %v902, %v776
  %v1311 = vpack.c.bf16 %v1154, %v1028
  %v1312 = vpack.c.bf16 %v401, %v275
  %v1313 = vpack.c.bf16 %v653, %v527
  %v1314 = vpack.c.bf16 %v905, %v779
  %v1315 = vpack.c.bf16 %v1157, %v1031
  %v1316 = vpack.c.bf16 %v403, %v277
  %v1317 = vpack.c.bf16 %v655, %v529
  %v1318 = vpack.c.bf16 %v907, %v781
  %v1319 = vpack.c.bf16 %v1159, %v1033
  %v1320 = vpack.c.bf16 %v406, %v280
  %v1321 = vpack.c.bf16 %v658, %v532
  %v1322 = vpack.c.bf16 %v910, %v784
  %v1323 = vpack.c.bf16 %v1162, %v1036
  %v1324 = vpack.c.bf16 %v408, %v282
  %v1325 = vpack.c.bf16 %v660, %v534
  %v1326 = vpack.c.bf16 %v912, %v786
  %v1327 = vpack.c.bf16 %v1164, %v1038
  %v1328 = vpack.c.bf16 %v411, %v285
  %v1329 = vpack.c.bf16 %v663, %v537
  %v1330 = vpack.c.bf16 %v915, %v789
  %v1331 = vpack.c.bf16 %v1167, %v1041
  %v1332 = vpack.c.bf16 %v413, %v287
  %v1333 = vpack.c.bf16 %v665, %v539
  %v1334 = vpack.c.bf16 %v917, %v791
  %v1335 = vpack.c.bf16 %v1169, %v1043
  %v1336 = vpack.c.bf16 %v416, %v290
  %v1337 = vpack.c.bf16 %v668, %v542
  %v1338 = vpack.c.bf16 %v920, %v794
  %v1339 = vpack.c.bf16 %v1172, %v1046
  %v1340 = vpack.c.bf16 %v418, %v292
  %v1341 = vpack.c.bf16 %v670, %v544
  %v1342 = vpack.c.bf16 %v922, %v796
  %v1343 = vpack.c.bf16 %v1174, %v1048
  %v1344 = vpack.c.bf16 %v421, %v295
  %v1345 = vpack.c.bf16 %v673, %v547
  %v1346 = vpack.c.bf16 %v925, %v799
  %v1347 = vpack.c.bf16 %v1177, %v1051
  %v1348 = vpack.c.bf16 %v423, %v297
  %v1349 = vpack.c.bf16 %v675, %v549
  %v1350 = vpack.c.bf16 %v927, %v801
  %v1351 = vpack.c.bf16 %v1179, %v1053
  %v1352 = vpack.c.bf16 %v426, %v300
  %v1353 = vpack.c.bf16 %v678, %v552
  %v1354 = vpack.c.bf16 %v930, %v804
  %v1355 = vpack.c.bf16 %v1182, %v1056
  %v1356 = vpack.c.bf16 %v428, %v302
  %v1357 = vpack.c.bf16 %v680, %v554
  %v1358 = vpack.c.bf16 %v932, %v806
  %v1359 = vpack.c.bf16 %v1184, %v1058
  %v1360 = vpack.c.bf16 %v431, %v305
  %v1361 = vpack.c.bf16 %v683, %v557
  %v1362 = vpack.c.bf16 %v935, %v809
  %v1363 = vpack.c.bf16 %v1187, %v1061
  %v1364 = vpack.c.bf16 %v433, %v307
  %v1365 = vpack.c.bf16 %v685, %v559
  %v1366 = vpack.c.bf16 %v937, %v811
  %v1367 = vpack.c.bf16 %v1189, %v1063
  %v1368 = vpack.c.bf16 %v436, %v310
  %v1369 = vpack.c.bf16 %v688, %v562
  %v1370 = vpack.c.bf16 %v940, %v814
  %v1371 = vpack.c.bf16 %v1192, %v1066
  %v1372 = vpack.c.bf16 %v438, %v312
  %v1373 = vpack.c.bf16 %v690, %v564
  %v1374 = vpack.c.bf16 %v942, %v816
  %v1375 = vpack.c.bf16 %v1194, %v1068
  %v1376 = vpack.c.bf16 %v441, %v315
  %v1377 = vpack.c.bf16 %v693, %v567
  %v1378 = vpack.c.bf16 %v945, %v819
  %v1379 = vpack.c.bf16 %v1197, %v1071
  %v1380 = vpack.c.bf16 %v443, %v317
  %v1381 = vpack.c.bf16 %v695, %v569
  %v1382 = vpack.c.bf16 %v947, %v821
  %v1383 = vpack.c.bf16 %v1199, %v1073
  %v1384 = vpack.c.bf16 %v446, %v320
  %v1385 = vpack.c.bf16 %v698, %v572
  %v1386 = vpack.c.bf16 %v950, %v824
  %v1387 = vpack.c.bf16 %v1202, %v1076
  %v1388 = vunpack.c.l.bf16 %v1208
  %v1389 = vunpack.c.h.bf16 %v1208
  %v1390 = vunpack.c.l.bf16 %v1209
  %v1391 = vunpack.c.h.bf16 %v1209
  %v1392 = vunpack.c.l.bf16 %v1210
  %v1393 = vunpack.c.h.bf16 %v1210
  %v1394 = vunpack.c.l.bf16 %v1211
  %v1395 = vunpack.c.h.bf16 %v1211
  %v1396 = vunpack.c.l.bf16 %v1212
  %v1397 = vunpack.c.h.bf16 %v1212
  %v1398 = vunpack.c.l.bf16 %v1213
  %v1399 = vunpack.c.h.bf16 %v1213
  %v1400 = vunpack.c.l.bf16 %v1214
  %v1401 = vunpack.c.h.bf16 %v1214
  %v1402 = vunpack.c.l.bf16 %v1215
  %v1403 = vunpack.c.h.bf16 %v1215
  %v1404 = vunpack.c.l.bf16 %v1216
  %v1405 = vunpack.c.h.bf16 %v1216
  %v1406 = vunpack.c.l.bf16 %v1217
  %v1407 = vunpack.c.h.bf16 %v1217
  %v1408 = vunpack.c.l.bf16 %v1218
  %v1409 = vunpack.c.h.bf16 %v1218
  %v1410 = vunpack.c.l.bf16 %v1219
  %v1411 = vunpack.c.h.bf16 %v1219
  %v1412 = vunpack.c.l.bf16 %v1220
  %v1413 = vunpack.c.h.bf16 %v1220
  %v1414 = vunpack.c.l.bf16 %v1221
  %v1415 = vunpack.c.h.bf16 %v1221
  %v1416 = vunpack.c.l.bf16 %v1222
  %v1417 = vunpack.c.h.bf16 %v1222
  %v1418 = vunpack.c.l.bf16 %v1223
  %v1419 = vunpack.c.h.bf16 %v1223
  %v1420 = vadd.f32 %v1388, %v1389
  %v1421 = vadd.f32 %v1420, %v1390
  %v1422 = vadd.f32 %v1421, %v1391
  %v1423 = vadd.f32 %v1422, %v1392
  %v1424 = vadd.f32 %v1423, %v1393
  %v1425 = vadd.f32 %v1424, %v1394
  %v1426 = vadd.f32 %v1425, %v1395
  %1427 = vadd.xlane.f32.xlu0 %v1426
  %v1428 = vpop.xlane.xlu0 %1427
  %v1429 = vadd.f32 %v1396, %v1397
  %v1430 = vadd.f32 %v1429, %v1398
  %v1431 = vadd.f32 %v1430, %v1399
  %v1432 = vadd.f32 %v1431, %v1400
  %v1433 = vadd.f32 %v1432, %v1401
  %v1434 = vadd.f32 %v1433, %v1402
  %v1435 = vadd.f32 %v1434, %v1403
  %1436 = vadd.xlane.f32.xlu0 %v1435
  %v1437 = vpop.xlane.xlu0 %1436
  %v1438 = vadd.f32 %v1404, %v1405
  %v1439 = vadd.f32 %v1438, %v1406
  %v1440 = vadd.f32 %v1439, %v1407
  %v1441 = vadd.f32 %v1440, %v1408
  %v1442 = vadd.f32 %v1441, %v1409
  %v1443 = vadd.f32 %v1442, %v1410
  %v1444 = vadd.f32 %v1443, %v1411
  %1445 = vadd.xlane.f32.xlu0 %v1444
  %v1446 = vpop.xlane.xlu0 %1445
  %v1447 = vadd.f32 %v1412, %v1413
  %v1448 = vadd.f32 %v1447, %v1414
  %v1449 = vadd.f32 %v1448, %v1415
  %v1450 = vadd.f32 %v1449, %v1416
  %v1451 = vadd.f32 %v1450, %v1417
  %v1452 = vadd.f32 %v1451, %v1418
  %v1453 = vadd.f32 %v1452, %v1419
  %1454 = vadd.xlane.f32.xlu0 %v1453
  %v1455 = vpop.xlane.xlu0 %1454
  %v1456 = vrcp.pop 1024.0
  %v1457 = vmul.f32 1024.0, %v1456
  %v1458 = vsub.f32 1.0, %v1457
  %v1459 = vmul.f32 %v1456, %v1458
  %v1460 = vadd.f32 %v1456, %v1459
  %vm1461 = vweird.f32 %v1456
  %v1462 = vsel %vm1461, %v1456, %v1460
  %v1463 = vmul.f32 %v1428, %v1462
  %v1464 = vmul.f32 %v1437, %v1462
  %v1465 = vmul.f32 %v1446, %v1462
  %v1466 = vmul.f32 %v1455, %v1462
  %v1467 = vsub.f32 %v1388, %v1463
  %v1468 = vsub.f32 %v1389, %v1463
  %v1469 = vsub.f32 %v1390, %v1463
  %v1470 = vsub.f32 %v1391, %v1463
  %v1471 = vsub.f32 %v1392, %v1463
  %v1472 = vsub.f32 %v1393, %v1463
  %v1473 = vsub.f32 %v1394, %v1463
  %v1474 = vsub.f32 %v1395, %v1463
  %v1475 = vsub.f32 %v1396, %v1464
  %v1476 = vsub.f32 %v1397, %v1464
  %v1477 = vsub.f32 %v1398, %v1464
  %v1478 = vsub.f32 %v1399, %v1464
  %v1479 = vsub.f32 %v1400, %v1464
  %v1480 = vsub.f32 %v1401, %v1464
  %v1481 = vsub.f32 %v1402, %v1464
  %v1482 = vsub.f32 %v1403, %v1464
  %v1483 = vsub.f32 %v1404, %v1465
  %v1484 = vsub.f32 %v1405, %v1465
  %v1485 = vsub.f32 %v1406, %v1465
  %v1486 = vsub.f32 %v1407, %v1465
  %v1487 = vsub.f32 %v1408, %v1465
  %v1488 = vsub.f32 %v1409, %v1465
  %v1489 = vsub.f32 %v1410, %v1465
  %v1490 = vsub.f32 %v1411, %v1465
  %v1491 = vsub.f32 %v1412, %v1466
  %v1492 = vsub.f32 %v1413, %v1466
  %v1493 = vsub.f32 %v1414, %v1466
  %v1494 = vsub.f32 %v1415, %v1466
  %v1495 = vsub.f32 %v1416, %v1466
  %v1496 = vsub.f32 %v1417, %v1466
  %v1497 = vsub.f32 %v1418, %v1466
  %v1498 = vsub.f32 %v1419, %v1466
  %v1499 = vmul.f32 %v1467, %v1467
  %v1500 = vmul.f32 %v1468, %v1468
  %v1501 = vmul.f32 %v1469, %v1469
  %v1502 = vmul.f32 %v1470, %v1470
  %v1503 = vmul.f32 %v1471, %v1471
  %v1504 = vmul.f32 %v1472, %v1472
  %v1505 = vmul.f32 %v1473, %v1473
  %v1506 = vmul.f32 %v1474, %v1474
  %v1507 = vmul.f32 %v1475, %v1475
  %v1508 = vmul.f32 %v1476, %v1476
  %v1509 = vmul.f32 %v1477, %v1477
  %v1510 = vmul.f32 %v1478, %v1478
  %v1511 = vmul.f32 %v1479, %v1479
  %v1512 = vmul.f32 %v1480, %v1480
  %v1513 = vmul.f32 %v1481, %v1481
  %v1514 = vmul.f32 %v1482, %v1482
  %v1515 = vmul.f32 %v1483, %v1483
  %v1516 = vmul.f32 %v1484, %v1484
  %v1517 = vmul.f32 %v1485, %v1485
  %v1518 = vmul.f32 %v1486, %v1486
  %v1519 = vmul.f32 %v1487, %v1487
  %v1520 = vmul.f32 %v1488, %v1488
  %v1521 = vmul.f32 %v1489, %v1489
  %v1522 = vmul.f32 %v1490, %v1490
  %v1523 = vmul.f32 %v1491, %v1491
  %v1524 = vmul.f32 %v1492, %v1492
  %v1525 = vmul.f32 %v1493, %v1493
  %v1526 = vmul.f32 %v1494, %v1494
  %v1527 = vmul.f32 %v1495, %v1495
  %v1528 = vmul.f32 %v1496, %v1496
  %v1529 = vmul.f32 %v1497, %v1497
  %v1530 = vmul.f32 %v1498, %v1498
  %v1531 = vadd.f32 %v1499, %v1500
  %v1532 = vadd.f32 %v1531, %v1501
  %v1533 = vadd.f32 %v1532, %v1502
  %v1534 = vadd.f32 %v1533, %v1503
  %v1535 = vadd.f32 %v1534, %v1504
  %v1536 = vadd.f32 %v1535, %v1505
  %v1537 = vadd.f32 %v1536, %v1506
  %1538 = vadd.xlane.f32.xlu0 %v1537
  %v1539 = vpop.xlane.xlu0 %1538
  %v1540 = vadd.f32 %v1507, %v1508
  %v1541 = vadd.f32 %v1540, %v1509
  %v1542 = vadd.f32 %v1541, %v1510
  %v1543 = vadd.f32 %v1542, %v1511
  %v1544 = vadd.f32 %v1543, %v1512
  %v1545 = vadd.f32 %v1544, %v1513
  %v1546 = vadd.f32 %v1545, %v1514
  %1547 = vadd.xlane.f32.xlu0 %v1546
  %v1548 = vpop.xlane.xlu0 %1547
  %v1549 = vadd.f32 %v1515, %v1516
  %v1550 = vadd.f32 %v1549, %v1517
  %v1551 = vadd.f32 %v1550, %v1518
  %v1552 = vadd.f32 %v1551, %v1519
  %v1553 = vadd.f32 %v1552, %v1520
  %v1554 = vadd.f32 %v1553, %v1521
  %v1555 = vadd.f32 %v1554, %v1522
  %1556 = vadd.xlane.f32.xlu0 %v1555
  %v1557 = vpop.xlane.xlu0 %1556
  %v1558 = vadd.f32 %v1523, %v1524
  %v1559 = vadd.f32 %v1558, %v1525
  %v1560 = vadd.f32 %v1559, %v1526
  %v1561 = vadd.f32 %v1560, %v1527
  %v1562 = vadd.f32 %v1561, %v1528
  %v1563 = vadd.f32 %v1562, %v1529
  %v1564 = vadd.f32 %v1563, %v1530
  %1565 = vadd.xlane.f32.xlu0 %v1564
  %v1566 = vpop.xlane.xlu0 %1565
  %v1567 = vmul.f32 %v1539, %v1462
  %v1568 = vmul.f32 %v1548, %v1462
  %v1569 = vmul.f32 %v1557, %v1462
  %v1570 = vmul.f32 %v1566, %v1462
  %v1571 = vadd.f32 %v1567, 1e-05
  %v1572 = vadd.f32 %v1568, 1e-05
  %v1573 = vadd.f32 %v1569, 1e-05
  %v1574 = vadd.f32 %v1570, 1e-05
  %v1575 = vrsqrt.pop %v1571
  %v1576 = vmul.f32 %v1575, %v1571
  %v1577 = vmul.f32 %v1576, %v1575
  %v1578 = vmul.f32 0.5, %v1577
  %v1579 = vsub.f32 1.5, %v1578
  %v1580 = vmul.f32 %v1575, %v1579
  %vm1581 = vweird.f32 %v1571
  %vm1582 = vweird.f32 %v1575
  %vm1583 = vmor %vm1581, %vm1582
  %v1584 = vsel %vm1583, %v1575, %v1580
  %v1585 = vrsqrt.pop %v1572
  %v1586 = vmul.f32 %v1585, %v1572
  %v1587 = vmul.f32 %v1586, %v1585
  %v1588 = vmul.f32 0.5, %v1587
  %v1589 = vsub.f32 1.5, %v1588
  %v1590 = vmul.f32 %v1585, %v1589
  %vm1591 = vweird.f32 %v1572
  %vm1592 = vweird.f32 %v1585
  %vm1593 = vmor %vm1591, %vm1592
  %v1594 = vsel %vm1593, %v1585, %v1590
  %v1595 = vrsqrt.pop %v1573
  %v1596 = vmul.f32 %v1595, %v1573
  %v1597 = vmul.f32 %v1596, %v1595
  %v1598 = vmul.f32 0.5, %v1597
  %v1599 = vsub.f32 1.5, %v1598
  %v1600 = vmul.f32 %v1595, %v1599
  %vm1601 = vweird.f32 %v1573
  %vm1602 = vweird.f32 %v1595
  %vm1603 = vmor %vm1601, %vm1602
  %v1604 = vsel %vm1603, %v1595, %v1600
  %v1605 = vrsqrt.pop %v1574
  %v1606 = vmul.f32 %v1605, %v1574
  %v1607 = vmul.f32 %v1606, %v1605
  %v1608 = vmul.f32 0.5, %v1607
  %v1609 = vsub.f32 1.5, %v1608
  %v1610 = vmul.f32 %v1605, %v1609
  %vm1611 = vweird.f32 %v1574
  %vm1612 = vweird.f32 %v1605
  %vm1613 = vmor %vm1611, %vm1612
  %v1614 = vsel %vm1613, %v1605, %v1610
  %v1615 = vmul.f32 %v1467, %v1584
  %v1616 = vmul.f32 %v1468, %v1584
  %v1617 = vmul.f32 %v1469, %v1584
  %v1618 = vmul.f32 %v1470, %v1584
  %v1619 = vmul.f32 %v1471, %v1584
  %v1620 = vmul.f32 %v1472, %v1584
  %v1621 = vmul.f32 %v1473, %v1584
  %v1622 = vmul.f32 %v1474, %v1584
  %v1623 = vmul.f32 %v1475, %v1594
  %v1624 = vmul.f32 %v1476, %v1594
  %v1625 = vmul.f32 %v1477, %v1594
  %v1626 = vmul.f32 %v1478, %v1594
  %v1627 = vmul.f32 %v1479, %v1594
  %v1628 = vmul.f32 %v1480, %v1594
  %v1629 = vmul.f32 %v1481, %v1594
  %v1630 = vmul.f32 %v1482, %v1594
  %v1631 = vmul.f32 %v1483, %v1604
  %v1632 = vmul.f32 %v1484, %v1604
  %v1633 = vmul.f32 %v1485, %v1604
  %v1634 = vmul.f32 %v1486, %v1604
  %v1635 = vmul.f32 %v1487, %v1604
  %v1636 = vmul.f32 %v1488, %v1604
  %v1637 = vmul.f32 %v1489, %v1604
  %v1638 = vmul.f32 %v1490, %v1604
  %v1639 = vmul.f32 %v1491, %v1614
  %v1640 = vmul.f32 %v1492, %v1614
  %v1641 = vmul.f32 %v1493, %v1614
  %v1642 = vmul.f32 %v1494, %v1614
  %v1643 = vmul.f32 %v1495, %v1614
  %v1644 = vmul.f32 %v1496, %v1614
  %v1645 = vmul.f32 %v1497, %v1614
  %v1646 = vmul.f32 %v1498, %v1614
  %v1647 = vpack.c.bf16 %v1616, %v1615
  %v1648 = vpack.c.bf16 %v1618, %v1617
  %v1649 = vpack.c.bf16 %v1620, %v1619
  %v1650 = vpack.c.bf16 %v1622, %v1621
  %v1651 = vpack.c.bf16 %v1624, %v1623
  %v1652 = vpack.c.bf16 %v1626, %v1625
  %v1653 = vpack.c.bf16 %v1628, %v1627
  %v1654 = vpack.c.bf16 %v1630, %v1629
  %v1655 = vpack.c.bf16 %v1632, %v1631
  %v1656 = vpack.c.bf16 %v1634, %v1633
  %v1657 = vpack.c.bf16 %v1636, %v1635
  %v1658 = vpack.c.bf16 %v1638, %v1637
  %v1659 = vpack.c.bf16 %v1640, %v1639
  %v1660 = vpack.c.bf16 %v1642, %v1641
  %v1661 = vpack.c.bf16 %v1644, %v1643
  %v1662 = vpack.c.bf16 %v1646, %v1645
  %v1663 = vunpack.c.l.bf16 %v1224
  %v1664 = vunpack.c.h.bf16 %v1224
  %v1665 = vunpack.c.l.bf16 %v1225
  %v1666 = vunpack.c.h.bf16 %v1225
  %v1667 = vunpack.c.l.bf16 %v1226
  %v1668 = vunpack.c.h.bf16 %v1226
  %v1669 = vunpack.c.l.bf16 %v1227
  %v1670 = vunpack.c.h.bf16 %v1227
  %v1671 = vunpack.c.l.bf16 %v1228
  %v1672 = vunpack.c.h.bf16 %v1228
  %v1673 = vunpack.c.l.bf16 %v1229
  %v1674 = vunpack.c.h.bf16 %v1229
  %v1675 = vunpack.c.l.bf16 %v1230
  %v1676 = vunpack.c.h.bf16 %v1230
  %v1677 = vunpack.c.l.bf16 %v1231
  %v1678 = vunpack.c.h.bf16 %v1231
  %v1679 = vunpack.c.l.bf16 %v1232
  %v1680 = vunpack.c.h.bf16 %v1232
  %v1681 = vunpack.c.l.bf16 %v1233
  %v1682 = vunpack.c.h.bf16 %v1233
  %v1683 = vunpack.c.l.bf16 %v1234
  %v1684 = vunpack.c.h.bf16 %v1234
  %v1685 = vunpack.c.l.bf16 %v1235
  %v1686 = vunpack.c.h.bf16 %v1235
  %v1687 = vunpack.c.l.bf16 %v1236
  %v1688 = vunpack.c.h.bf16 %v1236
  %v1689 = vunpack.c.l.bf16 %v1237
  %v1690 = vunpack.c.h.bf16 %v1237
  %v1691 = vunpack.c.l.bf16 %v1238
  %v1692 = vunpack.c.h.bf16 %v1238
  %v1693 = vunpack.c.l.bf16 %v1239
  %v1694 = vunpack.c.h.bf16 %v1239
  %v1695 = vunpack.c.l.bf16 %v1647
  %v1696 = vunpack.c.h.bf16 %v1647
  %v1697 = vunpack.c.l.bf16 %v1648
  %v1698 = vunpack.c.h.bf16 %v1648
  %v1699 = vunpack.c.l.bf16 %v1649
  %v1700 = vunpack.c.h.bf16 %v1649
  %v1701 = vunpack.c.l.bf16 %v1650
  %v1702 = vunpack.c.h.bf16 %v1650
  %v1703 = vunpack.c.l.bf16 %v1651
  %v1704 = vunpack.c.h.bf16 %v1651
  %v1705 = vunpack.c.l.bf16 %v1652
  %v1706 = vunpack.c.h.bf16 %v1652
  %v1707 = vunpack.c.l.bf16 %v1653
  %v1708 = vunpack.c.h.bf16 %v1653
  %v1709 = vunpack.c.l.bf16 %v1654
  %v1710 = vunpack.c.h.bf16 %v1654
  %v1711 = vunpack.c.l.bf16 %v1655
  %v1712 = vunpack.c.h.bf16 %v1655
  %v1713 = vunpack.c.l.bf16 %v1656
  %v1714 = vunpack.c.h.bf16 %v1656
  %v1715 = vunpack.c.l.bf16 %v1657
  %v1716 = vunpack.c.h.bf16 %v1657
  %v1717 = vunpack.c.l.bf16 %v1658
  %v1718 = vunpack.c.h.bf16 %v1658
  %v1719 = vunpack.c.l.bf16 %v1659
  %v1720 = vunpack.c.h.bf16 %v1659
  %v1721 = vunpack.c.l.bf16 %v1660
  %v1722 = vunpack.c.h.bf16 %v1660
  %v1723 = vunpack.c.l.bf16 %v1661
  %v1724 = vunpack.c.h.bf16 %v1661
  %v1725 = vunpack.c.l.bf16 %v1662
  %v1726 = vunpack.c.h.bf16 %v1662
  %v1727 = vmul.f32 %v1663, %v1695
  %v1728 = vmul.f32 %v1664, %v1696
  %v1729 = vmul.f32 %v1665, %v1697
  %v1730 = vmul.f32 %v1666, %v1698
  %v1731 = vmul.f32 %v1667, %v1699
  %v1732 = vmul.f32 %v1668, %v1700
  %v1733 = vmul.f32 %v1669, %v1701
  %v1734 = vmul.f32 %v1670, %v1702
  %v1735 = vmul.f32 %v1671, %v1703
  %v1736 = vmul.f32 %v1672, %v1704
  %v1737 = vmul.f32 %v1673, %v1705
  %v1738 = vmul.f32 %v1674, %v1706
  %v1739 = vmul.f32 %v1675, %v1707
  %v1740 = vmul.f32 %v1676, %v1708
  %v1741 = vmul.f32 %v1677, %v1709
  %v1742 = vmul.f32 %v1678, %v1710
  %v1743 = vmul.f32 %v1679, %v1711
  %v1744 = vmul.f32 %v1680, %v1712
  %v1745 = vmul.f32 %v1681, %v1713
  %v1746 = vmul.f32 %v1682, %v1714
  %v1747 = vmul.f32 %v1683, %v1715
  %v1748 = vmul.f32 %v1684, %v1716
  %v1749 = vmul.f32 %v1685, %v1717
  %v1750 = vmul.f32 %v1686, %v1718
  %v1751 = vmul.f32 %v1687, %v1719
  %v1752 = vmul.f32 %v1688, %v1720
  %v1753 = vmul.f32 %v1689, %v1721
  %v1754 = vmul.f32 %v1690, %v1722
  %v1755 = vmul.f32 %v1691, %v1723
  %v1756 = vmul.f32 %v1692, %v1724
  %v1757 = vmul.f32 %v1693, %v1725
  %v1758 = vmul.f32 %v1694, %v1726
  %v1759 = vpack.c.bf16 %v1728, %v1727
  %v1760 = vpack.c.bf16 %v1730, %v1729
  %v1761 = vpack.c.bf16 %v1732, %v1731
  %v1762 = vpack.c.bf16 %v1734, %v1733
  %v1763 = vpack.c.bf16 %v1736, %v1735
  %v1764 = vpack.c.bf16 %v1738, %v1737
  %v1765 = vpack.c.bf16 %v1740, %v1739
  %v1766 = vpack.c.bf16 %v1742, %v1741
  %v1767 = vpack.c.bf16 %v1744, %v1743
  %v1768 = vpack.c.bf16 %v1746, %v1745
  %v1769 = vpack.c.bf16 %v1748, %v1747
  %v1770 = vpack.c.bf16 %v1750, %v1749
  %v1771 = vpack.c.bf16 %v1752, %v1751
  %v1772 = vpack.c.bf16 %v1754, %v1753
  %v1773 = vpack.c.bf16 %v1756, %v1755
  %v1774 = vpack.c.bf16 %v1758, %v1757
  %v1775 = vunpack.c.l.bf16 %v1759
  %v1776 = vunpack.c.h.bf16 %v1759
  %v1777 = vunpack.c.l.bf16 %v1760
  %v1778 = vunpack.c.h.bf16 %v1760
  %v1779 = vunpack.c.l.bf16 %v1761
  %v1780 = vunpack.c.h.bf16 %v1761
  %v1781 = vunpack.c.l.bf16 %v1762
  %v1782 = vunpack.c.h.bf16 %v1762
  %v1783 = vunpack.c.l.bf16 %v1763
  %v1784 = vunpack.c.h.bf16 %v1763
  %v1785 = vunpack.c.l.bf16 %v1764
  %v1786 = vunpack.c.h.bf16 %v1764
  %v1787 = vunpack.c.l.bf16 %v1765
  %v1788 = vunpack.c.h.bf16 %v1765
  %v1789 = vunpack.c.l.bf16 %v1766
  %v1790 = vunpack.c.h.bf16 %v1766
  %v1791 = vunpack.c.l.bf16 %v1767
  %v1792 = vunpack.c.h.bf16 %v1767
  %v1793 = vunpack.c.l.bf16 %v1768
  %v1794 = vunpack.c.h.bf16 %v1768
  %v1795 = vunpack.c.l.bf16 %v1769
  %v1796 = vunpack.c.h.bf16 %v1769
  %v1797 = vunpack.c.l.bf16 %v1770
  %v1798 = vunpack.c.h.bf16 %v1770
  %v1799 = vunpack.c.l.bf16 %v1771
  %v1800 = vunpack.c.h.bf16 %v1771
  %v1801 = vunpack.c.l.bf16 %v1772
  %v1802 = vunpack.c.h.bf16 %v1772
  %v1803 = vunpack.c.l.bf16 %v1773
  %v1804 = vunpack.c.h.bf16 %v1773
  %v1805 = vunpack.c.l.bf16 %v1774
  %v1806 = vunpack.c.h.bf16 %v1774
  %v1807 = vunpack.c.l.bf16 %v1240
  %v1808 = vunpack.c.h.bf16 %v1240
  %v1809 = vunpack.c.l.bf16 %v1241
  %v1810 = vunpack.c.h.bf16 %v1241
  %v1811 = vunpack.c.l.bf16 %v1242
  %v1812 = vunpack.c.h.bf16 %v1242
  %v1813 = vunpack.c.l.bf16 %v1243
  %v1814 = vunpack.c.h.bf16 %v1243
  %v1815 = vunpack.c.l.bf16 %v1244
  %v1816 = vunpack.c.h.bf16 %v1244
  %v1817 = vunpack.c.l.bf16 %v1245
  %v1818 = vunpack.c.h.bf16 %v1245
  %v1819 = vunpack.c.l.bf16 %v1246
  %v1820 = vunpack.c.h.bf16 %v1246
  %v1821 = vunpack.c.l.bf16 %v1247
  %v1822 = vunpack.c.h.bf16 %v1247
  %v1823 = vunpack.c.l.bf16 %v1248
  %v1824 = vunpack.c.h.bf16 %v1248
  %v1825 = vunpack.c.l.bf16 %v1249
  %v1826 = vunpack.c.h.bf16 %v1249
  %v1827 = vunpack.c.l.bf16 %v1250
  %v1828 = vunpack.c.h.bf16 %v1250
  %v1829 = vunpack.c.l.bf16 %v1251
  %v1830 = vunpack.c.h.bf16 %v1251
  %v1831 = vunpack.c.l.bf16 %v1252
  %v1832 = vunpack.c.h.bf16 %v1252
  %v1833 = vunpack.c.l.bf16 %v1253
  %v1834 = vunpack.c.h.bf16 %v1253
  %v1835 = vunpack.c.l.bf16 %v1254
  %v1836 = vunpack.c.h.bf16 %v1254
  %v1837 = vunpack.c.l.bf16 %v1255
  %v1838 = vunpack.c.h.bf16 %v1255
  %v1839 = vadd.f32 %v1775, %v1807
  %v1840 = vadd.f32 %v1776, %v1808
  %v1841 = vadd.f32 %v1777, %v1809
  %v1842 = vadd.f32 %v1778, %v1810
  %v1843 = vadd.f32 %v1779, %v1811
  %v1844 = vadd.f32 %v1780, %v1812
  %v1845 = vadd.f32 %v1781, %v1813
  %v1846 = vadd.f32 %v1782, %v1814
  %v1847 = vadd.f32 %v1783, %v1815
  %v1848 = vadd.f32 %v1784, %v1816
  %v1849 = vadd.f32 %v1785, %v1817
  %v1850 = vadd.f32 %v1786, %v1818
  %v1851 = vadd.f32 %v1787, %v1819
  %v1852 = vadd.f32 %v1788, %v1820
  %v1853 = vadd.f32 %v1789, %v1821
  %v1854 = vadd.f32 %v1790, %v1822
  %v1855 = vadd.f32 %v1791, %v1823
  %v1856 = vadd.f32 %v1792, %v1824
  %v1857 = vadd.f32 %v1793, %v1825
  %v1858 = vadd.f32 %v1794, %v1826
  %v1859 = vadd.f32 %v1795, %v1827
  %v1860 = vadd.f32 %v1796, %v1828
  %v1861 = vadd.f32 %v1797, %v1829
  %v1862 = vadd.f32 %v1798, %v1830
  %v1863 = vadd.f32 %v1799, %v1831
  %v1864 = vadd.f32 %v1800, %v1832
  %v1865 = vadd.f32 %v1801, %v1833
  %v1866 = vadd.f32 %v1802, %v1834
  %v1867 = vadd.f32 %v1803, %v1835
  %v1868 = vadd.f32 %v1804, %v1836
  %v1869 = vadd.f32 %v1805, %v1837
  %v1870 = vadd.f32 %v1806, %v1838
  %v1871 = vpack.c.bf16 %v1840, %v1839
  %v1872 = vpack.c.bf16 %v1842, %v1841
  %v1873 = vpack.c.bf16 %v1844, %v1843
  %v1874 = vpack.c.bf16 %v1846, %v1845
  %v1875 = vpack.c.bf16 %v1848, %v1847
  %v1876 = vpack.c.bf16 %v1850, %v1849
  %v1877 = vpack.c.bf16 %v1852, %v1851
  %v1878 = vpack.c.bf16 %v1854, %v1853
  %v1879 = vpack.c.bf16 %v1856, %v1855
  %v1880 = vpack.c.bf16 %v1858, %v1857
  %v1881 = vpack.c.bf16 %v1860, %v1859
  %v1882 = vpack.c.bf16 %v1862, %v1861
  %v1883 = vpack.c.bf16 %v1864, %v1863
  %v1884 = vpack.c.bf16 %v1866, %v1865
  %v1885 = vpack.c.bf16 %v1868, %v1867
  %v1886 = vpack.c.bf16 %v1870, %v1869
  %v1887 = vunpack.c.l.bf16 %v1871
  %v1888 = vunpack.c.h.bf16 %v1871
  %v1889 = vunpack.c.l.bf16 %v1872
  %v1890 = vunpack.c.h.bf16 %v1872
  %v1891 = vunpack.c.l.bf16 %v1873
  %v1892 = vunpack.c.h.bf16 %v1873
  %v1893 = vunpack.c.l.bf16 %v1874
  %v1894 = vunpack.c.h.bf16 %v1874
  %v1895 = vunpack.c.l.bf16 %v1875
  %v1896 = vunpack.c.h.bf16 %v1875
  %v1897 = vunpack.c.l.bf16 %v1876
  %v1898 = vunpack.c.h.bf16 %v1876
  %v1899 = vunpack.c.l.bf16 %v1877
  %v1900 = vunpack.c.h.bf16 %v1877
  %v1901 = vunpack.c.l.bf16 %v1878
  %v1902 = vunpack.c.h.bf16 %v1878
  %v1903 = vunpack.c.l.bf16 %v1879
  %v1904 = vunpack.c.h.bf16 %v1879
  %v1905 = vunpack.c.l.bf16 %v1880
  %v1906 = vunpack.c.h.bf16 %v1880
  %v1907 = vunpack.c.l.bf16 %v1881
  %v1908 = vunpack.c.h.bf16 %v1881
  %v1909 = vunpack.c.l.bf16 %v1882
  %v1910 = vunpack.c.h.bf16 %v1882
  %v1911 = vunpack.c.l.bf16 %v1883
  %v1912 = vunpack.c.h.bf16 %v1883
  %v1913 = vunpack.c.l.bf16 %v1884
  %v1914 = vunpack.c.h.bf16 %v1884
  %v1915 = vunpack.c.l.bf16 %v1885
  %v1916 = vunpack.c.h.bf16 %v1885
  %v1917 = vunpack.c.l.bf16 %v1886
  %v1918 = vunpack.c.h.bf16 %v1886
  %v1919 = vmax.f32 %v1887, 0.0
  %v1920 = vmax.f32 %v1888, 0.0
  %v1921 = vmax.f32 %v1889, 0.0
  %v1922 = vmax.f32 %v1890, 0.0
  %v1923 = vmax.f32 %v1891, 0.0
  %v1924 = vmax.f32 %v1892, 0.0
  %v1925 = vmax.f32 %v1893, 0.0
  %v1926 = vmax.f32 %v1894, 0.0
  %v1927 = vmax.f32 %v1895, 0.0
  %v1928 = vmax.f32 %v1896, 0.0
  %v1929 = vmax.f32 %v1897, 0.0
  %v1930 = vmax.f32 %v1898, 0.0
  %v1931 = vmax.f32 %v1899, 0.0
  %v1932 = vmax.f32 %v1900, 0.0
  %v1933 = vmax.f32 %v1901, 0.0
  %v1934 = vmax.f32 %v1902, 0.0
  %v1935 = vmax.f32 %v1903, 0.0
  %v1936 = vmax.f32 %v1904, 0.0
  %v1937 = vmax.f32 %v1905, 0.0
  %v1938 = vmax.f32 %v1906, 0.0
  %v1939 = vmax.f32 %v1907, 0.0
  %v1940 = vmax.f32 %v1908, 0.0
  %v1941 = vmax.f32 %v1909, 0.0
  %v1942 = vmax.f32 %v1910, 0.0
  %v1943 = vmax.f32 %v1911, 0.0
  %v1944 = vmax.f32 %v1912, 0.0
  %v1945 = vmax.f32 %v1913, 0.0
  %v1946 = vmax.f32 %v1914, 0.0
  %v1947 = vmax.f32 %v1915, 0.0
  %v1948 = vmax.f32 %v1916, 0.0
  %v1949 = vmax.f32 %v1917, 0.0
  %v1950 = vmax.f32 %v1918, 0.0
  %v1951 = vpack.c.bf16 %v1927, %v1919
  %v1952 = vpack.c.bf16 %v1928, %v1920
  %v1953 = vpack.c.bf16 %v1929, %v1921
  %v1954 = vpack.c.bf16 %v1930, %v1922
  %v1955 = vpack.c.bf16 %v1931, %v1923
  %v1956 = vpack.c.bf16 %v1932, %v1924
  %v1957 = vpack.c.bf16 %v1933, %v1925
  %v1958 = vpack.c.bf16 %v1934, %v1926
  %v1959 = vpack.c.bf16 %v1943, %v1935
  %v1960 = vpack.c.bf16 %v1944, %v1936
  %v1961 = vpack.c.bf16 %v1945, %v1937
  %v1962 = vpack.c.bf16 %v1946, %v1938
  %v1963 = vpack.c.bf16 %v1947, %v1939
  %v1964 = vpack.c.bf16 %v1948, %v1940
  %v1965 = vpack.c.bf16 %v1949, %v1941
  %v1966 = vpack.c.bf16 %v1950, %v1942
  %v1971 = vunpack.c.l.b16 %v27
  %v1972 = vunpack.c.l.b16 %v28
  %v1973 = vunpack.c.l.b16 %v29
  %v1974 = vunpack.c.l.b16 %v30
  %v1975 = vpack.c.b16 %v1972, %v1971
  %v1976 = vpack.c.b16 %v1974, %v1973
  %1979 = vxpose.xlu0.c.b16.start [1/8] %v1975, 128
  %1980 = vxpose.xlu0.c.b16.cont [2/8] %v1976, 128
  %1981 = vxpose.xlu0.c.b16.cont [3/8] 0, 128
  %1982 = vxpose.xlu0.c.b16.cont [4/8] 0, 128
  %1983 = vxpose.xlu0.c.b16.cont [5/8] 0, 128
  %1984 = vxpose.xlu0.c.b16.cont [6/8] 0, 128
  %1985 = vxpose.xlu0.c.b16.cont [7/8] 0, 128
  %1986 = vxpose.xlu0.c.b16.end [8/8] 0, 128
  %v1987 = vpop.trf.xlu0
  %v1988 = vpop.trf.xlu0
  %v1989 = vpop.trf.xlu0
  %v1990 = vpop.trf.xlu0
  %v1991 = vpop.trf.xlu0
  %v1992 = vpop.trf.xlu0
  %v1993 = vpop.trf.xlu0
  %v1994 = vpop.trf.xlu0
  %vm1995 = vcmask 261120
  %v1997 = vsel %vm1995, %v1987, 0
  %v2000 = vsel %vm1995, %v1988, 0
  %2002 = vmatpush.bf16.msra.mxu0 0
  %2003 = vmatpush.bf16.msra.mxu0 0
  %2004 = vmatpush.bf16.msra.mxu0 0
  %2005 = vmatpush.bf16.msra.mxu0 0
  %2006 = vmatpush.bf16.msra.mxu0 0
  %2007 = vmatpush.bf16.msra.mxu0 0
  %2008 = vmatpush.bf16.msra.mxu0 %v1959
  %2009 = vmatpush.bf16.msra.mxu0 %v1951
  %2010 = vmatmul.bf16.gmra.mxu0 %v1997
  %v2011 = vpop.f32.mrf.mxu0
  %v2012 = vadd.f32 0.0, %v2011
  %v2013 = vpop.f32.mrf.mxu0
  %v2014 = vadd.f32 0.0, %v2013
  %2015 = vmatmul.bf16.gmra.mxu0 %v2000
  %v2016 = vpop.f32.mrf.mxu0
  %v2017 = vadd.f32 0.0, %v2016
  %v2018 = vpop.f32.mrf.mxu0
  %v2019 = vadd.f32 0.0, %v2018
  %2020 = vdwg.mxu0
  %2021 = vmatpush.bf16.msra.mxu0 0
  %2022 = vmatpush.bf16.msra.mxu0 0
  %2023 = vmatpush.bf16.msra.mxu0 0
  %2024 = vmatpush.bf16.msra.mxu0 0
  %2025 = vmatpush.bf16.msra.mxu0 0
  %2026 = vmatpush.bf16.msra.mxu0 0
  %2027 = vmatpush.bf16.msra.mxu0 %v1960
  %2028 = vmatpush.bf16.msra.mxu0 %v1952
  %2029 = vmatmul.bf16.gmra.mxu0 %v1997
  %v2030 = vpop.f32.mrf.mxu0
  %v2031 = vadd.f32 0.0, %v2030
  %v2032 = vpop.f32.mrf.mxu0
  %v2033 = vadd.f32 0.0, %v2032
  %2034 = vmatmul.bf16.gmra.mxu0 %v2000
  %v2035 = vpop.f32.mrf.mxu0
  %v2036 = vadd.f32 0.0, %v2035
  %v2037 = vpop.f32.mrf.mxu0
  %v2038 = vadd.f32 0.0, %v2037
  %2039 = vdwg.mxu0
  %2040 = vmatpush.bf16.msra.mxu0 0
  %2041 = vmatpush.bf16.msra.mxu0 0
  %2042 = vmatpush.bf16.msra.mxu0 0
  %2043 = vmatpush.bf16.msra.mxu0 0
  %2044 = vmatpush.bf16.msra.mxu0 0
  %2045 = vmatpush.bf16.msra.mxu0 0
  %2046 = vmatpush.bf16.msra.mxu0 %v1961
  %2047 = vmatpush.bf16.msra.mxu0 %v1953
  %2048 = vmatmul.bf16.gmra.mxu0 %v1997
  %v2049 = vpop.f32.mrf.mxu0
  %v2050 = vadd.f32 0.0, %v2049
  %v2051 = vpop.f32.mrf.mxu0
  %v2052 = vadd.f32 0.0, %v2051
  %2053 = vmatmul.bf16.gmra.mxu0 %v2000
  %v2054 = vpop.f32.mrf.mxu0
  %v2055 = vadd.f32 0.0, %v2054
  %v2056 = vpop.f32.mrf.mxu0
  %v2057 = vadd.f32 0.0, %v2056
  %2058 = vdwg.mxu0
  %2059 = vmatpush.bf16.msra.mxu0 0
  %2060 = vmatpush.bf16.msra.mxu0 0
  %2061 = vmatpush.bf16.msra.mxu0 0
  %2062 = vmatpush.bf16.msra.mxu0 0
  %2063 = vmatpush.bf16.msra.mxu0 0
  %2064 = vmatpush.bf16.msra.mxu0 0
  %2065 = vmatpush.bf16.msra.mxu0 %v1962
  %2066 = vmatpush.bf16.msra.mxu0 %v1954
  %2067 = vmatmul.bf16.gmra.mxu0 %v1997
  %v2068 = vpop.f32.mrf.mxu0
  %v2069 = vadd.f32 0.0, %v2068
  %v2070 = vpop.f32.mrf.mxu0
  %v2071 = vadd.f32 0.0, %v2070
  %2072 = vmatmul.bf16.gmra.mxu0 %v2000
  %v2073 = vpop.f32.mrf.mxu0
  %v2074 = vadd.f32 0.0, %v2073
  %v2075 = vpop.f32.mrf.mxu0
  %v2076 = vadd.f32 0.0, %v2075
  %2077 = vdwg.mxu0
  %2078 = vmatpush.bf16.msra.mxu0 0
  %2079 = vmatpush.bf16.msra.mxu0 0
  %2080 = vmatpush.bf16.msra.mxu0 0
  %2081 = vmatpush.bf16.msra.mxu0 0
  %2082 = vmatpush.bf16.msra.mxu0 0
  %2083 = vmatpush.bf16.msra.mxu0 0
  %2084 = vmatpush.bf16.msra.mxu0 %v1963
  %2085 = vmatpush.bf16.msra.mxu0 %v1955
  %2086 = vmatmul.bf16.gmra.mxu0 %v1997
  %v2087 = vpop.f32.mrf.mxu0
  %v2088 = vadd.f32 0.0, %v2087
  %v2089 = vpop.f32.mrf.mxu0
  %v2090 = vadd.f32 0.0, %v2089
  %2091 = vmatmul.bf16.gmra.mxu0 %v2000
  %v2092 = vpop.f32.mrf.mxu0
  %v2093 = vadd.f32 0.0, %v2092
  %v2094 = vpop.f32.mrf.mxu0
  %v2095 = vadd.f32 0.0, %v2094
  %2096 = vdwg.mxu0
  %2097 = vmatpush.bf16.msra.mxu0 0
  %2098 = vmatpush.bf16.msra.mxu0 0
  %2099 = vmatpush.bf16.msra.mxu0 0
  %2100 = vmatpush.bf16.msra.mxu0 0
  %2101 = vmatpush.bf16.msra.mxu0 0
  %2102 = vmatpush.bf16.msra.mxu0 0
  %2103 = vmatpush.bf16.msra.mxu0 %v1964
  %2104 = vmatpush.bf16.msra.mxu0 %v1956
  %2105 = vmatmul.bf16.gmra.mxu0 %v1997
  %v2106 = vpop.f32.mrf.mxu0
  %v2107 = vadd.f32 0.0, %v2106
  %v2108 = vpop.f32.mrf.mxu0
  %v2109 = vadd.f32 0.0, %v2108
  %2110 = vmatmul.bf16.gmra.mxu0 %v2000
  %v2111 = vpop.f32.mrf.mxu0
  %v2112 = vadd.f32 0.0, %v2111
  %v2113 = vpop.f32.mrf.mxu0
  %v2114 = vadd.f32 0.0, %v2113
  %2115 = vdwg.mxu0
  %2116 = vmatpush.bf16.msra.mxu0 0
  %2117 = vmatpush.bf16.msra.mxu0 0
  %2118 = vmatpush.bf16.msra.mxu0 0
  %2119 = vmatpush.bf16.msra.mxu0 0
  %2120 = vmatpush.bf16.msra.mxu0 0
  %2121 = vmatpush.bf16.msra.mxu0 0
  %2122 = vmatpush.bf16.msra.mxu0 %v1965
  %2123 = vmatpush.bf16.msra.mxu0 %v1957
  %2124 = vmatmul.bf16.gmra.mxu0 %v1997
  %v2125 = vpop.f32.mrf.mxu0
  %v2126 = vadd.f32 0.0, %v2125
  %v2127 = vpop.f32.mrf.mxu0
  %v2128 = vadd.f32 0.0, %v2127
  %2129 = vmatmul.bf16.gmra.mxu0 %v2000
  %v2130 = vpop.f32.mrf.mxu0
  %v2131 = vadd.f32 0.0, %v2130
  %v2132 = vpop.f32.mrf.mxu0
  %v2133 = vadd.f32 0.0, %v2132
  %2134 = vdwg.mxu0
  %2135 = vmatpush.bf16.msra.mxu0 0
  %2136 = vmatpush.bf16.msra.mxu0 0
  %2137 = vmatpush.bf16.msra.mxu0 0
  %2138 = vmatpush.bf16.msra.mxu0 0
  %2139 = vmatpush.bf16.msra.mxu0 0
  %2140 = vmatpush.bf16.msra.mxu0 0
  %2141 = vmatpush.bf16.msra.mxu0 %v1966
  %2142 = vmatpush.bf16.msra.mxu0 %v1958
  %2143 = vmatmul.bf16.gmra.mxu0 %v1997
  %v2144 = vpop.f32.mrf.mxu0
  %v2145 = vadd.f32 0.0, %v2144
  %v2146 = vpop.f32.mrf.mxu0
  %v2147 = vadd.f32 0.0, %v2146
  %2148 = vmatmul.bf16.gmra.mxu0 %v2000
  %v2149 = vpop.f32.mrf.mxu0
  %v2150 = vadd.f32 0.0, %v2149
  %v2151 = vpop.f32.mrf.mxu0
  %v2152 = vadd.f32 0.0, %v2151
  %2153 = vdwg.mxu0
  %v2154 = vadd.f32 %v2012, %v2031
  %v2155 = vadd.f32 %v2154, %v2050
  %v2156 = vadd.f32 %v2155, %v2069
  %v2157 = vadd.f32 %v2156, %v2088
  %v2158 = vadd.f32 %v2157, %v2107
  %v2159 = vadd.f32 %v2158, %v2126
  %v2160 = vadd.f32 %v2159, %v2145
  %2161 = vadd.xlane.f32.xlu0 %v2160
  %v2162 = vpop.xlane.xlu0 %2161
  %v2163 = vadd.f32 %v2014, %v2033
  %v2164 = vadd.f32 %v2163, %v2052
  %v2165 = vadd.f32 %v2164, %v2071
  %v2166 = vadd.f32 %v2165, %v2090
  %v2167 = vadd.f32 %v2166, %v2109
  %v2168 = vadd.f32 %v2167, %v2128
  %v2169 = vadd.f32 %v2168, %v2147
  %2170 = vadd.xlane.f32.xlu0 %v2169
  %v2171 = vpop.xlane.xlu0 %2170
  %v2172 = vadd.f32 %v2017, %v2036
  %v2173 = vadd.f32 %v2172, %v2055
  %v2174 = vadd.f32 %v2173, %v2074
  %v2175 = vadd.f32 %v2174, %v2093
  %v2176 = vadd.f32 %v2175, %v2112
  %v2177 = vadd.f32 %v2176, %v2131
  %v2178 = vadd.f32 %v2177, %v2150
  %2179 = vadd.xlane.f32.xlu0 %v2178
  %v2180 = vpop.xlane.xlu0 %2179
  %v2181 = vadd.f32 %v2019, %v2038
  %v2182 = vadd.f32 %v2181, %v2057
  %v2183 = vadd.f32 %v2182, %v2076
  %v2184 = vadd.f32 %v2183, %v2095
  %v2185 = vadd.f32 %v2184, %v2114
  %v2186 = vadd.f32 %v2185, %v2133
  %v2187 = vadd.f32 %v2186, %v2152
  %2188 = vadd.xlane.f32.xlu0 %v2187
  %v2189 = vpop.xlane.xlu0 %2188
  %v2190 = vmul.f32 %v2162, %v1462
  %v2191 = vmul.f32 %v2171, %v1462
  %v2192 = vmul.f32 %v2180, %v1462
  %v2193 = vmul.f32 %v2189, %v1462
  %v2194 = vsub.f32 %v2012, %v2190
  %v2195 = vsub.f32 %v2031, %v2190
  %v2196 = vsub.f32 %v2050, %v2190
  %v2197 = vsub.f32 %v2069, %v2190
  %v2198 = vsub.f32 %v2088, %v2190
  %v2199 = vsub.f32 %v2107, %v2190
  %v2200 = vsub.f32 %v2126, %v2190
  %v2201 = vsub.f32 %v2145, %v2190
  %v2202 = vsub.f32 %v2014, %v2191
  %v2203 = vsub.f32 %v2033, %v2191
  %v2204 = vsub.f32 %v2052, %v2191
  %v2205 = vsub.f32 %v2071, %v2191
  %v2206 = vsub.f32 %v2090, %v2191
  %v2207 = vsub.f32 %v2109, %v2191
  %v2208 = vsub.f32 %v2128, %v2191
  %v2209 = vsub.f32 %v2147, %v2191
  %v2210 = vsub.f32 %v2017, %v2192
  %v2211 = vsub.f32 %v2036, %v2192
  %v2212 = vsub.f32 %v2055, %v2192
  %v2213 = vsub.f32 %v2074, %v2192
  %v2214 = vsub.f32 %v2093, %v2192
  %v2215 = vsub.f32 %v2112, %v2192
  %v2216 = vsub.f32 %v2131, %v2192
  %v2217 = vsub.f32 %v2150, %v2192
  %v2218 = vsub.f32 %v2019, %v2193
  %v2219 = vsub.f32 %v2038, %v2193
  %v2220 = vsub.f32 %v2057, %v2193
  %v2221 = vsub.f32 %v2076, %v2193
  %v2222 = vsub.f32 %v2095, %v2193
  %v2223 = vsub.f32 %v2114, %v2193
  %v2224 = vsub.f32 %v2133, %v2193
  %v2225 = vsub.f32 %v2152, %v2193
  %v2226 = vmul.f32 %v2194, %v2194
  %v2227 = vmul.f32 %v2195, %v2195
  %v2228 = vmul.f32 %v2196, %v2196
  %v2229 = vmul.f32 %v2197, %v2197
  %v2230 = vmul.f32 %v2198, %v2198
  %v2231 = vmul.f32 %v2199, %v2199
  %v2232 = vmul.f32 %v2200, %v2200
  %v2233 = vmul.f32 %v2201, %v2201
  %v2234 = vmul.f32 %v2202, %v2202
  %v2235 = vmul.f32 %v2203, %v2203
  %v2236 = vmul.f32 %v2204, %v2204
  %v2237 = vmul.f32 %v2205, %v2205
  %v2238 = vmul.f32 %v2206, %v2206
  %v2239 = vmul.f32 %v2207, %v2207
  %v2240 = vmul.f32 %v2208, %v2208
  %v2241 = vmul.f32 %v2209, %v2209
  %v2242 = vmul.f32 %v2210, %v2210
  %v2243 = vmul.f32 %v2211, %v2211
  %v2244 = vmul.f32 %v2212, %v2212
  %v2245 = vmul.f32 %v2213, %v2213
  %v2246 = vmul.f32 %v2214, %v2214
  %v2247 = vmul.f32 %v2215, %v2215
  %v2248 = vmul.f32 %v2216, %v2216
  %v2249 = vmul.f32 %v2217, %v2217
  %v2250 = vmul.f32 %v2218, %v2218
  %v2251 = vmul.f32 %v2219, %v2219
  %v2252 = vmul.f32 %v2220, %v2220
  %v2253 = vmul.f32 %v2221, %v2221
  %v2254 = vmul.f32 %v2222, %v2222
  %v2255 = vmul.f32 %v2223, %v2223
  %v2256 = vmul.f32 %v2224, %v2224
  %v2257 = vmul.f32 %v2225, %v2225
  %v2258 = vadd.f32 %v2226, %v2227
  %v2259 = vadd.f32 %v2258, %v2228
  %v2260 = vadd.f32 %v2259, %v2229
  %v2261 = vadd.f32 %v2260, %v2230
  %v2262 = vadd.f32 %v2261, %v2231
  %v2263 = vadd.f32 %v2262, %v2232
  %v2264 = vadd.f32 %v2263, %v2233
  %2265 = vadd.xlane.f32.xlu0 %v2264
  %v2266 = vpop.xlane.xlu0 %2265
  %v2267 = vadd.f32 %v2234, %v2235
  %v2268 = vadd.f32 %v2267, %v2236
  %v2269 = vadd.f32 %v2268, %v2237
  %v2270 = vadd.f32 %v2269, %v2238
  %v2271 = vadd.f32 %v2270, %v2239
  %v2272 = vadd.f32 %v2271, %v2240
  %v2273 = vadd.f32 %v2272, %v2241
  %2274 = vadd.xlane.f32.xlu0 %v2273
  %v2275 = vpop.xlane.xlu0 %2274
  %v2276 = vadd.f32 %v2242, %v2243
  %v2277 = vadd.f32 %v2276, %v2244
  %v2278 = vadd.f32 %v2277, %v2245
  %v2279 = vadd.f32 %v2278, %v2246
  %v2280 = vadd.f32 %v2279, %v2247
  %v2281 = vadd.f32 %v2280, %v2248
  %v2282 = vadd.f32 %v2281, %v2249
  %2283 = vadd.xlane.f32.xlu0 %v2282
  %v2284 = vpop.xlane.xlu0 %2283
  %v2285 = vadd.f32 %v2250, %v2251
  %v2286 = vadd.f32 %v2285, %v2252
  %v2287 = vadd.f32 %v2286, %v2253
  %v2288 = vadd.f32 %v2287, %v2254
  %v2289 = vadd.f32 %v2288, %v2255
  %v2290 = vadd.f32 %v2289, %v2256
  %v2291 = vadd.f32 %v2290, %v2257
  %2292 = vadd.xlane.f32.xlu0 %v2291
  %v2293 = vpop.xlane.xlu0 %2292
  %v2294 = vmul.f32 %v2266, %v1462
  %v2295 = vmul.f32 %v2275, %v1462
  %v2296 = vmul.f32 %v2284, %v1462
  %v2297 = vmul.f32 %v2293, %v1462
  %v2298 = vadd.f32 %v2294, 1e-05
  %v2299 = vadd.f32 %v2295, 1e-05
  %v2300 = vadd.f32 %v2296, 1e-05
  %v2301 = vadd.f32 %v2297, 1e-05
  %v2302 = vrsqrt.pop %v2298
  %v2303 = vmul.f32 %v2302, %v2298
  %v2304 = vmul.f32 %v2303, %v2302
  %v2305 = vmul.f32 0.5, %v2304
  %v2306 = vsub.f32 1.5, %v2305
  %v2307 = vmul.f32 %v2302, %v2306
  %vm2308 = vweird.f32 %v2298
  %vm2309 = vweird.f32 %v2302
  %vm2310 = vmor %vm2308, %vm2309
  %v2311 = vsel %vm2310, %v2302, %v2307
  %v2312 = vrsqrt.pop %v2299
  %v2313 = vmul.f32 %v2312, %v2299
  %v2314 = vmul.f32 %v2313, %v2312
  %v2315 = vmul.f32 0.5, %v2314
  %v2316 = vsub.f32 1.5, %v2315
  %v2317 = vmul.f32 %v2312, %v2316
  %vm2318 = vweird.f32 %v2299
  %vm2319 = vweird.f32 %v2312
  %vm2320 = vmor %vm2318, %vm2319
  %v2321 = vsel %vm2320, %v2312, %v2317
  %v2322 = vrsqrt.pop %v2300
  %v2323 = vmul.f32 %v2322, %v2300
  %v2324 = vmul.f32 %v2323, %v2322
  %v2325 = vmul.f32 0.5, %v2324
  %v2326 = vsub.f32 1.5, %v2325
  %v2327 = vmul.f32 %v2322, %v2326
  %vm2328 = vweird.f32 %v2300
  %vm2329 = vweird.f32 %v2322
  %vm2330 = vmor %vm2328, %vm2329
  %v2331 = vsel %vm2330, %v2322, %v2327
  %v2332 = vrsqrt.pop %v2301
  %v2333 = vmul.f32 %v2332, %v2301
  %v2334 = vmul.f32 %v2333, %v2332
  %v2335 = vmul.f32 0.5, %v2334
  %v2336 = vsub.f32 1.5, %v2335
  %v2337 = vmul.f32 %v2332, %v2336
  %vm2338 = vweird.f32 %v2301
  %vm2339 = vweird.f32 %v2332
  %vm2340 = vmor %vm2338, %vm2339
  %v2341 = vsel %vm2340, %v2332, %v2337
  %v2342 = vmul.f32 %v2194, %v2311
  %v2343 = vmul.f32 %v2195, %v2311
  %v2344 = vmul.f32 %v2196, %v2311
  %v2345 = vmul.f32 %v2197, %v2311
  %v2346 = vmul.f32 %v2198, %v2311
  %v2347 = vmul.f32 %v2199, %v2311
  %v2348 = vmul.f32 %v2200, %v2311
  %v2349 = vmul.f32 %v2201, %v2311
  %v2350 = vmul.f32 %v2202, %v2321
  %v2351 = vmul.f32 %v2203, %v2321
  %v2352 = vmul.f32 %v2204, %v2321
  %v2353 = vmul.f32 %v2205, %v2321
  %v2354 = vmul.f32 %v2206, %v2321
  %v2355 = vmul.f32 %v2207, %v2321
  %v2356 = vmul.f32 %v2208, %v2321
  %v2357 = vmul.f32 %v2209, %v2321
  %v2358 = vmul.f32 %v2210, %v2331
  %v2359 = vmul.f32 %v2211, %v2331
  %v2360 = vmul.f32 %v2212, %v2331
  %v2361 = vmul.f32 %v2213, %v2331
  %v2362 = vmul.f32 %v2214, %v2331
  %v2363 = vmul.f32 %v2215, %v2331
  %v2364 = vmul.f32 %v2216, %v2331
  %v2365 = vmul.f32 %v2217, %v2331
  %v2366 = vmul.f32 %v2218, %v2341
  %v2367 = vmul.f32 %v2219, %v2341
  %v2368 = vmul.f32 %v2220, %v2341
  %v2369 = vmul.f32 %v2221, %v2341
  %v2370 = vmul.f32 %v2222, %v2341
  %v2371 = vmul.f32 %v2223, %v2341
  %v2372 = vmul.f32 %v2224, %v2341
  %v2373 = vmul.f32 %v2225, %v2341
  %v2374 = vpack.c.bf16 %v2343, %v2342
  %v2375 = vpack.c.bf16 %v2345, %v2344
  %v2376 = vpack.c.bf16 %v2347, %v2346
  %v2377 = vpack.c.bf16 %v2349, %v2348
  %v2378 = vpack.c.bf16 %v2351, %v2350
  %v2379 = vpack.c.bf16 %v2353, %v2352
  %v2380 = vpack.c.bf16 %v2355, %v2354
  %v2381 = vpack.c.bf16 %v2357, %v2356
  %v2382 = vpack.c.bf16 %v2359, %v2358
  %v2383 = vpack.c.bf16 %v2361, %v2360
  %v2384 = vpack.c.bf16 %v2363, %v2362
  %v2385 = vpack.c.bf16 %v2365, %v2364
  %v2386 = vpack.c.bf16 %v2367, %v2366
  %v2387 = vpack.c.bf16 %v2369, %v2368
  %v2388 = vpack.c.bf16 %v2371, %v2370
  %v2389 = vpack.c.bf16 %v2373, %v2372
  %v2390 = vunpack.c.l.bf16 %v1256
  %v2391 = vunpack.c.h.bf16 %v1256
  %v2392 = vunpack.c.l.bf16 %v1257
  %v2393 = vunpack.c.h.bf16 %v1257
  %v2394 = vunpack.c.l.bf16 %v1258
  %v2395 = vunpack.c.h.bf16 %v1258
  %v2396 = vunpack.c.l.bf16 %v1259
  %v2397 = vunpack.c.h.bf16 %v1259
  %v2398 = vunpack.c.l.bf16 %v1260
  %v2399 = vunpack.c.h.bf16 %v1260
  %v2400 = vunpack.c.l.bf16 %v1261
  %v2401 = vunpack.c.h.bf16 %v1261
  %v2402 = vunpack.c.l.bf16 %v1262
  %v2403 = vunpack.c.h.bf16 %v1262
  %v2404 = vunpack.c.l.bf16 %v1263
  %v2405 = vunpack.c.h.bf16 %v1263
  %v2406 = vunpack.c.l.bf16 %v1264
  %v2407 = vunpack.c.h.bf16 %v1264
  %v2408 = vunpack.c.l.bf16 %v1265
  %v2409 = vunpack.c.h.bf16 %v1265
  %v2410 = vunpack.c.l.bf16 %v1266
  %v2411 = vunpack.c.h.bf16 %v1266
  %v2412 = vunpack.c.l.bf16 %v1267
  %v2413 = vunpack.c.h.bf16 %v1267
  %v2414 = vunpack.c.l.bf16 %v1268
  %v2415 = vunpack.c.h.bf16 %v1268
  %v2416 = vunpack.c.l.bf16 %v1269
  %v2417 = vunpack.c.h.bf16 %v1269
  %v2418 = vunpack.c.l.bf16 %v1270
  %v2419 = vunpack.c.h.bf16 %v1270
  %v2420 = vunpack.c.l.bf16 %v1271
  %v2421 = vunpack.c.h.bf16 %v1271
  %v2422 = vunpack.c.l.bf16 %v2374
  %v2423 = vunpack.c.h.bf16 %v2374
  %v2424 = vunpack.c.l.bf16 %v2375
  %v2425 = vunpack.c.h.bf16 %v2375
  %v2426 = vunpack.c.l.bf16 %v2376
  %v2427 = vunpack.c.h.bf16 %v2376
  %v2428 = vunpack.c.l.bf16 %v2377
  %v2429 = vunpack.c.h.bf16 %v2377
  %v2430 = vunpack.c.l.bf16 %v2378
  %v2431 = vunpack.c.h.bf16 %v2378
  %v2432 = vunpack.c.l.bf16 %v2379
  %v2433 = vunpack.c.h.bf16 %v2379
  %v2434 = vunpack.c.l.bf16 %v2380
  %v2435 = vunpack.c.h.bf16 %v2380
  %v2436 = vunpack.c.l.bf16 %v2381
  %v2437 = vunpack.c.h.bf16 %v2381
  %v2438 = vunpack.c.l.bf16 %v2382
  %v2439 = vunpack.c.h.bf16 %v2382
  %v2440 = vunpack.c.l.bf16 %v2383
  %v2441 = vunpack.c.h.bf16 %v2383
  %v2442 = vunpack.c.l.bf16 %v2384
  %v2443 = vunpack.c.h.bf16 %v2384
  %v2444 = vunpack.c.l.bf16 %v2385
  %v2445 = vunpack.c.h.bf16 %v2385
  %v2446 = vunpack.c.l.bf16 %v2386
  %v2447 = vunpack.c.h.bf16 %v2386
  %v2448 = vunpack.c.l.bf16 %v2387
  %v2449 = vunpack.c.h.bf16 %v2387
  %v2450 = vunpack.c.l.bf16 %v2388
  %v2451 = vunpack.c.h.bf16 %v2388
  %v2452 = vunpack.c.l.bf16 %v2389
  %v2453 = vunpack.c.h.bf16 %v2389
  %v2454 = vmul.f32 %v2390, %v2422
  %v2455 = vmul.f32 %v2391, %v2423
  %v2456 = vmul.f32 %v2392, %v2424
  %v2457 = vmul.f32 %v2393, %v2425
  %v2458 = vmul.f32 %v2394, %v2426
  %v2459 = vmul.f32 %v2395, %v2427
  %v2460 = vmul.f32 %v2396, %v2428
  %v2461 = vmul.f32 %v2397, %v2429
  %v2462 = vmul.f32 %v2398, %v2430
  %v2463 = vmul.f32 %v2399, %v2431
  %v2464 = vmul.f32 %v2400, %v2432
  %v2465 = vmul.f32 %v2401, %v2433
  %v2466 = vmul.f32 %v2402, %v2434
  %v2467 = vmul.f32 %v2403, %v2435
  %v2468 = vmul.f32 %v2404, %v2436
  %v2469 = vmul.f32 %v2405, %v2437
  %v2470 = vmul.f32 %v2406, %v2438
  %v2471 = vmul.f32 %v2407, %v2439
  %v2472 = vmul.f32 %v2408, %v2440
  %v2473 = vmul.f32 %v2409, %v2441
  %v2474 = vmul.f32 %v2410, %v2442
  %v2475 = vmul.f32 %v2411, %v2443
  %v2476 = vmul.f32 %v2412, %v2444
  %v2477 = vmul.f32 %v2413, %v2445
  %v2478 = vmul.f32 %v2414, %v2446
  %v2479 = vmul.f32 %v2415, %v2447
  %v2480 = vmul.f32 %v2416, %v2448
  %v2481 = vmul.f32 %v2417, %v2449
  %v2482 = vmul.f32 %v2418, %v2450
  %v2483 = vmul.f32 %v2419, %v2451
  %v2484 = vmul.f32 %v2420, %v2452
  %v2485 = vmul.f32 %v2421, %v2453
  %v2486 = vpack.c.bf16 %v2455, %v2454
  %v2487 = vpack.c.bf16 %v2457, %v2456
  %v2488 = vpack.c.bf16 %v2459, %v2458
  %v2489 = vpack.c.bf16 %v2461, %v2460
  %v2490 = vpack.c.bf16 %v2463, %v2462
  %v2491 = vpack.c.bf16 %v2465, %v2464
  %v2492 = vpack.c.bf16 %v2467, %v2466
  %v2493 = vpack.c.bf16 %v2469, %v2468
  %v2494 = vpack.c.bf16 %v2471, %v2470
  %v2495 = vpack.c.bf16 %v2473, %v2472
  %v2496 = vpack.c.bf16 %v2475, %v2474
  %v2497 = vpack.c.bf16 %v2477, %v2476
  %v2498 = vpack.c.bf16 %v2479, %v2478
  %v2499 = vpack.c.bf16 %v2481, %v2480
  %v2500 = vpack.c.bf16 %v2483, %v2482
  %v2501 = vpack.c.bf16 %v2485, %v2484
  %v2502 = vunpack.c.l.bf16 %v2486
  %v2503 = vunpack.c.h.bf16 %v2486
  %v2504 = vunpack.c.l.bf16 %v2487
  %v2505 = vunpack.c.h.bf16 %v2487
  %v2506 = vunpack.c.l.bf16 %v2488
  %v2507 = vunpack.c.h.bf16 %v2488
  %v2508 = vunpack.c.l.bf16 %v2489
  %v2509 = vunpack.c.h.bf16 %v2489
  %v2510 = vunpack.c.l.bf16 %v2490
  %v2511 = vunpack.c.h.bf16 %v2490
  %v2512 = vunpack.c.l.bf16 %v2491
  %v2513 = vunpack.c.h.bf16 %v2491
  %v2514 = vunpack.c.l.bf16 %v2492
  %v2515 = vunpack.c.h.bf16 %v2492
  %v2516 = vunpack.c.l.bf16 %v2493
  %v2517 = vunpack.c.h.bf16 %v2493
  %v2518 = vunpack.c.l.bf16 %v2494
  %v2519 = vunpack.c.h.bf16 %v2494
  %v2520 = vunpack.c.l.bf16 %v2495
  %v2521 = vunpack.c.h.bf16 %v2495
  %v2522 = vunpack.c.l.bf16 %v2496
  %v2523 = vunpack.c.h.bf16 %v2496
  %v2524 = vunpack.c.l.bf16 %v2497
  %v2525 = vunpack.c.h.bf16 %v2497
  %v2526 = vunpack.c.l.bf16 %v2498
  %v2527 = vunpack.c.h.bf16 %v2498
  %v2528 = vunpack.c.l.bf16 %v2499
  %v2529 = vunpack.c.h.bf16 %v2499
  %v2530 = vunpack.c.l.bf16 %v2500
  %v2531 = vunpack.c.h.bf16 %v2500
  %v2532 = vunpack.c.l.bf16 %v2501
  %v2533 = vunpack.c.h.bf16 %v2501
  %v2534 = vunpack.c.l.bf16 %v1272
  %v2535 = vunpack.c.h.bf16 %v1272
  %v2536 = vunpack.c.l.bf16 %v1273
  %v2537 = vunpack.c.h.bf16 %v1273
  %v2538 = vunpack.c.l.bf16 %v1274
  %v2539 = vunpack.c.h.bf16 %v1274
  %v2540 = vunpack.c.l.bf16 %v1275
  %v2541 = vunpack.c.h.bf16 %v1275
  %v2542 = vunpack.c.l.bf16 %v1276
  %v2543 = vunpack.c.h.bf16 %v1276
  %v2544 = vunpack.c.l.bf16 %v1277
  %v2545 = vunpack.c.h.bf16 %v1277
  %v2546 = vunpack.c.l.bf16 %v1278
  %v2547 = vunpack.c.h.bf16 %v1278
  %v2548 = vunpack.c.l.bf16 %v1279
  %v2549 = vunpack.c.h.bf16 %v1279
  %v2550 = vunpack.c.l.bf16 %v1280
  %v2551 = vunpack.c.h.bf16 %v1280
  %v2552 = vunpack.c.l.bf16 %v1281
  %v2553 = vunpack.c.h.bf16 %v1281
  %v2554 = vunpack.c.l.bf16 %v1282
  %v2555 = vunpack.c.h.bf16 %v1282
  %v2556 = vunpack.c.l.bf16 %v1283
  %v2557 = vunpack.c.h.bf16 %v1283
  %v2558 = vunpack.c.l.bf16 %v1284
  %v2559 = vunpack.c.h.bf16 %v1284
  %v2560 = vunpack.c.l.bf16 %v1285
  %v2561 = vunpack.c.h.bf16 %v1285
  %v2562 = vunpack.c.l.bf16 %v1286
  %v2563 = vunpack.c.h.bf16 %v1286
  %v2564 = vunpack.c.l.bf16 %v1287
  %v2565 = vunpack.c.h.bf16 %v1287
  %v2566 = vadd.f32 %v2502, %v2534
  %v2567 = vadd.f32 %v2503, %v2535
  %v2568 = vadd.f32 %v2504, %v2536
  %v2569 = vadd.f32 %v2505, %v2537
  %v2570 = vadd.f32 %v2506, %v2538
  %v2571 = vadd.f32 %v2507, %v2539
  %v2572 = vadd.f32 %v2508, %v2540
  %v2573 = vadd.f32 %v2509, %v2541
  %v2574 = vadd.f32 %v2510, %v2542
  %v2575 = vadd.f32 %v2511, %v2543
  %v2576 = vadd.f32 %v2512, %v2544
  %v2577 = vadd.f32 %v2513, %v2545
  %v2578 = vadd.f32 %v2514, %v2546
  %v2579 = vadd.f32 %v2515, %v2547
  %v2580 = vadd.f32 %v2516, %v2548
  %v2581 = vadd.f32 %v2517, %v2549
  %v2582 = vadd.f32 %v2518, %v2550
  %v2583 = vadd.f32 %v2519, %v2551
  %v2584 = vadd.f32 %v2520, %v2552
  %v2585 = vadd.f32 %v2521, %v2553
  %v2586 = vadd.f32 %v2522, %v2554
  %v2587 = vadd.f32 %v2523, %v2555
  %v2588 = vadd.f32 %v2524, %v2556
  %v2589 = vadd.f32 %v2525, %v2557
  %v2590 = vadd.f32 %v2526, %v2558
  %v2591 = vadd.f32 %v2527, %v2559
  %v2592 = vadd.f32 %v2528, %v2560
  %v2593 = vadd.f32 %v2529, %v2561
  %v2594 = vadd.f32 %v2530, %v2562
  %v2595 = vadd.f32 %v2531, %v2563
  %v2596 = vadd.f32 %v2532, %v2564
  %v2597 = vadd.f32 %v2533, %v2565
  %v2598 = vpack.c.bf16 %v2567, %v2566
  %v2599 = vpack.c.bf16 %v2569, %v2568
  %v2600 = vpack.c.bf16 %v2571, %v2570
  %v2601 = vpack.c.bf16 %v2573, %v2572
  %v2602 = vpack.c.bf16 %v2575, %v2574
  %v2603 = vpack.c.bf16 %v2577, %v2576
  %v2604 = vpack.c.bf16 %v2579, %v2578
  %v2605 = vpack.c.bf16 %v2581, %v2580
  %v2606 = vpack.c.bf16 %v2583, %v2582
  %v2607 = vpack.c.bf16 %v2585, %v2584
  %v2608 = vpack.c.bf16 %v2587, %v2586
  %v2609 = vpack.c.bf16 %v2589, %v2588
  %v2610 = vpack.c.bf16 %v2591, %v2590
  %v2611 = vpack.c.bf16 %v2593, %v2592
  %v2612 = vpack.c.bf16 %v2595, %v2594
  %v2613 = vpack.c.bf16 %v2597, %v2596
  %v2614 = vunpack.c.l.bf16 %v2598
  %v2615 = vunpack.c.h.bf16 %v2598
  %v2616 = vunpack.c.l.bf16 %v2599
  %v2617 = vunpack.c.h.bf16 %v2599
  %v2618 = vunpack.c.l.bf16 %v2600
  %v2619 = vunpack.c.h.bf16 %v2600
  %v2620 = vunpack.c.l.bf16 %v2601
  %v2621 = vunpack.c.h.bf16 %v2601
  %v2622 = vunpack.c.l.bf16 %v2602
  %v2623 = vunpack.c.h.bf16 %v2602
  %v2624 = vunpack.c.l.bf16 %v2603
  %v2625 = vunpack.c.h.bf16 %v2603
  %v2626 = vunpack.c.l.bf16 %v2604
  %v2627 = vunpack.c.h.bf16 %v2604
  %v2628 = vunpack.c.l.bf16 %v2605
  %v2629 = vunpack.c.h.bf16 %v2605
  %v2630 = vunpack.c.l.bf16 %v2606
  %v2631 = vunpack.c.h.bf16 %v2606
  %v2632 = vunpack.c.l.bf16 %v2607
  %v2633 = vunpack.c.h.bf16 %v2607
  %v2634 = vunpack.c.l.bf16 %v2608
  %v2635 = vunpack.c.h.bf16 %v2608
  %v2636 = vunpack.c.l.bf16 %v2609
  %v2637 = vunpack.c.h.bf16 %v2609
  %v2638 = vunpack.c.l.bf16 %v2610
  %v2639 = vunpack.c.h.bf16 %v2610
  %v2640 = vunpack.c.l.bf16 %v2611
  %v2641 = vunpack.c.h.bf16 %v2611
  %v2642 = vunpack.c.l.bf16 %v2612
  %v2643 = vunpack.c.h.bf16 %v2612
  %v2644 = vunpack.c.l.bf16 %v2613
  %v2645 = vunpack.c.h.bf16 %v2613
  %v2646 = vmax.f32 %v2614, 0.0
  %v2647 = vmax.f32 %v2615, 0.0
  %v2648 = vmax.f32 %v2616, 0.0
  %v2649 = vmax.f32 %v2617, 0.0
  %v2650 = vmax.f32 %v2618, 0.0
  %v2651 = vmax.f32 %v2619, 0.0
  %v2652 = vmax.f32 %v2620, 0.0
  %v2653 = vmax.f32 %v2621, 0.0
  %v2654 = vmax.f32 %v2622, 0.0
  %v2655 = vmax.f32 %v2623, 0.0
  %v2656 = vmax.f32 %v2624, 0.0
  %v2657 = vmax.f32 %v2625, 0.0
  %v2658 = vmax.f32 %v2626, 0.0
  %v2659 = vmax.f32 %v2627, 0.0
  %v2660 = vmax.f32 %v2628, 0.0
  %v2661 = vmax.f32 %v2629, 0.0
  %v2662 = vmax.f32 %v2630, 0.0
  %v2663 = vmax.f32 %v2631, 0.0
  %v2664 = vmax.f32 %v2632, 0.0
  %v2665 = vmax.f32 %v2633, 0.0
  %v2666 = vmax.f32 %v2634, 0.0
  %v2667 = vmax.f32 %v2635, 0.0
  %v2668 = vmax.f32 %v2636, 0.0
  %v2669 = vmax.f32 %v2637, 0.0
  %v2670 = vmax.f32 %v2638, 0.0
  %v2671 = vmax.f32 %v2639, 0.0
  %v2672 = vmax.f32 %v2640, 0.0
  %v2673 = vmax.f32 %v2641, 0.0
  %v2674 = vmax.f32 %v2642, 0.0
  %v2675 = vmax.f32 %v2643, 0.0
  %v2676 = vmax.f32 %v2644, 0.0
  %v2677 = vmax.f32 %v2645, 0.0
  %v2678 = vpack.c.bf16 %v2654, %v2646
  %v2679 = vpack.c.bf16 %v2655, %v2647
  %v2680 = vpack.c.bf16 %v2656, %v2648
  %v2681 = vpack.c.bf16 %v2657, %v2649
  %v2682 = vpack.c.bf16 %v2658, %v2650
  %v2683 = vpack.c.bf16 %v2659, %v2651
  %v2684 = vpack.c.bf16 %v2660, %v2652
  %v2685 = vpack.c.bf16 %v2661, %v2653
  %v2686 = vpack.c.bf16 %v2670, %v2662
  %v2687 = vpack.c.bf16 %v2671, %v2663
  %v2688 = vpack.c.bf16 %v2672, %v2664
  %v2689 = vpack.c.bf16 %v2673, %v2665
  %v2690 = vpack.c.bf16 %v2674, %v2666
  %v2691 = vpack.c.bf16 %v2675, %v2667
  %v2692 = vpack.c.bf16 %v2676, %v2668
  %v2693 = vpack.c.bf16 %v2677, %v2669
  %2694 = vrot.lane.b32.xlu0 %v1975, 96
  %v2695 = vpop.permute.xlu0 %2694
  %2696 = vrot.lane.b32.xlu0 %v1976, 96
  %v2697 = vpop.permute.xlu0 %2696
  %2700 = vxpose.xlu0.c.b16.start [1/8] %v2695, 128
  %2701 = vxpose.xlu0.c.b16.cont [2/8] %v2697, 128
  %2702 = vxpose.xlu0.c.b16.cont [3/8] 0, 128
  %2703 = vxpose.xlu0.c.b16.cont [4/8] 0, 128
  %2704 = vxpose.xlu0.c.b16.cont [5/8] 0, 128
  %2705 = vxpose.xlu0.c.b16.cont [6/8] 0, 128
  %2706 = vxpose.xlu0.c.b16.cont [7/8] 0, 128
  %2707 = vxpose.xlu0.c.b16.end [8/8] 0, 128
  %v2708 = vpop.trf.xlu0
  %v2709 = vpop.trf.xlu0
  %v2710 = vpop.trf.xlu0
  %v2711 = vpop.trf.xlu0
  %v2712 = vpop.trf.xlu0
  %v2713 = vpop.trf.xlu0
  %v2714 = vpop.trf.xlu0
  %v2715 = vpop.trf.xlu0
  %v2717 = vsel %vm1995, %v2708, 0
  %v2720 = vsel %vm1995, %v2709, 0
  %2722 = vmatpush.bf16.msra.mxu0 0
  %2723 = vmatpush.bf16.msra.mxu0 0
  %2724 = vmatpush.bf16.msra.mxu0 0
  %2725 = vmatpush.bf16.msra.mxu0 0
  %2726 = vmatpush.bf16.msra.mxu0 0
  %2727 = vmatpush.bf16.msra.mxu0 0
  %2728 = vmatpush.bf16.msra.mxu0 %v2686
  %2729 = vmatpush.bf16.msra.mxu0 %v2678
  %2730 = vmatmul.bf16.gmra.mxu0 %v2717
  %v2731 = vpop.f32.mrf.mxu0
  %v2732 = vadd.f32 0.0, %v2731
  %v2733 = vpop.f32.mrf.mxu0
  %v2734 = vadd.f32 0.0, %v2733
  %2735 = vmatmul.bf16.gmra.mxu0 %v2720
  %v2736 = vpop.f32.mrf.mxu0
  %v2737 = vadd.f32 0.0, %v2736
  %v2738 = vpop.f32.mrf.mxu0
  %v2739 = vadd.f32 0.0, %v2738
  %2740 = vdwg.mxu0
  %2741 = vmatpush.bf16.msra.mxu0 0
  %2742 = vmatpush.bf16.msra.mxu0 0
  %2743 = vmatpush.bf16.msra.mxu0 0
  %2744 = vmatpush.bf16.msra.mxu0 0
  %2745 = vmatpush.bf16.msra.mxu0 0
  %2746 = vmatpush.bf16.msra.mxu0 0
  %2747 = vmatpush.bf16.msra.mxu0 %v2687
  %2748 = vmatpush.bf16.msra.mxu0 %v2679
  %2749 = vmatmul.bf16.gmra.mxu0 %v2717
  %v2750 = vpop.f32.mrf.mxu0
  %v2751 = vadd.f32 0.0, %v2750
  %v2752 = vpop.f32.mrf.mxu0
  %v2753 = vadd.f32 0.0, %v2752
  %2754 = vmatmul.bf16.gmra.mxu0 %v2720
  %v2755 = vpop.f32.mrf.mxu0
  %v2756 = vadd.f32 0.0, %v2755
  %v2757 = vpop.f32.mrf.mxu0
  %v2758 = vadd.f32 0.0, %v2757
  %2759 = vdwg.mxu0
  %2760 = vmatpush.bf16.msra.mxu0 0
  %2761 = vmatpush.bf16.msra.mxu0 0
  %2762 = vmatpush.bf16.msra.mxu0 0
  %2763 = vmatpush.bf16.msra.mxu0 0
  %2764 = vmatpush.bf16.msra.mxu0 0
  %2765 = vmatpush.bf16.msra.mxu0 0
  %2766 = vmatpush.bf16.msra.mxu0 %v2688
  %2767 = vmatpush.bf16.msra.mxu0 %v2680
  %2768 = vmatmul.bf16.gmra.mxu0 %v2717
  %v2769 = vpop.f32.mrf.mxu0
  %v2770 = vadd.f32 0.0, %v2769
  %v2771 = vpop.f32.mrf.mxu0
  %v2772 = vadd.f32 0.0, %v2771
  %2773 = vmatmul.bf16.gmra.mxu0 %v2720
  %v2774 = vpop.f32.mrf.mxu0
  %v2775 = vadd.f32 0.0, %v2774
  %v2776 = vpop.f32.mrf.mxu0
  %v2777 = vadd.f32 0.0, %v2776
  %2778 = vdwg.mxu0
  %2779 = vmatpush.bf16.msra.mxu0 0
  %2780 = vmatpush.bf16.msra.mxu0 0
  %2781 = vmatpush.bf16.msra.mxu0 0
  %2782 = vmatpush.bf16.msra.mxu0 0
  %2783 = vmatpush.bf16.msra.mxu0 0
  %2784 = vmatpush.bf16.msra.mxu0 0
  %2785 = vmatpush.bf16.msra.mxu0 %v2689
  %2786 = vmatpush.bf16.msra.mxu0 %v2681
  %2787 = vmatmul.bf16.gmra.mxu0 %v2717
  %v2788 = vpop.f32.mrf.mxu0
  %v2789 = vadd.f32 0.0, %v2788
  %v2790 = vpop.f32.mrf.mxu0
  %v2791 = vadd.f32 0.0, %v2790
  %2792 = vmatmul.bf16.gmra.mxu0 %v2720
  %v2793 = vpop.f32.mrf.mxu0
  %v2794 = vadd.f32 0.0, %v2793
  %v2795 = vpop.f32.mrf.mxu0
  %v2796 = vadd.f32 0.0, %v2795
  %2797 = vdwg.mxu0
  %2798 = vmatpush.bf16.msra.mxu0 0
  %2799 = vmatpush.bf16.msra.mxu0 0
  %2800 = vmatpush.bf16.msra.mxu0 0
  %2801 = vmatpush.bf16.msra.mxu0 0
  %2802 = vmatpush.bf16.msra.mxu0 0
  %2803 = vmatpush.bf16.msra.mxu0 0
  %2804 = vmatpush.bf16.msra.mxu0 %v2690
  %2805 = vmatpush.bf16.msra.mxu0 %v2682
  %2806 = vmatmul.bf16.gmra.mxu0 %v2717
  %v2807 = vpop.f32.mrf.mxu0
  %v2808 = vadd.f32 0.0, %v2807
  %v2809 = vpop.f32.mrf.mxu0
  %v2810 = vadd.f32 0.0, %v2809
  %2811 = vmatmul.bf16.gmra.mxu0 %v2720
  %v2812 = vpop.f32.mrf.mxu0
  %v2813 = vadd.f32 0.0, %v2812
  %v2814 = vpop.f32.mrf.mxu0
  %v2815 = vadd.f32 0.0, %v2814
  %2816 = vdwg.mxu0
  %2817 = vmatpush.bf16.msra.mxu0 0
  %2818 = vmatpush.bf16.msra.mxu0 0
  %2819 = vmatpush.bf16.msra.mxu0 0
  %2820 = vmatpush.bf16.msra.mxu0 0
  %2821 = vmatpush.bf16.msra.mxu0 0
  %2822 = vmatpush.bf16.msra.mxu0 0
  %2823 = vmatpush.bf16.msra.mxu0 %v2691
  %2824 = vmatpush.bf16.msra.mxu0 %v2683
  %2825 = vmatmul.bf16.gmra.mxu0 %v2717
  %v2826 = vpop.f32.mrf.mxu0
  %v2827 = vadd.f32 0.0, %v2826
  %v2828 = vpop.f32.mrf.mxu0
  %v2829 = vadd.f32 0.0, %v2828
  %2830 = vmatmul.bf16.gmra.mxu0 %v2720
  %v2831 = vpop.f32.mrf.mxu0
  %v2832 = vadd.f32 0.0, %v2831
  %v2833 = vpop.f32.mrf.mxu0
  %v2834 = vadd.f32 0.0, %v2833
  %2835 = vdwg.mxu0
  %2836 = vmatpush.bf16.msra.mxu0 0
  %2837 = vmatpush.bf16.msra.mxu0 0
  %2838 = vmatpush.bf16.msra.mxu0 0
  %2839 = vmatpush.bf16.msra.mxu0 0
  %2840 = vmatpush.bf16.msra.mxu0 0
  %2841 = vmatpush.bf16.msra.mxu0 0
  %2842 = vmatpush.bf16.msra.mxu0 %v2692
  %2843 = vmatpush.bf16.msra.mxu0 %v2684
  %2844 = vmatmul.bf16.gmra.mxu0 %v2717
  %v2845 = vpop.f32.mrf.mxu0
  %v2846 = vadd.f32 0.0, %v2845
  %v2847 = vpop.f32.mrf.mxu0
  %v2848 = vadd.f32 0.0, %v2847
  %2849 = vmatmul.bf16.gmra.mxu0 %v2720
  %v2850 = vpop.f32.mrf.mxu0
  %v2851 = vadd.f32 0.0, %v2850
  %v2852 = vpop.f32.mrf.mxu0
  %v2853 = vadd.f32 0.0, %v2852
  %2854 = vdwg.mxu0
  %2855 = vmatpush.bf16.msra.mxu0 0
  %2856 = vmatpush.bf16.msra.mxu0 0
  %2857 = vmatpush.bf16.msra.mxu0 0
  %2858 = vmatpush.bf16.msra.mxu0 0
  %2859 = vmatpush.bf16.msra.mxu0 0
  %2860 = vmatpush.bf16.msra.mxu0 0
  %2861 = vmatpush.bf16.msra.mxu0 %v2693
  %2862 = vmatpush.bf16.msra.mxu0 %v2685
  %2863 = vmatmul.bf16.gmra.mxu0 %v2717
  %v2864 = vpop.f32.mrf.mxu0
  %v2865 = vadd.f32 0.0, %v2864
  %v2866 = vpop.f32.mrf.mxu0
  %v2867 = vadd.f32 0.0, %v2866
  %2868 = vmatmul.bf16.gmra.mxu0 %v2720
  %v2869 = vpop.f32.mrf.mxu0
  %v2870 = vadd.f32 0.0, %v2869
  %v2871 = vpop.f32.mrf.mxu0
  %v2872 = vadd.f32 0.0, %v2871
  %2873 = vdwg.mxu0
  %v2874 = vadd.f32 %v1388, %v2732
  %v2875 = vadd.f32 %v1389, %v2751
  %v2876 = vadd.f32 %v1390, %v2770
  %v2877 = vadd.f32 %v1391, %v2789
  %v2878 = vadd.f32 %v1392, %v2808
  %v2879 = vadd.f32 %v1393, %v2827
  %v2880 = vadd.f32 %v1394, %v2846
  %v2881 = vadd.f32 %v1395, %v2865
  %v2882 = vadd.f32 %v1396, %v2734
  %v2883 = vadd.f32 %v1397, %v2753
  %v2884 = vadd.f32 %v1398, %v2772
  %v2885 = vadd.f32 %v1399, %v2791
  %v2886 = vadd.f32 %v1400, %v2810
  %v2887 = vadd.f32 %v1401, %v2829
  %v2888 = vadd.f32 %v1402, %v2848
  %v2889 = vadd.f32 %v1403, %v2867
  %v2890 = vadd.f32 %v1404, %v2737
  %v2891 = vadd.f32 %v1405, %v2756
  %v2892 = vadd.f32 %v1406, %v2775
  %v2893 = vadd.f32 %v1407, %v2794
  %v2894 = vadd.f32 %v1408, %v2813
  %v2895 = vadd.f32 %v1409, %v2832
  %v2896 = vadd.f32 %v1410, %v2851
  %v2897 = vadd.f32 %v1411, %v2870
  %v2898 = vadd.f32 %v1412, %v2739
  %v2899 = vadd.f32 %v1413, %v2758
  %v2900 = vadd.f32 %v1414, %v2777
  %v2901 = vadd.f32 %v1415, %v2796
  %v2902 = vadd.f32 %v1416, %v2815
  %v2903 = vadd.f32 %v1417, %v2834
  %v2904 = vadd.f32 %v1418, %v2853
  %v2905 = vadd.f32 %v1419, %v2872
  %v2906 = vadd.f32 %v2874, %v2875
  %v2907 = vadd.f32 %v2906, %v2876
  %v2908 = vadd.f32 %v2907, %v2877
  %v2909 = vadd.f32 %v2908, %v2878
  %v2910 = vadd.f32 %v2909, %v2879
  %v2911 = vadd.f32 %v2910, %v2880
  %v2912 = vadd.f32 %v2911, %v2881
  %2913 = vadd.xlane.f32.xlu0 %v2912
  %v2914 = vpop.xlane.xlu0 %2913
  %v2915 = vadd.f32 %v2882, %v2883
  %v2916 = vadd.f32 %v2915, %v2884
  %v2917 = vadd.f32 %v2916, %v2885
  %v2918 = vadd.f32 %v2917, %v2886
  %v2919 = vadd.f32 %v2918, %v2887
  %v2920 = vadd.f32 %v2919, %v2888
  %v2921 = vadd.f32 %v2920, %v2889
  %2922 = vadd.xlane.f32.xlu0 %v2921
  %v2923 = vpop.xlane.xlu0 %2922
  %v2924 = vadd.f32 %v2890, %v2891
  %v2925 = vadd.f32 %v2924, %v2892
  %v2926 = vadd.f32 %v2925, %v2893
  %v2927 = vadd.f32 %v2926, %v2894
  %v2928 = vadd.f32 %v2927, %v2895
  %v2929 = vadd.f32 %v2928, %v2896
  %v2930 = vadd.f32 %v2929, %v2897
  %2931 = vadd.xlane.f32.xlu0 %v2930
  %v2932 = vpop.xlane.xlu0 %2931
  %v2933 = vadd.f32 %v2898, %v2899
  %v2934 = vadd.f32 %v2933, %v2900
  %v2935 = vadd.f32 %v2934, %v2901
  %v2936 = vadd.f32 %v2935, %v2902
  %v2937 = vadd.f32 %v2936, %v2903
  %v2938 = vadd.f32 %v2937, %v2904
  %v2939 = vadd.f32 %v2938, %v2905
  %2940 = vadd.xlane.f32.xlu0 %v2939
  %v2941 = vpop.xlane.xlu0 %2940
  %v2942 = vmul.f32 %v2914, %v1462
  %v2943 = vmul.f32 %v2923, %v1462
  %v2944 = vmul.f32 %v2932, %v1462
  %v2945 = vmul.f32 %v2941, %v1462
  %v2946 = vsub.f32 %v2874, %v2942
  %v2947 = vsub.f32 %v2875, %v2942
  %v2948 = vsub.f32 %v2876, %v2942
  %v2949 = vsub.f32 %v2877, %v2942
  %v2950 = vsub.f32 %v2878, %v2942
  %v2951 = vsub.f32 %v2879, %v2942
  %v2952 = vsub.f32 %v2880, %v2942
  %v2953 = vsub.f32 %v2881, %v2942
  %v2954 = vsub.f32 %v2882, %v2943
  %v2955 = vsub.f32 %v2883, %v2943
  %v2956 = vsub.f32 %v2884, %v2943
  %v2957 = vsub.f32 %v2885, %v2943
  %v2958 = vsub.f32 %v2886, %v2943
  %v2959 = vsub.f32 %v2887, %v2943
  %v2960 = vsub.f32 %v2888, %v2943
  %v2961 = vsub.f32 %v2889, %v2943
  %v2962 = vsub.f32 %v2890, %v2944
  %v2963 = vsub.f32 %v2891, %v2944
  %v2964 = vsub.f32 %v2892, %v2944
  %v2965 = vsub.f32 %v2893, %v2944
  %v2966 = vsub.f32 %v2894, %v2944
  %v2967 = vsub.f32 %v2895, %v2944
  %v2968 = vsub.f32 %v2896, %v2944
  %v2969 = vsub.f32 %v2897, %v2944
  %v2970 = vsub.f32 %v2898, %v2945
  %v2971 = vsub.f32 %v2899, %v2945
  %v2972 = vsub.f32 %v2900, %v2945
  %v2973 = vsub.f32 %v2901, %v2945
  %v2974 = vsub.f32 %v2902, %v2945
  %v2975 = vsub.f32 %v2903, %v2945
  %v2976 = vsub.f32 %v2904, %v2945
  %v2977 = vsub.f32 %v2905, %v2945
  %v2978 = vmul.f32 %v2946, %v2946
  %v2979 = vmul.f32 %v2947, %v2947
  %v2980 = vmul.f32 %v2948, %v2948
  %v2981 = vmul.f32 %v2949, %v2949
  %v2982 = vmul.f32 %v2950, %v2950
  %v2983 = vmul.f32 %v2951, %v2951
  %v2984 = vmul.f32 %v2952, %v2952
  %v2985 = vmul.f32 %v2953, %v2953
  %v2986 = vmul.f32 %v2954, %v2954
  %v2987 = vmul.f32 %v2955, %v2955
  %v2988 = vmul.f32 %v2956, %v2956
  %v2989 = vmul.f32 %v2957, %v2957
  %v2990 = vmul.f32 %v2958, %v2958
  %v2991 = vmul.f32 %v2959, %v2959
  %v2992 = vmul.f32 %v2960, %v2960
  %v2993 = vmul.f32 %v2961, %v2961
  %v2994 = vmul.f32 %v2962, %v2962
  %v2995 = vmul.f32 %v2963, %v2963
  %v2996 = vmul.f32 %v2964, %v2964
  %v2997 = vmul.f32 %v2965, %v2965
  %v2998 = vmul.f32 %v2966, %v2966
  %v2999 = vmul.f32 %v2967, %v2967
  %v3000 = vmul.f32 %v2968, %v2968
  %v3001 = vmul.f32 %v2969, %v2969
  %v3002 = vmul.f32 %v2970, %v2970
  %v3003 = vmul.f32 %v2971, %v2971
  %v3004 = vmul.f32 %v2972, %v2972
  %v3005 = vmul.f32 %v2973, %v2973
  %v3006 = vmul.f32 %v2974, %v2974
  %v3007 = vmul.f32 %v2975, %v2975
  %v3008 = vmul.f32 %v2976, %v2976
  %v3009 = vmul.f32 %v2977, %v2977
  %v3010 = vadd.f32 %v2978, %v2979
  %v3011 = vadd.f32 %v3010, %v2980
  %v3012 = vadd.f32 %v3011, %v2981
  %v3013 = vadd.f32 %v3012, %v2982
  %v3014 = vadd.f32 %v3013, %v2983
  %v3015 = vadd.f32 %v3014, %v2984
  %v3016 = vadd.f32 %v3015, %v2985
  %3017 = vadd.xlane.f32.xlu0 %v3016
  %v3018 = vpop.xlane.xlu0 %3017
  %v3019 = vadd.f32 %v2986, %v2987
  %v3020 = vadd.f32 %v3019, %v2988
  %v3021 = vadd.f32 %v3020, %v2989
  %v3022 = vadd.f32 %v3021, %v2990
  %v3023 = vadd.f32 %v3022, %v2991
  %v3024 = vadd.f32 %v3023, %v2992
  %v3025 = vadd.f32 %v3024, %v2993
  %3026 = vadd.xlane.f32.xlu0 %v3025
  %v3027 = vpop.xlane.xlu0 %3026
  %v3028 = vadd.f32 %v2994, %v2995
  %v3029 = vadd.f32 %v3028, %v2996
  %v3030 = vadd.f32 %v3029, %v2997
  %v3031 = vadd.f32 %v3030, %v2998
  %v3032 = vadd.f32 %v3031, %v2999
  %v3033 = vadd.f32 %v3032, %v3000
  %v3034 = vadd.f32 %v3033, %v3001
  %3035 = vadd.xlane.f32.xlu0 %v3034
  %v3036 = vpop.xlane.xlu0 %3035
  %v3037 = vadd.f32 %v3002, %v3003
  %v3038 = vadd.f32 %v3037, %v3004
  %v3039 = vadd.f32 %v3038, %v3005
  %v3040 = vadd.f32 %v3039, %v3006
  %v3041 = vadd.f32 %v3040, %v3007
  %v3042 = vadd.f32 %v3041, %v3008
  %v3043 = vadd.f32 %v3042, %v3009
  %3044 = vadd.xlane.f32.xlu0 %v3043
  %v3045 = vpop.xlane.xlu0 %3044
  %v3046 = vmul.f32 %v3018, %v1462
  %v3047 = vmul.f32 %v3027, %v1462
  %v3048 = vmul.f32 %v3036, %v1462
  %v3049 = vmul.f32 %v3045, %v1462
  %v3050 = vadd.f32 %v3046, 1e-05
  %v3051 = vadd.f32 %v3047, 1e-05
  %v3052 = vadd.f32 %v3048, 1e-05
  %v3053 = vadd.f32 %v3049, 1e-05
  %v3054 = vrsqrt.pop %v3050
  %v3055 = vmul.f32 %v3054, %v3050
  %v3056 = vmul.f32 %v3055, %v3054
  %v3057 = vmul.f32 0.5, %v3056
  %v3058 = vsub.f32 1.5, %v3057
  %v3059 = vmul.f32 %v3054, %v3058
  %vm3060 = vweird.f32 %v3050
  %vm3061 = vweird.f32 %v3054
  %vm3062 = vmor %vm3060, %vm3061
  %v3063 = vsel %vm3062, %v3054, %v3059
  %v3064 = vrsqrt.pop %v3051
  %v3065 = vmul.f32 %v3064, %v3051
  %v3066 = vmul.f32 %v3065, %v3064
  %v3067 = vmul.f32 0.5, %v3066
  %v3068 = vsub.f32 1.5, %v3067
  %v3069 = vmul.f32 %v3064, %v3068
  %vm3070 = vweird.f32 %v3051
  %vm3071 = vweird.f32 %v3064
  %vm3072 = vmor %vm3070, %vm3071
  %v3073 = vsel %vm3072, %v3064, %v3069
  %v3074 = vrsqrt.pop %v3052
  %v3075 = vmul.f32 %v3074, %v3052
  %v3076 = vmul.f32 %v3075, %v3074
  %v3077 = vmul.f32 0.5, %v3076
  %v3078 = vsub.f32 1.5, %v3077
  %v3079 = vmul.f32 %v3074, %v3078
  %vm3080 = vweird.f32 %v3052
  %vm3081 = vweird.f32 %v3074
  %vm3082 = vmor %vm3080, %vm3081
  %v3083 = vsel %vm3082, %v3074, %v3079
  %v3084 = vrsqrt.pop %v3053
  %v3085 = vmul.f32 %v3084, %v3053
  %v3086 = vmul.f32 %v3085, %v3084
  %v3087 = vmul.f32 0.5, %v3086
  %v3088 = vsub.f32 1.5, %v3087
  %v3089 = vmul.f32 %v3084, %v3088
  %vm3090 = vweird.f32 %v3053
  %vm3091 = vweird.f32 %v3084
  %vm3092 = vmor %vm3090, %vm3091
  %v3093 = vsel %vm3092, %v3084, %v3089
  %v3094 = vmul.f32 %v2946, %v3063
  %v3095 = vmul.f32 %v2947, %v3063
  %v3096 = vmul.f32 %v2948, %v3063
  %v3097 = vmul.f32 %v2949, %v3063
  %v3098 = vmul.f32 %v2950, %v3063
  %v3099 = vmul.f32 %v2951, %v3063
  %v3100 = vmul.f32 %v2952, %v3063
  %v3101 = vmul.f32 %v2953, %v3063
  %v3102 = vmul.f32 %v2954, %v3073
  %v3103 = vmul.f32 %v2955, %v3073
  %v3104 = vmul.f32 %v2956, %v3073
  %v3105 = vmul.f32 %v2957, %v3073
  %v3106 = vmul.f32 %v2958, %v3073
  %v3107 = vmul.f32 %v2959, %v3073
  %v3108 = vmul.f32 %v2960, %v3073
  %v3109 = vmul.f32 %v2961, %v3073
  %v3110 = vmul.f32 %v2962, %v3083
  %v3111 = vmul.f32 %v2963, %v3083
  %v3112 = vmul.f32 %v2964, %v3083
  %v3113 = vmul.f32 %v2965, %v3083
  %v3114 = vmul.f32 %v2966, %v3083
  %v3115 = vmul.f32 %v2967, %v3083
  %v3116 = vmul.f32 %v2968, %v3083
  %v3117 = vmul.f32 %v2969, %v3083
  %v3118 = vmul.f32 %v2970, %v3093
  %v3119 = vmul.f32 %v2971, %v3093
  %v3120 = vmul.f32 %v2972, %v3093
  %v3121 = vmul.f32 %v2973, %v3093
  %v3122 = vmul.f32 %v2974, %v3093
  %v3123 = vmul.f32 %v2975, %v3093
  %v3124 = vmul.f32 %v2976, %v3093
  %v3125 = vmul.f32 %v2977, %v3093
  %v3126 = vpack.c.bf16 %v3095, %v3094
  %v3127 = vpack.c.bf16 %v3097, %v3096
  %v3128 = vpack.c.bf16 %v3099, %v3098
  %v3129 = vpack.c.bf16 %v3101, %v3100
  %v3130 = vpack.c.bf16 %v3103, %v3102
  %v3131 = vpack.c.bf16 %v3105, %v3104
  %v3132 = vpack.c.bf16 %v3107, %v3106
  %v3133 = vpack.c.bf16 %v3109, %v3108
  %v3134 = vpack.c.bf16 %v3111, %v3110
  %v3135 = vpack.c.bf16 %v3113, %v3112
  %v3136 = vpack.c.bf16 %v3115, %v3114
  %v3137 = vpack.c.bf16 %v3117, %v3116
  %v3138 = vpack.c.bf16 %v3119, %v3118
  %v3139 = vpack.c.bf16 %v3121, %v3120
  %v3140 = vpack.c.bf16 %v3123, %v3122
  %v3141 = vpack.c.bf16 %v3125, %v3124
  %v3142 = vunpack.c.l.bf16 %v1288
  %v3143 = vunpack.c.h.bf16 %v1288
  %v3144 = vunpack.c.l.bf16 %v1289
  %v3145 = vunpack.c.h.bf16 %v1289
  %v3146 = vunpack.c.l.bf16 %v1290
  %v3147 = vunpack.c.h.bf16 %v1290
  %v3148 = vunpack.c.l.bf16 %v1291
  %v3149 = vunpack.c.h.bf16 %v1291
  %v3150 = vunpack.c.l.bf16 %v1292
  %v3151 = vunpack.c.h.bf16 %v1292
  %v3152 = vunpack.c.l.bf16 %v1293
  %v3153 = vunpack.c.h.bf16 %v1293
  %v3154 = vunpack.c.l.bf16 %v1294
  %v3155 = vunpack.c.h.bf16 %v1294
  %v3156 = vunpack.c.l.bf16 %v1295
  %v3157 = vunpack.c.h.bf16 %v1295
  %v3158 = vunpack.c.l.bf16 %v1296
  %v3159 = vunpack.c.h.bf16 %v1296
  %v3160 = vunpack.c.l.bf16 %v1297
  %v3161 = vunpack.c.h.bf16 %v1297
  %v3162 = vunpack.c.l.bf16 %v1298
  %v3163 = vunpack.c.h.bf16 %v1298
  %v3164 = vunpack.c.l.bf16 %v1299
  %v3165 = vunpack.c.h.bf16 %v1299
  %v3166 = vunpack.c.l.bf16 %v1300
  %v3167 = vunpack.c.h.bf16 %v1300
  %v3168 = vunpack.c.l.bf16 %v1301
  %v3169 = vunpack.c.h.bf16 %v1301
  %v3170 = vunpack.c.l.bf16 %v1302
  %v3171 = vunpack.c.h.bf16 %v1302
  %v3172 = vunpack.c.l.bf16 %v1303
  %v3173 = vunpack.c.h.bf16 %v1303
  %v3174 = vunpack.c.l.bf16 %v3126
  %v3175 = vunpack.c.h.bf16 %v3126
  %v3176 = vunpack.c.l.bf16 %v3127
  %v3177 = vunpack.c.h.bf16 %v3127
  %v3178 = vunpack.c.l.bf16 %v3128
  %v3179 = vunpack.c.h.bf16 %v3128
  %v3180 = vunpack.c.l.bf16 %v3129
  %v3181 = vunpack.c.h.bf16 %v3129
  %v3182 = vunpack.c.l.bf16 %v3130
  %v3183 = vunpack.c.h.bf16 %v3130
  %v3184 = vunpack.c.l.bf16 %v3131
  %v3185 = vunpack.c.h.bf16 %v3131
  %v3186 = vunpack.c.l.bf16 %v3132
  %v3187 = vunpack.c.h.bf16 %v3132
  %v3188 = vunpack.c.l.bf16 %v3133
  %v3189 = vunpack.c.h.bf16 %v3133
  %v3190 = vunpack.c.l.bf16 %v3134
  %v3191 = vunpack.c.h.bf16 %v3134
  %v3192 = vunpack.c.l.bf16 %v3135
  %v3193 = vunpack.c.h.bf16 %v3135
  %v3194 = vunpack.c.l.bf16 %v3136
  %v3195 = vunpack.c.h.bf16 %v3136
  %v3196 = vunpack.c.l.bf16 %v3137
  %v3197 = vunpack.c.h.bf16 %v3137
  %v3198 = vunpack.c.l.bf16 %v3138
  %v3199 = vunpack.c.h.bf16 %v3138
  %v3200 = vunpack.c.l.bf16 %v3139
  %v3201 = vunpack.c.h.bf16 %v3139
  %v3202 = vunpack.c.l.bf16 %v3140
  %v3203 = vunpack.c.h.bf16 %v3140
  %v3204 = vunpack.c.l.bf16 %v3141
  %v3205 = vunpack.c.h.bf16 %v3141
  %v3206 = vmul.f32 %v3142, %v3174
  %v3207 = vmul.f32 %v3143, %v3175
  %v3208 = vmul.f32 %v3144, %v3176
  %v3209 = vmul.f32 %v3145, %v3177
  %v3210 = vmul.f32 %v3146, %v3178
  %v3211 = vmul.f32 %v3147, %v3179
  %v3212 = vmul.f32 %v3148, %v3180
  %v3213 = vmul.f32 %v3149, %v3181
  %v3214 = vmul.f32 %v3150, %v3182
  %v3215 = vmul.f32 %v3151, %v3183
  %v3216 = vmul.f32 %v3152, %v3184
  %v3217 = vmul.f32 %v3153, %v3185
  %v3218 = vmul.f32 %v3154, %v3186
  %v3219 = vmul.f32 %v3155, %v3187
  %v3220 = vmul.f32 %v3156, %v3188
  %v3221 = vmul.f32 %v3157, %v3189
  %v3222 = vmul.f32 %v3158, %v3190
  %v3223 = vmul.f32 %v3159, %v3191
  %v3224 = vmul.f32 %v3160, %v3192
  %v3225 = vmul.f32 %v3161, %v3193
  %v3226 = vmul.f32 %v3162, %v3194
  %v3227 = vmul.f32 %v3163, %v3195
  %v3228 = vmul.f32 %v3164, %v3196
  %v3229 = vmul.f32 %v3165, %v3197
  %v3230 = vmul.f32 %v3166, %v3198
  %v3231 = vmul.f32 %v3167, %v3199
  %v3232 = vmul.f32 %v3168, %v3200
  %v3233 = vmul.f32 %v3169, %v3201
  %v3234 = vmul.f32 %v3170, %v3202
  %v3235 = vmul.f32 %v3171, %v3203
  %v3236 = vmul.f32 %v3172, %v3204
  %v3237 = vmul.f32 %v3173, %v3205
  %v3238 = vpack.c.bf16 %v3207, %v3206
  %v3239 = vpack.c.bf16 %v3209, %v3208
  %v3240 = vpack.c.bf16 %v3211, %v3210
  %v3241 = vpack.c.bf16 %v3213, %v3212
  %v3242 = vpack.c.bf16 %v3215, %v3214
  %v3243 = vpack.c.bf16 %v3217, %v3216
  %v3244 = vpack.c.bf16 %v3219, %v3218
  %v3245 = vpack.c.bf16 %v3221, %v3220
  %v3246 = vpack.c.bf16 %v3223, %v3222
  %v3247 = vpack.c.bf16 %v3225, %v3224
  %v3248 = vpack.c.bf16 %v3227, %v3226
  %v3249 = vpack.c.bf16 %v3229, %v3228
  %v3250 = vpack.c.bf16 %v3231, %v3230
  %v3251 = vpack.c.bf16 %v3233, %v3232
  %v3252 = vpack.c.bf16 %v3235, %v3234
  %v3253 = vpack.c.bf16 %v3237, %v3236
  %v3254 = vunpack.c.l.bf16 %v3238
  %v3255 = vunpack.c.h.bf16 %v3238
  %v3256 = vunpack.c.l.bf16 %v3239
  %v3257 = vunpack.c.h.bf16 %v3239
  %v3258 = vunpack.c.l.bf16 %v3240
  %v3259 = vunpack.c.h.bf16 %v3240
  %v3260 = vunpack.c.l.bf16 %v3241
  %v3261 = vunpack.c.h.bf16 %v3241
  %v3262 = vunpack.c.l.bf16 %v3242
  %v3263 = vunpack.c.h.bf16 %v3242
  %v3264 = vunpack.c.l.bf16 %v3243
  %v3265 = vunpack.c.h.bf16 %v3243
  %v3266 = vunpack.c.l.bf16 %v3244
  %v3267 = vunpack.c.h.bf16 %v3244
  %v3268 = vunpack.c.l.bf16 %v3245
  %v3269 = vunpack.c.h.bf16 %v3245
  %v3270 = vunpack.c.l.bf16 %v3246
  %v3271 = vunpack.c.h.bf16 %v3246
  %v3272 = vunpack.c.l.bf16 %v3247
  %v3273 = vunpack.c.h.bf16 %v3247
  %v3274 = vunpack.c.l.bf16 %v3248
  %v3275 = vunpack.c.h.bf16 %v3248
  %v3276 = vunpack.c.l.bf16 %v3249
  %v3277 = vunpack.c.h.bf16 %v3249
  %v3278 = vunpack.c.l.bf16 %v3250
  %v3279 = vunpack.c.h.bf16 %v3250
  %v3280 = vunpack.c.l.bf16 %v3251
  %v3281 = vunpack.c.h.bf16 %v3251
  %v3282 = vunpack.c.l.bf16 %v3252
  %v3283 = vunpack.c.h.bf16 %v3252
  %v3284 = vunpack.c.l.bf16 %v3253
  %v3285 = vunpack.c.h.bf16 %v3253
  %v3286 = vunpack.c.l.bf16 %v1304
  %v3287 = vunpack.c.h.bf16 %v1304
  %v3288 = vunpack.c.l.bf16 %v1305
  %v3289 = vunpack.c.h.bf16 %v1305
  %v3290 = vunpack.c.l.bf16 %v1306
  %v3291 = vunpack.c.h.bf16 %v1306
  %v3292 = vunpack.c.l.bf16 %v1307
  %v3293 = vunpack.c.h.bf16 %v1307
  %v3294 = vunpack.c.l.bf16 %v1308
  %v3295 = vunpack.c.h.bf16 %v1308
  %v3296 = vunpack.c.l.bf16 %v1309
  %v3297 = vunpack.c.h.bf16 %v1309
  %v3298 = vunpack.c.l.bf16 %v1310
  %v3299 = vunpack.c.h.bf16 %v1310
  %v3300 = vunpack.c.l.bf16 %v1311
  %v3301 = vunpack.c.h.bf16 %v1311
  %v3302 = vunpack.c.l.bf16 %v1312
  %v3303 = vunpack.c.h.bf16 %v1312
  %v3304 = vunpack.c.l.bf16 %v1313
  %v3305 = vunpack.c.h.bf16 %v1313
  %v3306 = vunpack.c.l.bf16 %v1314
  %v3307 = vunpack.c.h.bf16 %v1314
  %v3308 = vunpack.c.l.bf16 %v1315
  %v3309 = vunpack.c.h.bf16 %v1315
  %v3310 = vunpack.c.l.bf16 %v1316
  %v3311 = vunpack.c.h.bf16 %v1316
  %v3312 = vunpack.c.l.bf16 %v1317
  %v3313 = vunpack.c.h.bf16 %v1317
  %v3314 = vunpack.c.l.bf16 %v1318
  %v3315 = vunpack.c.h.bf16 %v1318
  %v3316 = vunpack.c.l.bf16 %v1319
  %v3317 = vunpack.c.h.bf16 %v1319
  %v3318 = vadd.f32 %v3254, %v3286
  %v3319 = vadd.f32 %v3255, %v3287
  %v3320 = vadd.f32 %v3256, %v3288
  %v3321 = vadd.f32 %v3257, %v3289
  %v3322 = vadd.f32 %v3258, %v3290
  %v3323 = vadd.f32 %v3259, %v3291
  %v3324 = vadd.f32 %v3260, %v3292
  %v3325 = vadd.f32 %v3261, %v3293
  %v3326 = vadd.f32 %v3262, %v3294
  %v3327 = vadd.f32 %v3263, %v3295
  %v3328 = vadd.f32 %v3264, %v3296
  %v3329 = vadd.f32 %v3265, %v3297
  %v3330 = vadd.f32 %v3266, %v3298
  %v3331 = vadd.f32 %v3267, %v3299
  %v3332 = vadd.f32 %v3268, %v3300
  %v3333 = vadd.f32 %v3269, %v3301
  %v3334 = vadd.f32 %v3270, %v3302
  %v3335 = vadd.f32 %v3271, %v3303
  %v3336 = vadd.f32 %v3272, %v3304
  %v3337 = vadd.f32 %v3273, %v3305
  %v3338 = vadd.f32 %v3274, %v3306
  %v3339 = vadd.f32 %v3275, %v3307
  %v3340 = vadd.f32 %v3276, %v3308
  %v3341 = vadd.f32 %v3277, %v3309
  %v3342 = vadd.f32 %v3278, %v3310
  %v3343 = vadd.f32 %v3279, %v3311
  %v3344 = vadd.f32 %v3280, %v3312
  %v3345 = vadd.f32 %v3281, %v3313
  %v3346 = vadd.f32 %v3282, %v3314
  %v3347 = vadd.f32 %v3283, %v3315
  %v3348 = vadd.f32 %v3284, %v3316
  %v3349 = vadd.f32 %v3285, %v3317
  %v3350 = vpack.c.bf16 %v3319, %v3318
  %v3351 = vpack.c.bf16 %v3321, %v3320
  %v3352 = vpack.c.bf16 %v3323, %v3322
  %v3353 = vpack.c.bf16 %v3325, %v3324
  %v3354 = vpack.c.bf16 %v3327, %v3326
  %v3355 = vpack.c.bf16 %v3329, %v3328
  %v3356 = vpack.c.bf16 %v3331, %v3330
  %v3357 = vpack.c.bf16 %v3333, %v3332
  %v3358 = vpack.c.bf16 %v3335, %v3334
  %v3359 = vpack.c.bf16 %v3337, %v3336
  %v3360 = vpack.c.bf16 %v3339, %v3338
  %v3361 = vpack.c.bf16 %v3341, %v3340
  %v3362 = vpack.c.bf16 %v3343, %v3342
  %v3363 = vpack.c.bf16 %v3345, %v3344
  %v3364 = vpack.c.bf16 %v3347, %v3346
  %v3365 = vpack.c.bf16 %v3349, %v3348
  %v3366 = vunpack.c.l.bf16 %v3350
  %v3367 = vunpack.c.h.bf16 %v3350
  %v3368 = vunpack.c.l.bf16 %v3351
  %v3369 = vunpack.c.h.bf16 %v3351
  %v3370 = vunpack.c.l.bf16 %v3352
  %v3371 = vunpack.c.h.bf16 %v3352
  %v3372 = vunpack.c.l.bf16 %v3353
  %v3373 = vunpack.c.h.bf16 %v3353
  %v3374 = vunpack.c.l.bf16 %v3354
  %v3375 = vunpack.c.h.bf16 %v3354
  %v3376 = vunpack.c.l.bf16 %v3355
  %v3377 = vunpack.c.h.bf16 %v3355
  %v3378 = vunpack.c.l.bf16 %v3356
  %v3379 = vunpack.c.h.bf16 %v3356
  %v3380 = vunpack.c.l.bf16 %v3357
  %v3381 = vunpack.c.h.bf16 %v3357
  %v3382 = vunpack.c.l.bf16 %v3358
  %v3383 = vunpack.c.h.bf16 %v3358
  %v3384 = vunpack.c.l.bf16 %v3359
  %v3385 = vunpack.c.h.bf16 %v3359
  %v3386 = vunpack.c.l.bf16 %v3360
  %v3387 = vunpack.c.h.bf16 %v3360
  %v3388 = vunpack.c.l.bf16 %v3361
  %v3389 = vunpack.c.h.bf16 %v3361
  %v3390 = vunpack.c.l.bf16 %v3362
  %v3391 = vunpack.c.h.bf16 %v3362
  %v3392 = vunpack.c.l.bf16 %v3363
  %v3393 = vunpack.c.h.bf16 %v3363
  %v3394 = vunpack.c.l.bf16 %v3364
  %v3395 = vunpack.c.h.bf16 %v3364
  %v3396 = vunpack.c.l.bf16 %v3365
  %v3397 = vunpack.c.h.bf16 %v3365
  %v3398 = vmax.f32 %v3366, 0.0
  %v3399 = vmax.f32 %v3367, 0.0
  %v3400 = vmax.f32 %v3368, 0.0
  %v3401 = vmax.f32 %v3369, 0.0
  %v3402 = vmax.f32 %v3370, 0.0
  %v3403 = vmax.f32 %v3371, 0.0
  %v3404 = vmax.f32 %v3372, 0.0
  %v3405 = vmax.f32 %v3373, 0.0
  %v3406 = vmax.f32 %v3374, 0.0
  %v3407 = vmax.f32 %v3375, 0.0
  %v3408 = vmax.f32 %v3376, 0.0
  %v3409 = vmax.f32 %v3377, 0.0
  %v3410 = vmax.f32 %v3378, 0.0
  %v3411 = vmax.f32 %v3379, 0.0
  %v3412 = vmax.f32 %v3380, 0.0
  %v3413 = vmax.f32 %v3381, 0.0
  %v3414 = vmax.f32 %v3382, 0.0
  %v3415 = vmax.f32 %v3383, 0.0
  %v3416 = vmax.f32 %v3384, 0.0
  %v3417 = vmax.f32 %v3385, 0.0
  %v3418 = vmax.f32 %v3386, 0.0
  %v3419 = vmax.f32 %v3387, 0.0
  %v3420 = vmax.f32 %v3388, 0.0
  %v3421 = vmax.f32 %v3389, 0.0
  %v3422 = vmax.f32 %v3390, 0.0
  %v3423 = vmax.f32 %v3391, 0.0
  %v3424 = vmax.f32 %v3392, 0.0
  %v3425 = vmax.f32 %v3393, 0.0
  %v3426 = vmax.f32 %v3394, 0.0
  %v3427 = vmax.f32 %v3395, 0.0
  %v3428 = vmax.f32 %v3396, 0.0
  %v3429 = vmax.f32 %v3397, 0.0
  %v3430 = vpack.c.bf16 %v3406, %v3398
  %v3431 = vpack.c.bf16 %v3407, %v3399
  %v3432 = vpack.c.bf16 %v3408, %v3400
  %v3433 = vpack.c.bf16 %v3409, %v3401
  %v3434 = vpack.c.bf16 %v3410, %v3402
  %v3435 = vpack.c.bf16 %v3411, %v3403
  %v3436 = vpack.c.bf16 %v3412, %v3404
  %v3437 = vpack.c.bf16 %v3413, %v3405
  %v3438 = vpack.c.bf16 %v3422, %v3414
  %v3439 = vpack.c.bf16 %v3423, %v3415
  %v3440 = vpack.c.bf16 %v3424, %v3416
  %v3441 = vpack.c.bf16 %v3425, %v3417
  %v3442 = vpack.c.bf16 %v3426, %v3418
  %v3443 = vpack.c.bf16 %v3427, %v3419
  %v3444 = vpack.c.bf16 %v3428, %v3420
  %v3445 = vpack.c.bf16 %v3429, %v3421
  %3446 = vrot.lane.b32.xlu0 %v1975, 64
  %v3447 = vpop.permute.xlu0 %3446
  %3448 = vrot.lane.b32.xlu0 %v1976, 64
  %v3449 = vpop.permute.xlu0 %3448
  %3452 = vxpose.xlu0.c.b16.start [1/8] %v3447, 128
  %3453 = vxpose.xlu0.c.b16.cont [2/8] %v3449, 128
  %3454 = vxpose.xlu0.c.b16.cont [3/8] 0, 128
  %3455 = vxpose.xlu0.c.b16.cont [4/8] 0, 128
  %3456 = vxpose.xlu0.c.b16.cont [5/8] 0, 128
  %3457 = vxpose.xlu0.c.b16.cont [6/8] 0, 128
  %3458 = vxpose.xlu0.c.b16.cont [7/8] 0, 128
  %3459 = vxpose.xlu0.c.b16.end [8/8] 0, 128
  %v3460 = vpop.trf.xlu0
  %v3461 = vpop.trf.xlu0
  %v3462 = vpop.trf.xlu0
  %v3463 = vpop.trf.xlu0
  %v3464 = vpop.trf.xlu0
  %v3465 = vpop.trf.xlu0
  %v3466 = vpop.trf.xlu0
  %v3467 = vpop.trf.xlu0
  %v3469 = vsel %vm1995, %v3460, 0
  %v3472 = vsel %vm1995, %v3461, 0
  %3474 = vmatpush.bf16.msra.mxu0 0
  %3475 = vmatpush.bf16.msra.mxu0 0
  %3476 = vmatpush.bf16.msra.mxu0 0
  %3477 = vmatpush.bf16.msra.mxu0 0
  %3478 = vmatpush.bf16.msra.mxu0 0
  %3479 = vmatpush.bf16.msra.mxu0 0
  %3480 = vmatpush.bf16.msra.mxu0 %v3438
  %3481 = vmatpush.bf16.msra.mxu0 %v3430
  %3482 = vmatmul.bf16.gmra.mxu0 %v3469
  %v3483 = vpop.f32.mrf.mxu0
  %v3484 = vadd.f32 0.0, %v3483
  %v3485 = vpop.f32.mrf.mxu0
  %v3486 = vadd.f32 0.0, %v3485
  %3487 = vmatmul.bf16.gmra.mxu0 %v3472
  %v3488 = vpop.f32.mrf.mxu0
  %v3489 = vadd.f32 0.0, %v3488
  %v3490 = vpop.f32.mrf.mxu0
  %v3491 = vadd.f32 0.0, %v3490
  %3492 = vdwg.mxu0
  %3493 = vmatpush.bf16.msra.mxu0 0
  %3494 = vmatpush.bf16.msra.mxu0 0
  %3495 = vmatpush.bf16.msra.mxu0 0
  %3496 = vmatpush.bf16.msra.mxu0 0
  %3497 = vmatpush.bf16.msra.mxu0 0
  %3498 = vmatpush.bf16.msra.mxu0 0
  %3499 = vmatpush.bf16.msra.mxu0 %v3439
  %3500 = vmatpush.bf16.msra.mxu0 %v3431
  %3501 = vmatmul.bf16.gmra.mxu0 %v3469
  %v3502 = vpop.f32.mrf.mxu0
  %v3503 = vadd.f32 0.0, %v3502
  %v3504 = vpop.f32.mrf.mxu0
  %v3505 = vadd.f32 0.0, %v3504
  %3506 = vmatmul.bf16.gmra.mxu0 %v3472
  %v3507 = vpop.f32.mrf.mxu0
  %v3508 = vadd.f32 0.0, %v3507
  %v3509 = vpop.f32.mrf.mxu0
  %v3510 = vadd.f32 0.0, %v3509
  %3511 = vdwg.mxu0
  %3512 = vmatpush.bf16.msra.mxu0 0
  %3513 = vmatpush.bf16.msra.mxu0 0
  %3514 = vmatpush.bf16.msra.mxu0 0
  %3515 = vmatpush.bf16.msra.mxu0 0
  %3516 = vmatpush.bf16.msra.mxu0 0
  %3517 = vmatpush.bf16.msra.mxu0 0
  %3518 = vmatpush.bf16.msra.mxu0 %v3440
  %3519 = vmatpush.bf16.msra.mxu0 %v3432
  %3520 = vmatmul.bf16.gmra.mxu0 %v3469
  %v3521 = vpop.f32.mrf.mxu0
  %v3522 = vadd.f32 0.0, %v3521
  %v3523 = vpop.f32.mrf.mxu0
  %v3524 = vadd.f32 0.0, %v3523
  %3525 = vmatmul.bf16.gmra.mxu0 %v3472
  %v3526 = vpop.f32.mrf.mxu0
  %v3527 = vadd.f32 0.0, %v3526
  %v3528 = vpop.f32.mrf.mxu0
  %v3529 = vadd.f32 0.0, %v3528
  %3530 = vdwg.mxu0
  %3531 = vmatpush.bf16.msra.mxu0 0
  %3532 = vmatpush.bf16.msra.mxu0 0
  %3533 = vmatpush.bf16.msra.mxu0 0
  %3534 = vmatpush.bf16.msra.mxu0 0
  %3535 = vmatpush.bf16.msra.mxu0 0
  %3536 = vmatpush.bf16.msra.mxu0 0
  %3537 = vmatpush.bf16.msra.mxu0 %v3441
  %3538 = vmatpush.bf16.msra.mxu0 %v3433
  %3539 = vmatmul.bf16.gmra.mxu0 %v3469
  %v3540 = vpop.f32.mrf.mxu0
  %v3541 = vadd.f32 0.0, %v3540
  %v3542 = vpop.f32.mrf.mxu0
  %v3543 = vadd.f32 0.0, %v3542
  %3544 = vmatmul.bf16.gmra.mxu0 %v3472
  %v3545 = vpop.f32.mrf.mxu0
  %v3546 = vadd.f32 0.0, %v3545
  %v3547 = vpop.f32.mrf.mxu0
  %v3548 = vadd.f32 0.0, %v3547
  %3549 = vdwg.mxu0
  %3550 = vmatpush.bf16.msra.mxu0 0
  %3551 = vmatpush.bf16.msra.mxu0 0
  %3552 = vmatpush.bf16.msra.mxu0 0
  %3553 = vmatpush.bf16.msra.mxu0 0
  %3554 = vmatpush.bf16.msra.mxu0 0
  %3555 = vmatpush.bf16.msra.mxu0 0
  %3556 = vmatpush.bf16.msra.mxu0 %v3442
  %3557 = vmatpush.bf16.msra.mxu0 %v3434
  %3558 = vmatmul.bf16.gmra.mxu0 %v3469
  %v3559 = vpop.f32.mrf.mxu0
  %v3560 = vadd.f32 0.0, %v3559
  %v3561 = vpop.f32.mrf.mxu0
  %v3562 = vadd.f32 0.0, %v3561
  %3563 = vmatmul.bf16.gmra.mxu0 %v3472
  %v3564 = vpop.f32.mrf.mxu0
  %v3565 = vadd.f32 0.0, %v3564
  %v3566 = vpop.f32.mrf.mxu0
  %v3567 = vadd.f32 0.0, %v3566
  %3568 = vdwg.mxu0
  %3569 = vmatpush.bf16.msra.mxu0 0
  %3570 = vmatpush.bf16.msra.mxu0 0
  %3571 = vmatpush.bf16.msra.mxu0 0
  %3572 = vmatpush.bf16.msra.mxu0 0
  %3573 = vmatpush.bf16.msra.mxu0 0
  %3574 = vmatpush.bf16.msra.mxu0 0
  %3575 = vmatpush.bf16.msra.mxu0 %v3443
  %3576 = vmatpush.bf16.msra.mxu0 %v3435
  %3577 = vmatmul.bf16.gmra.mxu0 %v3469
  %v3578 = vpop.f32.mrf.mxu0
  %v3579 = vadd.f32 0.0, %v3578
  %v3580 = vpop.f32.mrf.mxu0
  %v3581 = vadd.f32 0.0, %v3580
  %3582 = vmatmul.bf16.gmra.mxu0 %v3472
  %v3583 = vpop.f32.mrf.mxu0
  %v3584 = vadd.f32 0.0, %v3583
  %v3585 = vpop.f32.mrf.mxu0
  %v3586 = vadd.f32 0.0, %v3585
  %3587 = vdwg.mxu0
  %3588 = vmatpush.bf16.msra.mxu0 0
  %3589 = vmatpush.bf16.msra.mxu0 0
  %3590 = vmatpush.bf16.msra.mxu0 0
  %3591 = vmatpush.bf16.msra.mxu0 0
  %3592 = vmatpush.bf16.msra.mxu0 0
  %3593 = vmatpush.bf16.msra.mxu0 0
  %3594 = vmatpush.bf16.msra.mxu0 %v3444
  %3595 = vmatpush.bf16.msra.mxu0 %v3436
  %3596 = vmatmul.bf16.gmra.mxu0 %v3469
  %v3597 = vpop.f32.mrf.mxu0
  %v3598 = vadd.f32 0.0, %v3597
  %v3599 = vpop.f32.mrf.mxu0
  %v3600 = vadd.f32 0.0, %v3599
  %3601 = vmatmul.bf16.gmra.mxu0 %v3472
  %v3602 = vpop.f32.mrf.mxu0
  %v3603 = vadd.f32 0.0, %v3602
  %v3604 = vpop.f32.mrf.mxu0
  %v3605 = vadd.f32 0.0, %v3604
  %3606 = vdwg.mxu0
  %3607 = vmatpush.bf16.msra.mxu0 0
  %3608 = vmatpush.bf16.msra.mxu0 0
  %3609 = vmatpush.bf16.msra.mxu0 0
  %3610 = vmatpush.bf16.msra.mxu0 0
  %3611 = vmatpush.bf16.msra.mxu0 0
  %3612 = vmatpush.bf16.msra.mxu0 0
  %3613 = vmatpush.bf16.msra.mxu0 %v3445
  %3614 = vmatpush.bf16.msra.mxu0 %v3437
  %3615 = vmatmul.bf16.gmra.mxu0 %v3469
  %v3616 = vpop.f32.mrf.mxu0
  %v3617 = vadd.f32 0.0, %v3616
  %v3618 = vpop.f32.mrf.mxu0
  %v3619 = vadd.f32 0.0, %v3618
  %3620 = vmatmul.bf16.gmra.mxu0 %v3472
  %v3621 = vpop.f32.mrf.mxu0
  %v3622 = vadd.f32 0.0, %v3621
  %v3623 = vpop.f32.mrf.mxu0
  %v3624 = vadd.f32 0.0, %v3623
  %3625 = vdwg.mxu0
  %v3626 = vadd.f32 %v3484, %v3503
  %v3627 = vadd.f32 %v3626, %v3522
  %v3628 = vadd.f32 %v3627, %v3541
  %v3629 = vadd.f32 %v3628, %v3560
  %v3630 = vadd.f32 %v3629, %v3579
  %v3631 = vadd.f32 %v3630, %v3598
  %v3632 = vadd.f32 %v3631, %v3617
  %3633 = vadd.xlane.f32.xlu0 %v3632
  %v3634 = vpop.xlane.xlu0 %3633
  %v3635 = vadd.f32 %v3486, %v3505
  %v3636 = vadd.f32 %v3635, %v3524
  %v3637 = vadd.f32 %v3636, %v3543
  %v3638 = vadd.f32 %v3637, %v3562
  %v3639 = vadd.f32 %v3638, %v3581
  %v3640 = vadd.f32 %v3639, %v3600
  %v3641 = vadd.f32 %v3640, %v3619
  %3642 = vadd.xlane.f32.xlu0 %v3641
  %v3643 = vpop.xlane.xlu0 %3642
  %v3644 = vadd.f32 %v3489, %v3508
  %v3645 = vadd.f32 %v3644, %v3527
  %v3646 = vadd.f32 %v3645, %v3546
  %v3647 = vadd.f32 %v3646, %v3565
  %v3648 = vadd.f32 %v3647, %v3584
  %v3649 = vadd.f32 %v3648, %v3603
  %v3650 = vadd.f32 %v3649, %v3622
  %3651 = vadd.xlane.f32.xlu0 %v3650
  %v3652 = vpop.xlane.xlu0 %3651
  %v3653 = vadd.f32 %v3491, %v3510
  %v3654 = vadd.f32 %v3653, %v3529
  %v3655 = vadd.f32 %v3654, %v3548
  %v3656 = vadd.f32 %v3655, %v3567
  %v3657 = vadd.f32 %v3656, %v3586
  %v3658 = vadd.f32 %v3657, %v3605
  %v3659 = vadd.f32 %v3658, %v3624
  %3660 = vadd.xlane.f32.xlu0 %v3659
  %v3661 = vpop.xlane.xlu0 %3660
  %v3662 = vmul.f32 %v3634, %v1462
  %v3663 = vmul.f32 %v3643, %v1462
  %v3664 = vmul.f32 %v3652, %v1462
  %v3665 = vmul.f32 %v3661, %v1462
  %v3666 = vsub.f32 %v3484, %v3662
  %v3667 = vsub.f32 %v3503, %v3662
  %v3668 = vsub.f32 %v3522, %v3662
  %v3669 = vsub.f32 %v3541, %v3662
  %v3670 = vsub.f32 %v3560, %v3662
  %v3671 = vsub.f32 %v3579, %v3662
  %v3672 = vsub.f32 %v3598, %v3662
  %v3673 = vsub.f32 %v3617, %v3662
  %v3674 = vsub.f32 %v3486, %v3663
  %v3675 = vsub.f32 %v3505, %v3663
  %v3676 = vsub.f32 %v3524, %v3663
  %v3677 = vsub.f32 %v3543, %v3663
  %v3678 = vsub.f32 %v3562, %v3663
  %v3679 = vsub.f32 %v3581, %v3663
  %v3680 = vsub.f32 %v3600, %v3663
  %v3681 = vsub.f32 %v3619, %v3663
  %v3682 = vsub.f32 %v3489, %v3664
  %v3683 = vsub.f32 %v3508, %v3664
  %v3684 = vsub.f32 %v3527, %v3664
  %v3685 = vsub.f32 %v3546, %v3664
  %v3686 = vsub.f32 %v3565, %v3664
  %v3687 = vsub.f32 %v3584, %v3664
  %v3688 = vsub.f32 %v3603, %v3664
  %v3689 = vsub.f32 %v3622, %v3664
  %v3690 = vsub.f32 %v3491, %v3665
  %v3691 = vsub.f32 %v3510, %v3665
  %v3692 = vsub.f32 %v3529, %v3665
  %v3693 = vsub.f32 %v3548, %v3665
  %v3694 = vsub.f32 %v3567, %v3665
  %v3695 = vsub.f32 %v3586, %v3665
  %v3696 = vsub.f32 %v3605, %v3665
  %v3697 = vsub.f32 %v3624, %v3665
  %v3698 = vmul.f32 %v3666, %v3666
  %v3699 = vmul.f32 %v3667, %v3667
  %v3700 = vmul.f32 %v3668, %v3668
  %v3701 = vmul.f32 %v3669, %v3669
  %v3702 = vmul.f32 %v3670, %v3670
  %v3703 = vmul.f32 %v3671, %v3671
  %v3704 = vmul.f32 %v3672, %v3672
  %v3705 = vmul.f32 %v3673, %v3673
  %v3706 = vmul.f32 %v3674, %v3674
  %v3707 = vmul.f32 %v3675, %v3675
  %v3708 = vmul.f32 %v3676, %v3676
  %v3709 = vmul.f32 %v3677, %v3677
  %v3710 = vmul.f32 %v3678, %v3678
  %v3711 = vmul.f32 %v3679, %v3679
  %v3712 = vmul.f32 %v3680, %v3680
  %v3713 = vmul.f32 %v3681, %v3681
  %v3714 = vmul.f32 %v3682, %v3682
  %v3715 = vmul.f32 %v3683, %v3683
  %v3716 = vmul.f32 %v3684, %v3684
  %v3717 = vmul.f32 %v3685, %v3685
  %v3718 = vmul.f32 %v3686, %v3686
  %v3719 = vmul.f32 %v3687, %v3687
  %v3720 = vmul.f32 %v3688, %v3688
  %v3721 = vmul.f32 %v3689, %v3689
  %v3722 = vmul.f32 %v3690, %v3690
  %v3723 = vmul.f32 %v3691, %v3691
  %v3724 = vmul.f32 %v3692, %v3692
  %v3725 = vmul.f32 %v3693, %v3693
  %v3726 = vmul.f32 %v3694, %v3694
  %v3727 = vmul.f32 %v3695, %v3695
  %v3728 = vmul.f32 %v3696, %v3696
  %v3729 = vmul.f32 %v3697, %v3697
  %v3730 = vadd.f32 %v3698, %v3699
  %v3731 = vadd.f32 %v3730, %v3700
  %v3732 = vadd.f32 %v3731, %v3701
  %v3733 = vadd.f32 %v3732, %v3702
  %v3734 = vadd.f32 %v3733, %v3703
  %v3735 = vadd.f32 %v3734, %v3704
  %v3736 = vadd.f32 %v3735, %v3705
  %3737 = vadd.xlane.f32.xlu0 %v3736
  %v3738 = vpop.xlane.xlu0 %3737
  %v3739 = vadd.f32 %v3706, %v3707
  %v3740 = vadd.f32 %v3739, %v3708
  %v3741 = vadd.f32 %v3740, %v3709
  %v3742 = vadd.f32 %v3741, %v3710
  %v3743 = vadd.f32 %v3742, %v3711
  %v3744 = vadd.f32 %v3743, %v3712
  %v3745 = vadd.f32 %v3744, %v3713
  %3746 = vadd.xlane.f32.xlu0 %v3745
  %v3747 = vpop.xlane.xlu0 %3746
  %v3748 = vadd.f32 %v3714, %v3715
  %v3749 = vadd.f32 %v3748, %v3716
  %v3750 = vadd.f32 %v3749, %v3717
  %v3751 = vadd.f32 %v3750, %v3718
  %v3752 = vadd.f32 %v3751, %v3719
  %v3753 = vadd.f32 %v3752, %v3720
  %v3754 = vadd.f32 %v3753, %v3721
  %3755 = vadd.xlane.f32.xlu0 %v3754
  %v3756 = vpop.xlane.xlu0 %3755
  %v3757 = vadd.f32 %v3722, %v3723
  %v3758 = vadd.f32 %v3757, %v3724
  %v3759 = vadd.f32 %v3758, %v3725
  %v3760 = vadd.f32 %v3759, %v3726
  %v3761 = vadd.f32 %v3760, %v3727
  %v3762 = vadd.f32 %v3761, %v3728
  %v3763 = vadd.f32 %v3762, %v3729
  %3764 = vadd.xlane.f32.xlu0 %v3763
  %v3765 = vpop.xlane.xlu0 %3764
  %v3766 = vmul.f32 %v3738, %v1462
  %v3767 = vmul.f32 %v3747, %v1462
  %v3768 = vmul.f32 %v3756, %v1462
  %v3769 = vmul.f32 %v3765, %v1462
  %v3770 = vadd.f32 %v3766, 1e-05
  %v3771 = vadd.f32 %v3767, 1e-05
  %v3772 = vadd.f32 %v3768, 1e-05
  %v3773 = vadd.f32 %v3769, 1e-05
  %v3774 = vrsqrt.pop %v3770
  %v3775 = vmul.f32 %v3774, %v3770
  %v3776 = vmul.f32 %v3775, %v3774
  %v3777 = vmul.f32 0.5, %v3776
  %v3778 = vsub.f32 1.5, %v3777
  %v3779 = vmul.f32 %v3774, %v3778
  %vm3780 = vweird.f32 %v3770
  %vm3781 = vweird.f32 %v3774
  %vm3782 = vmor %vm3780, %vm3781
  %v3783 = vsel %vm3782, %v3774, %v3779
  %v3784 = vrsqrt.pop %v3771
  %v3785 = vmul.f32 %v3784, %v3771
  %v3786 = vmul.f32 %v3785, %v3784
  %v3787 = vmul.f32 0.5, %v3786
  %v3788 = vsub.f32 1.5, %v3787
  %v3789 = vmul.f32 %v3784, %v3788
  %vm3790 = vweird.f32 %v3771
  %vm3791 = vweird.f32 %v3784
  %vm3792 = vmor %vm3790, %vm3791
  %v3793 = vsel %vm3792, %v3784, %v3789
  %v3794 = vrsqrt.pop %v3772
  %v3795 = vmul.f32 %v3794, %v3772
  %v3796 = vmul.f32 %v3795, %v3794
  %v3797 = vmul.f32 0.5, %v3796
  %v3798 = vsub.f32 1.5, %v3797
  %v3799 = vmul.f32 %v3794, %v3798
  %vm3800 = vweird.f32 %v3772
  %vm3801 = vweird.f32 %v3794
  %vm3802 = vmor %vm3800, %vm3801
  %v3803 = vsel %vm3802, %v3794, %v3799
  %v3804 = vrsqrt.pop %v3773
  %v3805 = vmul.f32 %v3804, %v3773
  %v3806 = vmul.f32 %v3805, %v3804
  %v3807 = vmul.f32 0.5, %v3806
  %v3808 = vsub.f32 1.5, %v3807
  %v3809 = vmul.f32 %v3804, %v3808
  %vm3810 = vweird.f32 %v3773
  %vm3811 = vweird.f32 %v3804
  %vm3812 = vmor %vm3810, %vm3811
  %v3813 = vsel %vm3812, %v3804, %v3809
  %v3814 = vmul.f32 %v3666, %v3783
  %v3815 = vmul.f32 %v3667, %v3783
  %v3816 = vmul.f32 %v3668, %v3783
  %v3817 = vmul.f32 %v3669, %v3783
  %v3818 = vmul.f32 %v3670, %v3783
  %v3819 = vmul.f32 %v3671, %v3783
  %v3820 = vmul.f32 %v3672, %v3783
  %v3821 = vmul.f32 %v3673, %v3783
  %v3822 = vmul.f32 %v3674, %v3793
  %v3823 = vmul.f32 %v3675, %v3793
  %v3824 = vmul.f32 %v3676, %v3793
  %v3825 = vmul.f32 %v3677, %v3793
  %v3826 = vmul.f32 %v3678, %v3793
  %v3827 = vmul.f32 %v3679, %v3793
  %v3828 = vmul.f32 %v3680, %v3793
  %v3829 = vmul.f32 %v3681, %v3793
  %v3830 = vmul.f32 %v3682, %v3803
  %v3831 = vmul.f32 %v3683, %v3803
  %v3832 = vmul.f32 %v3684, %v3803
  %v3833 = vmul.f32 %v3685, %v3803
  %v3834 = vmul.f32 %v3686, %v3803
  %v3835 = vmul.f32 %v3687, %v3803
  %v3836 = vmul.f32 %v3688, %v3803
  %v3837 = vmul.f32 %v3689, %v3803
  %v3838 = vmul.f32 %v3690, %v3813
  %v3839 = vmul.f32 %v3691, %v3813
  %v3840 = vmul.f32 %v3692, %v3813
  %v3841 = vmul.f32 %v3693, %v3813
  %v3842 = vmul.f32 %v3694, %v3813
  %v3843 = vmul.f32 %v3695, %v3813
  %v3844 = vmul.f32 %v3696, %v3813
  %v3845 = vmul.f32 %v3697, %v3813
  %v3846 = vpack.c.bf16 %v3815, %v3814
  %v3847 = vpack.c.bf16 %v3817, %v3816
  %v3848 = vpack.c.bf16 %v3819, %v3818
  %v3849 = vpack.c.bf16 %v3821, %v3820
  %v3850 = vpack.c.bf16 %v3823, %v3822
  %v3851 = vpack.c.bf16 %v3825, %v3824
  %v3852 = vpack.c.bf16 %v3827, %v3826
  %v3853 = vpack.c.bf16 %v3829, %v3828
  %v3854 = vpack.c.bf16 %v3831, %v3830
  %v3855 = vpack.c.bf16 %v3833, %v3832
  %v3856 = vpack.c.bf16 %v3835, %v3834
  %v3857 = vpack.c.bf16 %v3837, %v3836
  %v3858 = vpack.c.bf16 %v3839, %v3838
  %v3859 = vpack.c.bf16 %v3841, %v3840
  %v3860 = vpack.c.bf16 %v3843, %v3842
  %v3861 = vpack.c.bf16 %v3845, %v3844
  %v3862 = vunpack.c.l.bf16 %v1320
  %v3863 = vunpack.c.h.bf16 %v1320
  %v3864 = vunpack.c.l.bf16 %v1321
  %v3865 = vunpack.c.h.bf16 %v1321
  %v3866 = vunpack.c.l.bf16 %v1322
  %v3867 = vunpack.c.h.bf16 %v1322
  %v3868 = vunpack.c.l.bf16 %v1323
  %v3869 = vunpack.c.h.bf16 %v1323
  %v3870 = vunpack.c.l.bf16 %v1324
  %v3871 = vunpack.c.h.bf16 %v1324
  %v3872 = vunpack.c.l.bf16 %v1325
  %v3873 = vunpack.c.h.bf16 %v1325
  %v3874 = vunpack.c.l.bf16 %v1326
  %v3875 = vunpack.c.h.bf16 %v1326
  %v3876 = vunpack.c.l.bf16 %v1327
  %v3877 = vunpack.c.h.bf16 %v1327
  %v3878 = vunpack.c.l.bf16 %v1328
  %v3879 = vunpack.c.h.bf16 %v1328
  %v3880 = vunpack.c.l.bf16 %v1329
  %v3881 = vunpack.c.h.bf16 %v1329
  %v3882 = vunpack.c.l.bf16 %v1330
  %v3883 = vunpack.c.h.bf16 %v1330
  %v3884 = vunpack.c.l.bf16 %v1331
  %v3885 = vunpack.c.h.bf16 %v1331
  %v3886 = vunpack.c.l.bf16 %v1332
  %v3887 = vunpack.c.h.bf16 %v1332
  %v3888 = vunpack.c.l.bf16 %v1333
  %v3889 = vunpack.c.h.bf16 %v1333
  %v3890 = vunpack.c.l.bf16 %v1334
  %v3891 = vunpack.c.h.bf16 %v1334
  %v3892 = vunpack.c.l.bf16 %v1335
  %v3893 = vunpack.c.h.bf16 %v1335
  %v3894 = vunpack.c.l.bf16 %v3846
  %v3895 = vunpack.c.h.bf16 %v3846
  %v3896 = vunpack.c.l.bf16 %v3847
  %v3897 = vunpack.c.h.bf16 %v3847
  %v3898 = vunpack.c.l.bf16 %v3848
  %v3899 = vunpack.c.h.bf16 %v3848
  %v3900 = vunpack.c.l.bf16 %v3849
  %v3901 = vunpack.c.h.bf16 %v3849
  %v3902 = vunpack.c.l.bf16 %v3850
  %v3903 = vunpack.c.h.bf16 %v3850
  %v3904 = vunpack.c.l.bf16 %v3851
  %v3905 = vunpack.c.h.bf16 %v3851
  %v3906 = vunpack.c.l.bf16 %v3852
  %v3907 = vunpack.c.h.bf16 %v3852
  %v3908 = vunpack.c.l.bf16 %v3853
  %v3909 = vunpack.c.h.bf16 %v3853
  %v3910 = vunpack.c.l.bf16 %v3854
  %v3911 = vunpack.c.h.bf16 %v3854
  %v3912 = vunpack.c.l.bf16 %v3855
  %v3913 = vunpack.c.h.bf16 %v3855
  %v3914 = vunpack.c.l.bf16 %v3856
  %v3915 = vunpack.c.h.bf16 %v3856
  %v3916 = vunpack.c.l.bf16 %v3857
  %v3917 = vunpack.c.h.bf16 %v3857
  %v3918 = vunpack.c.l.bf16 %v3858
  %v3919 = vunpack.c.h.bf16 %v3858
  %v3920 = vunpack.c.l.bf16 %v3859
  %v3921 = vunpack.c.h.bf16 %v3859
  %v3922 = vunpack.c.l.bf16 %v3860
  %v3923 = vunpack.c.h.bf16 %v3860
  %v3924 = vunpack.c.l.bf16 %v3861
  %v3925 = vunpack.c.h.bf16 %v3861
  %v3926 = vmul.f32 %v3862, %v3894
  %v3927 = vmul.f32 %v3863, %v3895
  %v3928 = vmul.f32 %v3864, %v3896
  %v3929 = vmul.f32 %v3865, %v3897
  %v3930 = vmul.f32 %v3866, %v3898
  %v3931 = vmul.f32 %v3867, %v3899
  %v3932 = vmul.f32 %v3868, %v3900
  %v3933 = vmul.f32 %v3869, %v3901
  %v3934 = vmul.f32 %v3870, %v3902
  %v3935 = vmul.f32 %v3871, %v3903
  %v3936 = vmul.f32 %v3872, %v3904
  %v3937 = vmul.f32 %v3873, %v3905
  %v3938 = vmul.f32 %v3874, %v3906
  %v3939 = vmul.f32 %v3875, %v3907
  %v3940 = vmul.f32 %v3876, %v3908
  %v3941 = vmul.f32 %v3877, %v3909
  %v3942 = vmul.f32 %v3878, %v3910
  %v3943 = vmul.f32 %v3879, %v3911
  %v3944 = vmul.f32 %v3880, %v3912
  %v3945 = vmul.f32 %v3881, %v3913
  %v3946 = vmul.f32 %v3882, %v3914
  %v3947 = vmul.f32 %v3883, %v3915
  %v3948 = vmul.f32 %v3884, %v3916
  %v3949 = vmul.f32 %v3885, %v3917
  %v3950 = vmul.f32 %v3886, %v3918
  %v3951 = vmul.f32 %v3887, %v3919
  %v3952 = vmul.f32 %v3888, %v3920
  %v3953 = vmul.f32 %v3889, %v3921
  %v3954 = vmul.f32 %v3890, %v3922
  %v3955 = vmul.f32 %v3891, %v3923
  %v3956 = vmul.f32 %v3892, %v3924
  %v3957 = vmul.f32 %v3893, %v3925
  %v3958 = vpack.c.bf16 %v3927, %v3926
  %v3959 = vpack.c.bf16 %v3929, %v3928
  %v3960 = vpack.c.bf16 %v3931, %v3930
  %v3961 = vpack.c.bf16 %v3933, %v3932
  %v3962 = vpack.c.bf16 %v3935, %v3934
  %v3963 = vpack.c.bf16 %v3937, %v3936
  %v3964 = vpack.c.bf16 %v3939, %v3938
  %v3965 = vpack.c.bf16 %v3941, %v3940
  %v3966 = vpack.c.bf16 %v3943, %v3942
  %v3967 = vpack.c.bf16 %v3945, %v3944
  %v3968 = vpack.c.bf16 %v3947, %v3946
  %v3969 = vpack.c.bf16 %v3949, %v3948
  %v3970 = vpack.c.bf16 %v3951, %v3950
  %v3971 = vpack.c.bf16 %v3953, %v3952
  %v3972 = vpack.c.bf16 %v3955, %v3954
  %v3973 = vpack.c.bf16 %v3957, %v3956
  %v3974 = vunpack.c.l.bf16 %v3958
  %v3975 = vunpack.c.h.bf16 %v3958
  %v3976 = vunpack.c.l.bf16 %v3959
  %v3977 = vunpack.c.h.bf16 %v3959
  %v3978 = vunpack.c.l.bf16 %v3960
  %v3979 = vunpack.c.h.bf16 %v3960
  %v3980 = vunpack.c.l.bf16 %v3961
  %v3981 = vunpack.c.h.bf16 %v3961
  %v3982 = vunpack.c.l.bf16 %v3962
  %v3983 = vunpack.c.h.bf16 %v3962
  %v3984 = vunpack.c.l.bf16 %v3963
  %v3985 = vunpack.c.h.bf16 %v3963
  %v3986 = vunpack.c.l.bf16 %v3964
  %v3987 = vunpack.c.h.bf16 %v3964
  %v3988 = vunpack.c.l.bf16 %v3965
  %v3989 = vunpack.c.h.bf16 %v3965
  %v3990 = vunpack.c.l.bf16 %v3966
  %v3991 = vunpack.c.h.bf16 %v3966
  %v3992 = vunpack.c.l.bf16 %v3967
  %v3993 = vunpack.c.h.bf16 %v3967
  %v3994 = vunpack.c.l.bf16 %v3968
  %v3995 = vunpack.c.h.bf16 %v3968
  %v3996 = vunpack.c.l.bf16 %v3969
  %v3997 = vunpack.c.h.bf16 %v3969
  %v3998 = vunpack.c.l.bf16 %v3970
  %v3999 = vunpack.c.h.bf16 %v3970
  %v4000 = vunpack.c.l.bf16 %v3971
  %v4001 = vunpack.c.h.bf16 %v3971
  %v4002 = vunpack.c.l.bf16 %v3972
  %v4003 = vunpack.c.h.bf16 %v3972
  %v4004 = vunpack.c.l.bf16 %v3973
  %v4005 = vunpack.c.h.bf16 %v3973
  %v4006 = vunpack.c.l.bf16 %v1336
  %v4007 = vunpack.c.h.bf16 %v1336
  %v4008 = vunpack.c.l.bf16 %v1337
  %v4009 = vunpack.c.h.bf16 %v1337
  %v4010 = vunpack.c.l.bf16 %v1338
  %v4011 = vunpack.c.h.bf16 %v1338
  %v4012 = vunpack.c.l.bf16 %v1339
  %v4013 = vunpack.c.h.bf16 %v1339
  %v4014 = vunpack.c.l.bf16 %v1340
  %v4015 = vunpack.c.h.bf16 %v1340
  %v4016 = vunpack.c.l.bf16 %v1341
  %v4017 = vunpack.c.h.bf16 %v1341
  %v4018 = vunpack.c.l.bf16 %v1342
  %v4019 = vunpack.c.h.bf16 %v1342
  %v4020 = vunpack.c.l.bf16 %v1343
  %v4021 = vunpack.c.h.bf16 %v1343
  %v4022 = vunpack.c.l.bf16 %v1344
  %v4023 = vunpack.c.h.bf16 %v1344
  %v4024 = vunpack.c.l.bf16 %v1345
  %v4025 = vunpack.c.h.bf16 %v1345
  %v4026 = vunpack.c.l.bf16 %v1346
  %v4027 = vunpack.c.h.bf16 %v1346
  %v4028 = vunpack.c.l.bf16 %v1347
  %v4029 = vunpack.c.h.bf16 %v1347
  %v4030 = vunpack.c.l.bf16 %v1348
  %v4031 = vunpack.c.h.bf16 %v1348
  %v4032 = vunpack.c.l.bf16 %v1349
  %v4033 = vunpack.c.h.bf16 %v1349
  %v4034 = vunpack.c.l.bf16 %v1350
  %v4035 = vunpack.c.h.bf16 %v1350
  %v4036 = vunpack.c.l.bf16 %v1351
  %v4037 = vunpack.c.h.bf16 %v1351
  %v4038 = vadd.f32 %v3974, %v4006
  %v4039 = vadd.f32 %v3975, %v4007
  %v4040 = vadd.f32 %v3976, %v4008
  %v4041 = vadd.f32 %v3977, %v4009
  %v4042 = vadd.f32 %v3978, %v4010
  %v4043 = vadd.f32 %v3979, %v4011
  %v4044 = vadd.f32 %v3980, %v4012
  %v4045 = vadd.f32 %v3981, %v4013
  %v4046 = vadd.f32 %v3982, %v4014
  %v4047 = vadd.f32 %v3983, %v4015
  %v4048 = vadd.f32 %v3984, %v4016
  %v4049 = vadd.f32 %v3985, %v4017
  %v4050 = vadd.f32 %v3986, %v4018
  %v4051 = vadd.f32 %v3987, %v4019
  %v4052 = vadd.f32 %v3988, %v4020
  %v4053 = vadd.f32 %v3989, %v4021
  %v4054 = vadd.f32 %v3990, %v4022
  %v4055 = vadd.f32 %v3991, %v4023
  %v4056 = vadd.f32 %v3992, %v4024
  %v4057 = vadd.f32 %v3993, %v4025
  %v4058 = vadd.f32 %v3994, %v4026
  %v4059 = vadd.f32 %v3995, %v4027
  %v4060 = vadd.f32 %v3996, %v4028
  %v4061 = vadd.f32 %v3997, %v4029
  %v4062 = vadd.f32 %v3998, %v4030
  %v4063 = vadd.f32 %v3999, %v4031
  %v4064 = vadd.f32 %v4000, %v4032
  %v4065 = vadd.f32 %v4001, %v4033
  %v4066 = vadd.f32 %v4002, %v4034
  %v4067 = vadd.f32 %v4003, %v4035
  %v4068 = vadd.f32 %v4004, %v4036
  %v4069 = vadd.f32 %v4005, %v4037
  %v4070 = vpack.c.bf16 %v4039, %v4038
  %v4071 = vpack.c.bf16 %v4041, %v4040
  %v4072 = vpack.c.bf16 %v4043, %v4042
  %v4073 = vpack.c.bf16 %v4045, %v4044
  %v4074 = vpack.c.bf16 %v4047, %v4046
  %v4075 = vpack.c.bf16 %v4049, %v4048
  %v4076 = vpack.c.bf16 %v4051, %v4050
  %v4077 = vpack.c.bf16 %v4053, %v4052
  %v4078 = vpack.c.bf16 %v4055, %v4054
  %v4079 = vpack.c.bf16 %v4057, %v4056
  %v4080 = vpack.c.bf16 %v4059, %v4058
  %v4081 = vpack.c.bf16 %v4061, %v4060
  %v4082 = vpack.c.bf16 %v4063, %v4062
  %v4083 = vpack.c.bf16 %v4065, %v4064
  %v4084 = vpack.c.bf16 %v4067, %v4066
  %v4085 = vpack.c.bf16 %v4069, %v4068
  %v4086 = vunpack.c.l.bf16 %v4070
  %v4087 = vunpack.c.h.bf16 %v4070
  %v4088 = vunpack.c.l.bf16 %v4071
  %v4089 = vunpack.c.h.bf16 %v4071
  %v4090 = vunpack.c.l.bf16 %v4072
  %v4091 = vunpack.c.h.bf16 %v4072
  %v4092 = vunpack.c.l.bf16 %v4073
  %v4093 = vunpack.c.h.bf16 %v4073
  %v4094 = vunpack.c.l.bf16 %v4074
  %v4095 = vunpack.c.h.bf16 %v4074
  %v4096 = vunpack.c.l.bf16 %v4075
  %v4097 = vunpack.c.h.bf16 %v4075
  %v4098 = vunpack.c.l.bf16 %v4076
  %v4099 = vunpack.c.h.bf16 %v4076
  %v4100 = vunpack.c.l.bf16 %v4077
  %v4101 = vunpack.c.h.bf16 %v4077
  %v4102 = vunpack.c.l.bf16 %v4078
  %v4103 = vunpack.c.h.bf16 %v4078
  %v4104 = vunpack.c.l.bf16 %v4079
  %v4105 = vunpack.c.h.bf16 %v4079
  %v4106 = vunpack.c.l.bf16 %v4080
  %v4107 = vunpack.c.h.bf16 %v4080
  %v4108 = vunpack.c.l.bf16 %v4081
  %v4109 = vunpack.c.h.bf16 %v4081
  %v4110 = vunpack.c.l.bf16 %v4082
  %v4111 = vunpack.c.h.bf16 %v4082
  %v4112 = vunpack.c.l.bf16 %v4083
  %v4113 = vunpack.c.h.bf16 %v4083
  %v4114 = vunpack.c.l.bf16 %v4084
  %v4115 = vunpack.c.h.bf16 %v4084
  %v4116 = vunpack.c.l.bf16 %v4085
  %v4117 = vunpack.c.h.bf16 %v4085
  %v4118 = vmax.f32 %v4086, 0.0
  %v4119 = vmax.f32 %v4087, 0.0
  %v4120 = vmax.f32 %v4088, 0.0
  %v4121 = vmax.f32 %v4089, 0.0
  %v4122 = vmax.f32 %v4090, 0.0
  %v4123 = vmax.f32 %v4091, 0.0
  %v4124 = vmax.f32 %v4092, 0.0
  %v4125 = vmax.f32 %v4093, 0.0
  %v4126 = vmax.f32 %v4094, 0.0
  %v4127 = vmax.f32 %v4095, 0.0
  %v4128 = vmax.f32 %v4096, 0.0
  %v4129 = vmax.f32 %v4097, 0.0
  %v4130 = vmax.f32 %v4098, 0.0
  %v4131 = vmax.f32 %v4099, 0.0
  %v4132 = vmax.f32 %v4100, 0.0
  %v4133 = vmax.f32 %v4101, 0.0
  %v4134 = vmax.f32 %v4102, 0.0
  %v4135 = vmax.f32 %v4103, 0.0
  %v4136 = vmax.f32 %v4104, 0.0
  %v4137 = vmax.f32 %v4105, 0.0
  %v4138 = vmax.f32 %v4106, 0.0
  %v4139 = vmax.f32 %v4107, 0.0
  %v4140 = vmax.f32 %v4108, 0.0
  %v4141 = vmax.f32 %v4109, 0.0
  %v4142 = vmax.f32 %v4110, 0.0
  %v4143 = vmax.f32 %v4111, 0.0
  %v4144 = vmax.f32 %v4112, 0.0
  %v4145 = vmax.f32 %v4113, 0.0
  %v4146 = vmax.f32 %v4114, 0.0
  %v4147 = vmax.f32 %v4115, 0.0
  %v4148 = vmax.f32 %v4116, 0.0
  %v4149 = vmax.f32 %v4117, 0.0
  %v4150 = vpack.c.bf16 %v4126, %v4118
  %v4151 = vpack.c.bf16 %v4127, %v4119
  %v4152 = vpack.c.bf16 %v4128, %v4120
  %v4153 = vpack.c.bf16 %v4129, %v4121
  %v4154 = vpack.c.bf16 %v4130, %v4122
  %v4155 = vpack.c.bf16 %v4131, %v4123
  %v4156 = vpack.c.bf16 %v4132, %v4124
  %v4157 = vpack.c.bf16 %v4133, %v4125
  %v4158 = vpack.c.bf16 %v4142, %v4134
  %v4159 = vpack.c.bf16 %v4143, %v4135
  %v4160 = vpack.c.bf16 %v4144, %v4136
  %v4161 = vpack.c.bf16 %v4145, %v4137
  %v4162 = vpack.c.bf16 %v4146, %v4138
  %v4163 = vpack.c.bf16 %v4147, %v4139
  %v4164 = vpack.c.bf16 %v4148, %v4140
  %v4165 = vpack.c.bf16 %v4149, %v4141
  %4166 = vrot.lane.b32.xlu0 %v1975, 32
  %v4167 = vpop.permute.xlu0 %4166
  %4168 = vrot.lane.b32.xlu0 %v1976, 32
  %v4169 = vpop.permute.xlu0 %4168
  %4172 = vxpose.xlu0.c.b16.start [1/8] %v4167, 128
  %4173 = vxpose.xlu0.c.b16.cont [2/8] %v4169, 128
  %4174 = vxpose.xlu0.c.b16.cont [3/8] 0, 128
  %4175 = vxpose.xlu0.c.b16.cont [4/8] 0, 128
  %4176 = vxpose.xlu0.c.b16.cont [5/8] 0, 128
  %4177 = vxpose.xlu0.c.b16.cont [6/8] 0, 128
  %4178 = vxpose.xlu0.c.b16.cont [7/8] 0, 128
  %4179 = vxpose.xlu0.c.b16.end [8/8] 0, 128
  %v4180 = vpop.trf.xlu0
  %v4181 = vpop.trf.xlu0
  %v4182 = vpop.trf.xlu0
  %v4183 = vpop.trf.xlu0
  %v4184 = vpop.trf.xlu0
  %v4185 = vpop.trf.xlu0
  %v4186 = vpop.trf.xlu0
  %v4187 = vpop.trf.xlu0
  %v4189 = vsel %vm1995, %v4180, 0
  %v4192 = vsel %vm1995, %v4181, 0
  %4194 = vmatpush.bf16.msra.mxu0 0
  %4195 = vmatpush.bf16.msra.mxu0 0
  %4196 = vmatpush.bf16.msra.mxu0 0
  %4197 = vmatpush.bf16.msra.mxu0 0
  %4198 = vmatpush.bf16.msra.mxu0 0
  %4199 = vmatpush.bf16.msra.mxu0 0
  %4200 = vmatpush.bf16.msra.mxu0 %v4158
  %4201 = vmatpush.bf16.msra.mxu0 %v4150
  %4202 = vmatmul.bf16.gmra.mxu0 %v4189
  %v4203 = vpop.f32.mrf.mxu0
  %v4204 = vadd.f32 0.0, %v4203
  %v4205 = vpop.f32.mrf.mxu0
  %v4206 = vadd.f32 0.0, %v4205
  %4207 = vmatmul.bf16.gmra.mxu0 %v4192
  %v4208 = vpop.f32.mrf.mxu0
  %v4209 = vadd.f32 0.0, %v4208
  %v4210 = vpop.f32.mrf.mxu0
  %v4211 = vadd.f32 0.0, %v4210
  %4212 = vdwg.mxu0
  %4213 = vmatpush.bf16.msra.mxu0 0
  %4214 = vmatpush.bf16.msra.mxu0 0
  %4215 = vmatpush.bf16.msra.mxu0 0
  %4216 = vmatpush.bf16.msra.mxu0 0
  %4217 = vmatpush.bf16.msra.mxu0 0
  %4218 = vmatpush.bf16.msra.mxu0 0
  %4219 = vmatpush.bf16.msra.mxu0 %v4159
  %4220 = vmatpush.bf16.msra.mxu0 %v4151
  %4221 = vmatmul.bf16.gmra.mxu0 %v4189
  %v4222 = vpop.f32.mrf.mxu0
  %v4223 = vadd.f32 0.0, %v4222
  %v4224 = vpop.f32.mrf.mxu0
  %v4225 = vadd.f32 0.0, %v4224
  %4226 = vmatmul.bf16.gmra.mxu0 %v4192
  %v4227 = vpop.f32.mrf.mxu0
  %v4228 = vadd.f32 0.0, %v4227
  %v4229 = vpop.f32.mrf.mxu0
  %v4230 = vadd.f32 0.0, %v4229
  %4231 = vdwg.mxu0
  %4232 = vmatpush.bf16.msra.mxu0 0
  %4233 = vmatpush.bf16.msra.mxu0 0
  %4234 = vmatpush.bf16.msra.mxu0 0
  %4235 = vmatpush.bf16.msra.mxu0 0
  %4236 = vmatpush.bf16.msra.mxu0 0
  %4237 = vmatpush.bf16.msra.mxu0 0
  %4238 = vmatpush.bf16.msra.mxu0 %v4160
  %4239 = vmatpush.bf16.msra.mxu0 %v4152
  %4240 = vmatmul.bf16.gmra.mxu0 %v4189
  %v4241 = vpop.f32.mrf.mxu0
  %v4242 = vadd.f32 0.0, %v4241
  %v4243 = vpop.f32.mrf.mxu0
  %v4244 = vadd.f32 0.0, %v4243
  %4245 = vmatmul.bf16.gmra.mxu0 %v4192
  %v4246 = vpop.f32.mrf.mxu0
  %v4247 = vadd.f32 0.0, %v4246
  %v4248 = vpop.f32.mrf.mxu0
  %v4249 = vadd.f32 0.0, %v4248
  %4250 = vdwg.mxu0
  %4251 = vmatpush.bf16.msra.mxu0 0
  %4252 = vmatpush.bf16.msra.mxu0 0
  %4253 = vmatpush.bf16.msra.mxu0 0
  %4254 = vmatpush.bf16.msra.mxu0 0
  %4255 = vmatpush.bf16.msra.mxu0 0
  %4256 = vmatpush.bf16.msra.mxu0 0
  %4257 = vmatpush.bf16.msra.mxu0 %v4161
  %4258 = vmatpush.bf16.msra.mxu0 %v4153
  %4259 = vmatmul.bf16.gmra.mxu0 %v4189
  %v4260 = vpop.f32.mrf.mxu0
  %v4261 = vadd.f32 0.0, %v4260
  %v4262 = vpop.f32.mrf.mxu0
  %v4263 = vadd.f32 0.0, %v4262
  %4264 = vmatmul.bf16.gmra.mxu0 %v4192
  %v4265 = vpop.f32.mrf.mxu0
  %v4266 = vadd.f32 0.0, %v4265
  %v4267 = vpop.f32.mrf.mxu0
  %v4268 = vadd.f32 0.0, %v4267
  %4269 = vdwg.mxu0
  %4270 = vmatpush.bf16.msra.mxu0 0
  %4271 = vmatpush.bf16.msra.mxu0 0
  %4272 = vmatpush.bf16.msra.mxu0 0
  %4273 = vmatpush.bf16.msra.mxu0 0
  %4274 = vmatpush.bf16.msra.mxu0 0
  %4275 = vmatpush.bf16.msra.mxu0 0
  %4276 = vmatpush.bf16.msra.mxu0 %v4162
  %4277 = vmatpush.bf16.msra.mxu0 %v4154
  %4278 = vmatmul.bf16.gmra.mxu0 %v4189
  %v4279 = vpop.f32.mrf.mxu0
  %v4280 = vadd.f32 0.0, %v4279
  %v4281 = vpop.f32.mrf.mxu0
  %v4282 = vadd.f32 0.0, %v4281
  %4283 = vmatmul.bf16.gmra.mxu0 %v4192
  %v4284 = vpop.f32.mrf.mxu0
  %v4285 = vadd.f32 0.0, %v4284
  %v4286 = vpop.f32.mrf.mxu0
  %v4287 = vadd.f32 0.0, %v4286
  %4288 = vdwg.mxu0
  %4289 = vmatpush.bf16.msra.mxu0 0
  %4290 = vmatpush.bf16.msra.mxu0 0
  %4291 = vmatpush.bf16.msra.mxu0 0
  %4292 = vmatpush.bf16.msra.mxu0 0
  %4293 = vmatpush.bf16.msra.mxu0 0
  %4294 = vmatpush.bf16.msra.mxu0 0
  %4295 = vmatpush.bf16.msra.mxu0 %v4163
  %4296 = vmatpush.bf16.msra.mxu0 %v4155
  %4297 = vmatmul.bf16.gmra.mxu0 %v4189
  %v4298 = vpop.f32.mrf.mxu0
  %v4299 = vadd.f32 0.0, %v4298
  %v4300 = vpop.f32.mrf.mxu0
  %v4301 = vadd.f32 0.0, %v4300
  %4302 = vmatmul.bf16.gmra.mxu0 %v4192
  %v4303 = vpop.f32.mrf.mxu0
  %v4304 = vadd.f32 0.0, %v4303
  %v4305 = vpop.f32.mrf.mxu0
  %v4306 = vadd.f32 0.0, %v4305
  %4307 = vdwg.mxu0
  %4308 = vmatpush.bf16.msra.mxu0 0
  %4309 = vmatpush.bf16.msra.mxu0 0
  %4310 = vmatpush.bf16.msra.mxu0 0
  %4311 = vmatpush.bf16.msra.mxu0 0
  %4312 = vmatpush.bf16.msra.mxu0 0
  %4313 = vmatpush.bf16.msra.mxu0 0
  %4314 = vmatpush.bf16.msra.mxu0 %v4164
  %4315 = vmatpush.bf16.msra.mxu0 %v4156
  %4316 = vmatmul.bf16.gmra.mxu0 %v4189
  %v4317 = vpop.f32.mrf.mxu0
  %v4318 = vadd.f32 0.0, %v4317
  %v4319 = vpop.f32.mrf.mxu0
  %v4320 = vadd.f32 0.0, %v4319
  %4321 = vmatmul.bf16.gmra.mxu0 %v4192
  %v4322 = vpop.f32.mrf.mxu0
  %v4323 = vadd.f32 0.0, %v4322
  %v4324 = vpop.f32.mrf.mxu0
  %v4325 = vadd.f32 0.0, %v4324
  %4326 = vdwg.mxu0
  %4327 = vmatpush.bf16.msra.mxu0 0
  %4328 = vmatpush.bf16.msra.mxu0 0
  %4329 = vmatpush.bf16.msra.mxu0 0
  %4330 = vmatpush.bf16.msra.mxu0 0
  %4331 = vmatpush.bf16.msra.mxu0 0
  %4332 = vmatpush.bf16.msra.mxu0 0
  %4333 = vmatpush.bf16.msra.mxu0 %v4165
  %4334 = vmatpush.bf16.msra.mxu0 %v4157
  %4335 = vmatmul.bf16.gmra.mxu0 %v4189
  %v4336 = vpop.f32.mrf.mxu0
  %v4337 = vadd.f32 0.0, %v4336
  %v4338 = vpop.f32.mrf.mxu0
  %v4339 = vadd.f32 0.0, %v4338
  %4340 = vmatmul.bf16.gmra.mxu0 %v4192
  %v4341 = vpop.f32.mrf.mxu0
  %v4342 = vadd.f32 0.0, %v4341
  %v4343 = vpop.f32.mrf.mxu0
  %v4344 = vadd.f32 0.0, %v4343
  %4345 = vdwg.mxu0
  %v4346 = vadd.f32 %v2874, %v4204
  %v4347 = vadd.f32 %v2875, %v4223
  %v4348 = vadd.f32 %v2876, %v4242
  %v4349 = vadd.f32 %v2877, %v4261
  %v4350 = vadd.f32 %v2878, %v4280
  %v4351 = vadd.f32 %v2879, %v4299
  %v4352 = vadd.f32 %v2880, %v4318
  %v4353 = vadd.f32 %v2881, %v4337
  %v4354 = vadd.f32 %v2882, %v4206
  %v4355 = vadd.f32 %v2883, %v4225
  %v4356 = vadd.f32 %v2884, %v4244
  %v4357 = vadd.f32 %v2885, %v4263
  %v4358 = vadd.f32 %v2886, %v4282
  %v4359 = vadd.f32 %v2887, %v4301
  %v4360 = vadd.f32 %v2888, %v4320
  %v4361 = vadd.f32 %v2889, %v4339
  %v4362 = vadd.f32 %v2890, %v4209
  %v4363 = vadd.f32 %v2891, %v4228
  %v4364 = vadd.f32 %v2892, %v4247
  %v4365 = vadd.f32 %v2893, %v4266
  %v4366 = vadd.f32 %v2894, %v4285
  %v4367 = vadd.f32 %v2895, %v4304
  %v4368 = vadd.f32 %v2896, %v4323
  %v4369 = vadd.f32 %v2897, %v4342
  %v4370 = vadd.f32 %v2898, %v4211
  %v4371 = vadd.f32 %v2899, %v4230
  %v4372 = vadd.f32 %v2900, %v4249
  %v4373 = vadd.f32 %v2901, %v4268
  %v4374 = vadd.f32 %v2902, %v4287
  %v4375 = vadd.f32 %v2903, %v4306
  %v4376 = vadd.f32 %v2904, %v4325
  %v4377 = vadd.f32 %v2905, %v4344
  %v4378 = vadd.f32 %v4346, %v4347
  %v4379 = vadd.f32 %v4378, %v4348
  %v4380 = vadd.f32 %v4379, %v4349
  %v4381 = vadd.f32 %v4380, %v4350
  %v4382 = vadd.f32 %v4381, %v4351
  %v4383 = vadd.f32 %v4382, %v4352
  %v4384 = vadd.f32 %v4383, %v4353
  %4385 = vadd.xlane.f32.xlu0 %v4384
  %v4386 = vpop.xlane.xlu0 %4385
  %v4387 = vadd.f32 %v4354, %v4355
  %v4388 = vadd.f32 %v4387, %v4356
  %v4389 = vadd.f32 %v4388, %v4357
  %v4390 = vadd.f32 %v4389, %v4358
  %v4391 = vadd.f32 %v4390, %v4359
  %v4392 = vadd.f32 %v4391, %v4360
  %v4393 = vadd.f32 %v4392, %v4361
  %4394 = vadd.xlane.f32.xlu0 %v4393
  %v4395 = vpop.xlane.xlu0 %4394
  %v4396 = vadd.f32 %v4362, %v4363
  %v4397 = vadd.f32 %v4396, %v4364
  %v4398 = vadd.f32 %v4397, %v4365
  %v4399 = vadd.f32 %v4398, %v4366
  %v4400 = vadd.f32 %v4399, %v4367
  %v4401 = vadd.f32 %v4400, %v4368
  %v4402 = vadd.f32 %v4401, %v4369
  %4403 = vadd.xlane.f32.xlu0 %v4402
  %v4404 = vpop.xlane.xlu0 %4403
  %v4405 = vadd.f32 %v4370, %v4371
  %v4406 = vadd.f32 %v4405, %v4372
  %v4407 = vadd.f32 %v4406, %v4373
  %v4408 = vadd.f32 %v4407, %v4374
  %v4409 = vadd.f32 %v4408, %v4375
  %v4410 = vadd.f32 %v4409, %v4376
  %v4411 = vadd.f32 %v4410, %v4377
  %4412 = vadd.xlane.f32.xlu0 %v4411
  %v4413 = vpop.xlane.xlu0 %4412
  %v4414 = vmul.f32 %v4386, %v1462
  %v4415 = vmul.f32 %v4395, %v1462
  %v4416 = vmul.f32 %v4404, %v1462
  %v4417 = vmul.f32 %v4413, %v1462
  %v4418 = vsub.f32 %v4346, %v4414
  %v4419 = vsub.f32 %v4347, %v4414
  %v4420 = vsub.f32 %v4348, %v4414
  %v4421 = vsub.f32 %v4349, %v4414
  %v4422 = vsub.f32 %v4350, %v4414
  %v4423 = vsub.f32 %v4351, %v4414
  %v4424 = vsub.f32 %v4352, %v4414
  %v4425 = vsub.f32 %v4353, %v4414
  %v4426 = vsub.f32 %v4354, %v4415
  %v4427 = vsub.f32 %v4355, %v4415
  %v4428 = vsub.f32 %v4356, %v4415
  %v4429 = vsub.f32 %v4357, %v4415
  %v4430 = vsub.f32 %v4358, %v4415
  %v4431 = vsub.f32 %v4359, %v4415
  %v4432 = vsub.f32 %v4360, %v4415
  %v4433 = vsub.f32 %v4361, %v4415
  %v4434 = vsub.f32 %v4362, %v4416
  %v4435 = vsub.f32 %v4363, %v4416
  %v4436 = vsub.f32 %v4364, %v4416
  %v4437 = vsub.f32 %v4365, %v4416
  %v4438 = vsub.f32 %v4366, %v4416
  %v4439 = vsub.f32 %v4367, %v4416
  %v4440 = vsub.f32 %v4368, %v4416
  %v4441 = vsub.f32 %v4369, %v4416
  %v4442 = vsub.f32 %v4370, %v4417
  %v4443 = vsub.f32 %v4371, %v4417
  %v4444 = vsub.f32 %v4372, %v4417
  %v4445 = vsub.f32 %v4373, %v4417
  %v4446 = vsub.f32 %v4374, %v4417
  %v4447 = vsub.f32 %v4375, %v4417
  %v4448 = vsub.f32 %v4376, %v4417
  %v4449 = vsub.f32 %v4377, %v4417
  %v4450 = vmul.f32 %v4418, %v4418
  %v4451 = vmul.f32 %v4419, %v4419
  %v4452 = vmul.f32 %v4420, %v4420
  %v4453 = vmul.f32 %v4421, %v4421
  %v4454 = vmul.f32 %v4422, %v4422
  %v4455 = vmul.f32 %v4423, %v4423
  %v4456 = vmul.f32 %v4424, %v4424
  %v4457 = vmul.f32 %v4425, %v4425
  %v4458 = vmul.f32 %v4426, %v4426
  %v4459 = vmul.f32 %v4427, %v4427
  %v4460 = vmul.f32 %v4428, %v4428
  %v4461 = vmul.f32 %v4429, %v4429
  %v4462 = vmul.f32 %v4430, %v4430
  %v4463 = vmul.f32 %v4431, %v4431
  %v4464 = vmul.f32 %v4432, %v4432
  %v4465 = vmul.f32 %v4433, %v4433
  %v4466 = vmul.f32 %v4434, %v4434
  %v4467 = vmul.f32 %v4435, %v4435
  %v4468 = vmul.f32 %v4436, %v4436
  %v4469 = vmul.f32 %v4437, %v4437
  %v4470 = vmul.f32 %v4438, %v4438
  %v4471 = vmul.f32 %v4439, %v4439
  %v4472 = vmul.f32 %v4440, %v4440
  %v4473 = vmul.f32 %v4441, %v4441
  %v4474 = vmul.f32 %v4442, %v4442
  %v4475 = vmul.f32 %v4443, %v4443
  %v4476 = vmul.f32 %v4444, %v4444
  %v4477 = vmul.f32 %v4445, %v4445
  %v4478 = vmul.f32 %v4446, %v4446
  %v4479 = vmul.f32 %v4447, %v4447
  %v4480 = vmul.f32 %v4448, %v4448
  %v4481 = vmul.f32 %v4449, %v4449
  %v4482 = vadd.f32 %v4450, %v4451
  %v4483 = vadd.f32 %v4482, %v4452
  %v4484 = vadd.f32 %v4483, %v4453
  %v4485 = vadd.f32 %v4484, %v4454
  %v4486 = vadd.f32 %v4485, %v4455
  %v4487 = vadd.f32 %v4486, %v4456
  %v4488 = vadd.f32 %v4487, %v4457
  %4489 = vadd.xlane.f32.xlu0 %v4488
  %v4490 = vpop.xlane.xlu0 %4489
  %v4491 = vadd.f32 %v4458, %v4459
  %v4492 = vadd.f32 %v4491, %v4460
  %v4493 = vadd.f32 %v4492, %v4461
  %v4494 = vadd.f32 %v4493, %v4462
  %v4495 = vadd.f32 %v4494, %v4463
  %v4496 = vadd.f32 %v4495, %v4464
  %v4497 = vadd.f32 %v4496, %v4465
  %4498 = vadd.xlane.f32.xlu0 %v4497
  %v4499 = vpop.xlane.xlu0 %4498
  %v4500 = vadd.f32 %v4466, %v4467
  %v4501 = vadd.f32 %v4500, %v4468
  %v4502 = vadd.f32 %v4501, %v4469
  %v4503 = vadd.f32 %v4502, %v4470
  %v4504 = vadd.f32 %v4503, %v4471
  %v4505 = vadd.f32 %v4504, %v4472
  %v4506 = vadd.f32 %v4505, %v4473
  %4507 = vadd.xlane.f32.xlu0 %v4506
  %v4508 = vpop.xlane.xlu0 %4507
  %v4509 = vadd.f32 %v4474, %v4475
  %v4510 = vadd.f32 %v4509, %v4476
  %v4511 = vadd.f32 %v4510, %v4477
  %v4512 = vadd.f32 %v4511, %v4478
  %v4513 = vadd.f32 %v4512, %v4479
  %v4514 = vadd.f32 %v4513, %v4480
  %v4515 = vadd.f32 %v4514, %v4481
  %4516 = vadd.xlane.f32.xlu0 %v4515
  %v4517 = vpop.xlane.xlu0 %4516
  %v4518 = vmul.f32 %v4490, %v1462
  %v4519 = vmul.f32 %v4499, %v1462
  %v4520 = vmul.f32 %v4508, %v1462
  %v4521 = vmul.f32 %v4517, %v1462
  %v4522 = vadd.f32 %v4518, 1e-05
  %v4523 = vadd.f32 %v4519, 1e-05
  %v4524 = vadd.f32 %v4520, 1e-05
  %v4525 = vadd.f32 %v4521, 1e-05
  %v4526 = vrsqrt.pop %v4522
  %v4527 = vmul.f32 %v4526, %v4522
  %v4528 = vmul.f32 %v4527, %v4526
  %v4529 = vmul.f32 0.5, %v4528
  %v4530 = vsub.f32 1.5, %v4529
  %v4531 = vmul.f32 %v4526, %v4530
  %vm4532 = vweird.f32 %v4522
  %vm4533 = vweird.f32 %v4526
  %vm4534 = vmor %vm4532, %vm4533
  %v4535 = vsel %vm4534, %v4526, %v4531
  %v4536 = vrsqrt.pop %v4523
  %v4537 = vmul.f32 %v4536, %v4523
  %v4538 = vmul.f32 %v4537, %v4536
  %v4539 = vmul.f32 0.5, %v4538
  %v4540 = vsub.f32 1.5, %v4539
  %v4541 = vmul.f32 %v4536, %v4540
  %vm4542 = vweird.f32 %v4523
  %vm4543 = vweird.f32 %v4536
  %vm4544 = vmor %vm4542, %vm4543
  %v4545 = vsel %vm4544, %v4536, %v4541
  %v4546 = vrsqrt.pop %v4524
  %v4547 = vmul.f32 %v4546, %v4524
  %v4548 = vmul.f32 %v4547, %v4546
  %v4549 = vmul.f32 0.5, %v4548
  %v4550 = vsub.f32 1.5, %v4549
  %v4551 = vmul.f32 %v4546, %v4550
  %vm4552 = vweird.f32 %v4524
  %vm4553 = vweird.f32 %v4546
  %vm4554 = vmor %vm4552, %vm4553
  %v4555 = vsel %vm4554, %v4546, %v4551
  %v4556 = vrsqrt.pop %v4525
  %v4557 = vmul.f32 %v4556, %v4525
  %v4558 = vmul.f32 %v4557, %v4556
  %v4559 = vmul.f32 0.5, %v4558
  %v4560 = vsub.f32 1.5, %v4559
  %v4561 = vmul.f32 %v4556, %v4560
  %vm4562 = vweird.f32 %v4525
  %vm4563 = vweird.f32 %v4556
  %vm4564 = vmor %vm4562, %vm4563
  %v4565 = vsel %vm4564, %v4556, %v4561
  %v4566 = vmul.f32 %v4418, %v4535
  %v4567 = vmul.f32 %v4419, %v4535
  %v4568 = vmul.f32 %v4420, %v4535
  %v4569 = vmul.f32 %v4421, %v4535
  %v4570 = vmul.f32 %v4422, %v4535
  %v4571 = vmul.f32 %v4423, %v4535
  %v4572 = vmul.f32 %v4424, %v4535
  %v4573 = vmul.f32 %v4425, %v4535
  %v4574 = vmul.f32 %v4426, %v4545
  %v4575 = vmul.f32 %v4427, %v4545
  %v4576 = vmul.f32 %v4428, %v4545
  %v4577 = vmul.f32 %v4429, %v4545
  %v4578 = vmul.f32 %v4430, %v4545
  %v4579 = vmul.f32 %v4431, %v4545
  %v4580 = vmul.f32 %v4432, %v4545
  %v4581 = vmul.f32 %v4433, %v4545
  %v4582 = vmul.f32 %v4434, %v4555
  %v4583 = vmul.f32 %v4435, %v4555
  %v4584 = vmul.f32 %v4436, %v4555
  %v4585 = vmul.f32 %v4437, %v4555
  %v4586 = vmul.f32 %v4438, %v4555
  %v4587 = vmul.f32 %v4439, %v4555
  %v4588 = vmul.f32 %v4440, %v4555
  %v4589 = vmul.f32 %v4441, %v4555
  %v4590 = vmul.f32 %v4442, %v4565
  %v4591 = vmul.f32 %v4443, %v4565
  %v4592 = vmul.f32 %v4444, %v4565
  %v4593 = vmul.f32 %v4445, %v4565
  %v4594 = vmul.f32 %v4446, %v4565
  %v4595 = vmul.f32 %v4447, %v4565
  %v4596 = vmul.f32 %v4448, %v4565
  %v4597 = vmul.f32 %v4449, %v4565
  %v4598 = vpack.c.bf16 %v4567, %v4566
  %v4599 = vpack.c.bf16 %v4569, %v4568
  %v4600 = vpack.c.bf16 %v4571, %v4570
  %v4601 = vpack.c.bf16 %v4573, %v4572
  %v4602 = vpack.c.bf16 %v4575, %v4574
  %v4603 = vpack.c.bf16 %v4577, %v4576
  %v4604 = vpack.c.bf16 %v4579, %v4578
  %v4605 = vpack.c.bf16 %v4581, %v4580
  %v4606 = vpack.c.bf16 %v4583, %v4582
  %v4607 = vpack.c.bf16 %v4585, %v4584
  %v4608 = vpack.c.bf16 %v4587, %v4586
  %v4609 = vpack.c.bf16 %v4589, %v4588
  %v4610 = vpack.c.bf16 %v4591, %v4590
  %v4611 = vpack.c.bf16 %v4593, %v4592
  %v4612 = vpack.c.bf16 %v4595, %v4594
  %v4613 = vpack.c.bf16 %v4597, %v4596
  %v4614 = vunpack.c.l.bf16 %v1352
  %v4615 = vunpack.c.h.bf16 %v1352
  %v4616 = vunpack.c.l.bf16 %v1353
  %v4617 = vunpack.c.h.bf16 %v1353
  %v4618 = vunpack.c.l.bf16 %v1354
  %v4619 = vunpack.c.h.bf16 %v1354
  %v4620 = vunpack.c.l.bf16 %v1355
  %v4621 = vunpack.c.h.bf16 %v1355
  %v4622 = vunpack.c.l.bf16 %v1356
  %v4623 = vunpack.c.h.bf16 %v1356
  %v4624 = vunpack.c.l.bf16 %v1357
  %v4625 = vunpack.c.h.bf16 %v1357
  %v4626 = vunpack.c.l.bf16 %v1358
  %v4627 = vunpack.c.h.bf16 %v1358
  %v4628 = vunpack.c.l.bf16 %v1359
  %v4629 = vunpack.c.h.bf16 %v1359
  %v4630 = vunpack.c.l.bf16 %v1360
  %v4631 = vunpack.c.h.bf16 %v1360
  %v4632 = vunpack.c.l.bf16 %v1361
  %v4633 = vunpack.c.h.bf16 %v1361
  %v4634 = vunpack.c.l.bf16 %v1362
  %v4635 = vunpack.c.h.bf16 %v1362
  %v4636 = vunpack.c.l.bf16 %v1363
  %v4637 = vunpack.c.h.bf16 %v1363
  %v4638 = vunpack.c.l.bf16 %v1364
  %v4639 = vunpack.c.h.bf16 %v1364
  %v4640 = vunpack.c.l.bf16 %v1365
  %v4641 = vunpack.c.h.bf16 %v1365
  %v4642 = vunpack.c.l.bf16 %v1366
  %v4643 = vunpack.c.h.bf16 %v1366
  %v4644 = vunpack.c.l.bf16 %v1367
  %v4645 = vunpack.c.h.bf16 %v1367
  %v4646 = vunpack.c.l.bf16 %v4598
  %v4647 = vunpack.c.h.bf16 %v4598
  %v4648 = vunpack.c.l.bf16 %v4599
  %v4649 = vunpack.c.h.bf16 %v4599
  %v4650 = vunpack.c.l.bf16 %v4600
  %v4651 = vunpack.c.h.bf16 %v4600
  %v4652 = vunpack.c.l.bf16 %v4601
  %v4653 = vunpack.c.h.bf16 %v4601
  %v4654 = vunpack.c.l.bf16 %v4602
  %v4655 = vunpack.c.h.bf16 %v4602
  %v4656 = vunpack.c.l.bf16 %v4603
  %v4657 = vunpack.c.h.bf16 %v4603
  %v4658 = vunpack.c.l.bf16 %v4604
  %v4659 = vunpack.c.h.bf16 %v4604
  %v4660 = vunpack.c.l.bf16 %v4605
  %v4661 = vunpack.c.h.bf16 %v4605
  %v4662 = vunpack.c.l.bf16 %v4606
  %v4663 = vunpack.c.h.bf16 %v4606
  %v4664 = vunpack.c.l.bf16 %v4607
  %v4665 = vunpack.c.h.bf16 %v4607
  %v4666 = vunpack.c.l.bf16 %v4608
  %v4667 = vunpack.c.h.bf16 %v4608
  %v4668 = vunpack.c.l.bf16 %v4609
  %v4669 = vunpack.c.h.bf16 %v4609
  %v4670 = vunpack.c.l.bf16 %v4610
  %v4671 = vunpack.c.h.bf16 %v4610
  %v4672 = vunpack.c.l.bf16 %v4611
  %v4673 = vunpack.c.h.bf16 %v4611
  %v4674 = vunpack.c.l.bf16 %v4612
  %v4675 = vunpack.c.h.bf16 %v4612
  %v4676 = vunpack.c.l.bf16 %v4613
  %v4677 = vunpack.c.h.bf16 %v4613
  %v4678 = vmul.f32 %v4614, %v4646
  %v4679 = vmul.f32 %v4615, %v4647
  %v4680 = vmul.f32 %v4616, %v4648
  %v4681 = vmul.f32 %v4617, %v4649
  %v4682 = vmul.f32 %v4618, %v4650
  %v4683 = vmul.f32 %v4619, %v4651
  %v4684 = vmul.f32 %v4620, %v4652
  %v4685 = vmul.f32 %v4621, %v4653
  %v4686 = vmul.f32 %v4622, %v4654
  %v4687 = vmul.f32 %v4623, %v4655
  %v4688 = vmul.f32 %v4624, %v4656
  %v4689 = vmul.f32 %v4625, %v4657
  %v4690 = vmul.f32 %v4626, %v4658
  %v4691 = vmul.f32 %v4627, %v4659
  %v4692 = vmul.f32 %v4628, %v4660
  %v4693 = vmul.f32 %v4629, %v4661
  %v4694 = vmul.f32 %v4630, %v4662
  %v4695 = vmul.f32 %v4631, %v4663
  %v4696 = vmul.f32 %v4632, %v4664
  %v4697 = vmul.f32 %v4633, %v4665
  %v4698 = vmul.f32 %v4634, %v4666
  %v4699 = vmul.f32 %v4635, %v4667
  %v4700 = vmul.f32 %v4636, %v4668
  %v4701 = vmul.f32 %v4637, %v4669
  %v4702 = vmul.f32 %v4638, %v4670
  %v4703 = vmul.f32 %v4639, %v4671
  %v4704 = vmul.f32 %v4640, %v4672
  %v4705 = vmul.f32 %v4641, %v4673
  %v4706 = vmul.f32 %v4642, %v4674
  %v4707 = vmul.f32 %v4643, %v4675
  %v4708 = vmul.f32 %v4644, %v4676
  %v4709 = vmul.f32 %v4645, %v4677
  %v4710 = vpack.c.bf16 %v4679, %v4678
  %v4711 = vpack.c.bf16 %v4681, %v4680
  %v4712 = vpack.c.bf16 %v4683, %v4682
  %v4713 = vpack.c.bf16 %v4685, %v4684
  %v4714 = vpack.c.bf16 %v4687, %v4686
  %v4715 = vpack.c.bf16 %v4689, %v4688
  %v4716 = vpack.c.bf16 %v4691, %v4690
  %v4717 = vpack.c.bf16 %v4693, %v4692
  %v4718 = vpack.c.bf16 %v4695, %v4694
  %v4719 = vpack.c.bf16 %v4697, %v4696
  %v4720 = vpack.c.bf16 %v4699, %v4698
  %v4721 = vpack.c.bf16 %v4701, %v4700
  %v4722 = vpack.c.bf16 %v4703, %v4702
  %v4723 = vpack.c.bf16 %v4705, %v4704
  %v4724 = vpack.c.bf16 %v4707, %v4706
  %v4725 = vpack.c.bf16 %v4709, %v4708
  %v4726 = vunpack.c.l.bf16 %v4710
  %v4727 = vunpack.c.h.bf16 %v4710
  %v4728 = vunpack.c.l.bf16 %v4711
  %v4729 = vunpack.c.h.bf16 %v4711
  %v4730 = vunpack.c.l.bf16 %v4712
  %v4731 = vunpack.c.h.bf16 %v4712
  %v4732 = vunpack.c.l.bf16 %v4713
  %v4733 = vunpack.c.h.bf16 %v4713
  %v4734 = vunpack.c.l.bf16 %v4714
  %v4735 = vunpack.c.h.bf16 %v4714
  %v4736 = vunpack.c.l.bf16 %v4715
  %v4737 = vunpack.c.h.bf16 %v4715
  %v4738 = vunpack.c.l.bf16 %v4716
  %v4739 = vunpack.c.h.bf16 %v4716
  %v4740 = vunpack.c.l.bf16 %v4717
  %v4741 = vunpack.c.h.bf16 %v4717
  %v4742 = vunpack.c.l.bf16 %v4718
  %v4743 = vunpack.c.h.bf16 %v4718
  %v4744 = vunpack.c.l.bf16 %v4719
  %v4745 = vunpack.c.h.bf16 %v4719
  %v4746 = vunpack.c.l.bf16 %v4720
  %v4747 = vunpack.c.h.bf16 %v4720
  %v4748 = vunpack.c.l.bf16 %v4721
  %v4749 = vunpack.c.h.bf16 %v4721
  %v4750 = vunpack.c.l.bf16 %v4722
  %v4751 = vunpack.c.h.bf16 %v4722
  %v4752 = vunpack.c.l.bf16 %v4723
  %v4753 = vunpack.c.h.bf16 %v4723
  %v4754 = vunpack.c.l.bf16 %v4724
  %v4755 = vunpack.c.h.bf16 %v4724
  %v4756 = vunpack.c.l.bf16 %v4725
  %v4757 = vunpack.c.h.bf16 %v4725
  %v4758 = vunpack.c.l.bf16 %v1368
  %v4759 = vunpack.c.h.bf16 %v1368
  %v4760 = vunpack.c.l.bf16 %v1369
  %v4761 = vunpack.c.h.bf16 %v1369
  %v4762 = vunpack.c.l.bf16 %v1370
  %v4763 = vunpack.c.h.bf16 %v1370
  %v4764 = vunpack.c.l.bf16 %v1371
  %v4765 = vunpack.c.h.bf16 %v1371
  %v4766 = vunpack.c.l.bf16 %v1372
  %v4767 = vunpack.c.h.bf16 %v1372
  %v4768 = vunpack.c.l.bf16 %v1373
  %v4769 = vunpack.c.h.bf16 %v1373
  %v4770 = vunpack.c.l.bf16 %v1374
  %v4771 = vunpack.c.h.bf16 %v1374
  %v4772 = vunpack.c.l.bf16 %v1375
  %v4773 = vunpack.c.h.bf16 %v1375
  %v4774 = vunpack.c.l.bf16 %v1376
  %v4775 = vunpack.c.h.bf16 %v1376
  %v4776 = vunpack.c.l.bf16 %v1377
  %v4777 = vunpack.c.h.bf16 %v1377
  %v4778 = vunpack.c.l.bf16 %v1378
  %v4779 = vunpack.c.h.bf16 %v1378
  %v4780 = vunpack.c.l.bf16 %v1379
  %v4781 = vunpack.c.h.bf16 %v1379
  %v4782 = vunpack.c.l.bf16 %v1380
  %v4783 = vunpack.c.h.bf16 %v1380
  %v4784 = vunpack.c.l.bf16 %v1381
  %v4785 = vunpack.c.h.bf16 %v1381
  %v4786 = vunpack.c.l.bf16 %v1382
  %v4787 = vunpack.c.h.bf16 %v1382
  %v4788 = vunpack.c.l.bf16 %v1383
  %v4789 = vunpack.c.h.bf16 %v1383
  %v4790 = vadd.f32 %v4726, %v4758
  %v4791 = vadd.f32 %v4727, %v4759
  %v4792 = vadd.f32 %v4728, %v4760
  %v4793 = vadd.f32 %v4729, %v4761
  %v4794 = vadd.f32 %v4730, %v4762
  %v4795 = vadd.f32 %v4731, %v4763
  %v4796 = vadd.f32 %v4732, %v4764
  %v4797 = vadd.f32 %v4733, %v4765
  %v4798 = vadd.f32 %v4734, %v4766
  %v4799 = vadd.f32 %v4735, %v4767
  %v4800 = vadd.f32 %v4736, %v4768
  %v4801 = vadd.f32 %v4737, %v4769
  %v4802 = vadd.f32 %v4738, %v4770
  %v4803 = vadd.f32 %v4739, %v4771
  %v4804 = vadd.f32 %v4740, %v4772
  %v4805 = vadd.f32 %v4741, %v4773
  %v4806 = vadd.f32 %v4742, %v4774
  %v4807 = vadd.f32 %v4743, %v4775
  %v4808 = vadd.f32 %v4744, %v4776
  %v4809 = vadd.f32 %v4745, %v4777
  %v4810 = vadd.f32 %v4746, %v4778
  %v4811 = vadd.f32 %v4747, %v4779
  %v4812 = vadd.f32 %v4748, %v4780
  %v4813 = vadd.f32 %v4749, %v4781
  %v4814 = vadd.f32 %v4750, %v4782
  %v4815 = vadd.f32 %v4751, %v4783
  %v4816 = vadd.f32 %v4752, %v4784
  %v4817 = vadd.f32 %v4753, %v4785
  %v4818 = vadd.f32 %v4754, %v4786
  %v4819 = vadd.f32 %v4755, %v4787
  %v4820 = vadd.f32 %v4756, %v4788
  %v4821 = vadd.f32 %v4757, %v4789
  %v4822 = vpack.c.bf16 %v4791, %v4790
  %v4823 = vpack.c.bf16 %v4793, %v4792
  %v4824 = vpack.c.bf16 %v4795, %v4794
  %v4825 = vpack.c.bf16 %v4797, %v4796
  %v4826 = vpack.c.bf16 %v4799, %v4798
  %v4827 = vpack.c.bf16 %v4801, %v4800
  %v4828 = vpack.c.bf16 %v4803, %v4802
  %v4829 = vpack.c.bf16 %v4805, %v4804
  %v4830 = vpack.c.bf16 %v4807, %v4806
  %v4831 = vpack.c.bf16 %v4809, %v4808
  %v4832 = vpack.c.bf16 %v4811, %v4810
  %v4833 = vpack.c.bf16 %v4813, %v4812
  %v4834 = vpack.c.bf16 %v4815, %v4814
  %v4835 = vpack.c.bf16 %v4817, %v4816
  %v4836 = vpack.c.bf16 %v4819, %v4818
  %v4837 = vpack.c.bf16 %v4821, %v4820
  %v4838 = vunpack.c.l.bf16 %v4822
  %v4839 = vunpack.c.h.bf16 %v4822
  %v4840 = vunpack.c.l.bf16 %v4823
  %v4841 = vunpack.c.h.bf16 %v4823
  %v4842 = vunpack.c.l.bf16 %v4824
  %v4843 = vunpack.c.h.bf16 %v4824
  %v4844 = vunpack.c.l.bf16 %v4825
  %v4845 = vunpack.c.h.bf16 %v4825
  %v4846 = vunpack.c.l.bf16 %v4826
  %v4847 = vunpack.c.h.bf16 %v4826
  %v4848 = vunpack.c.l.bf16 %v4827
  %v4849 = vunpack.c.h.bf16 %v4827
  %v4850 = vunpack.c.l.bf16 %v4828
  %v4851 = vunpack.c.h.bf16 %v4828
  %v4852 = vunpack.c.l.bf16 %v4829
  %v4853 = vunpack.c.h.bf16 %v4829
  %v4854 = vunpack.c.l.bf16 %v4830
  %v4855 = vunpack.c.h.bf16 %v4830
  %v4856 = vunpack.c.l.bf16 %v4831
  %v4857 = vunpack.c.h.bf16 %v4831
  %v4858 = vunpack.c.l.bf16 %v4832
  %v4859 = vunpack.c.h.bf16 %v4832
  %v4860 = vunpack.c.l.bf16 %v4833
  %v4861 = vunpack.c.h.bf16 %v4833
  %v4862 = vunpack.c.l.bf16 %v4834
  %v4863 = vunpack.c.h.bf16 %v4834
  %v4864 = vunpack.c.l.bf16 %v4835
  %v4865 = vunpack.c.h.bf16 %v4835
  %v4866 = vunpack.c.l.bf16 %v4836
  %v4867 = vunpack.c.h.bf16 %v4836
  %v4868 = vunpack.c.l.bf16 %v4837
  %v4869 = vunpack.c.h.bf16 %v4837
  %v4870 = vmax.f32 %v4838, 0.0
  %v4871 = vmax.f32 %v4839, 0.0
  %v4872 = vmax.f32 %v4840, 0.0
  %v4873 = vmax.f32 %v4841, 0.0
  %v4874 = vmax.f32 %v4842, 0.0
  %v4875 = vmax.f32 %v4843, 0.0
  %v4876 = vmax.f32 %v4844, 0.0
  %v4877 = vmax.f32 %v4845, 0.0
  %v4878 = vmax.f32 %v4846, 0.0
  %v4879 = vmax.f32 %v4847, 0.0
  %v4880 = vmax.f32 %v4848, 0.0
  %v4881 = vmax.f32 %v4849, 0.0
  %v4882 = vmax.f32 %v4850, 0.0
  %v4883 = vmax.f32 %v4851, 0.0
  %v4884 = vmax.f32 %v4852, 0.0
  %v4885 = vmax.f32 %v4853, 0.0
  %v4886 = vmax.f32 %v4854, 0.0
  %v4887 = vmax.f32 %v4855, 0.0
  %v4888 = vmax.f32 %v4856, 0.0
  %v4889 = vmax.f32 %v4857, 0.0
  %v4890 = vmax.f32 %v4858, 0.0
  %v4891 = vmax.f32 %v4859, 0.0
  %v4892 = vmax.f32 %v4860, 0.0
  %v4893 = vmax.f32 %v4861, 0.0
  %v4894 = vmax.f32 %v4862, 0.0
  %v4895 = vmax.f32 %v4863, 0.0
  %v4896 = vmax.f32 %v4864, 0.0
  %v4897 = vmax.f32 %v4865, 0.0
  %v4898 = vmax.f32 %v4866, 0.0
  %v4899 = vmax.f32 %v4867, 0.0
  %v4900 = vmax.f32 %v4868, 0.0
  %v4901 = vmax.f32 %v4869, 0.0
  %v4902 = vpack.c.bf16 %v4878, %v4870
  %v4903 = vpack.c.bf16 %v4879, %v4871
  %v4904 = vpack.c.bf16 %v4880, %v4872
  %v4905 = vpack.c.bf16 %v4881, %v4873
  %v4906 = vpack.c.bf16 %v4882, %v4874
  %v4907 = vpack.c.bf16 %v4883, %v4875
  %v4908 = vpack.c.bf16 %v4884, %v4876
  %v4909 = vpack.c.bf16 %v4885, %v4877
  %v4910 = vpack.c.bf16 %v4894, %v4886
  %v4911 = vpack.c.bf16 %v4895, %v4887
  %v4912 = vpack.c.bf16 %v4896, %v4888
  %v4913 = vpack.c.bf16 %v4897, %v4889
  %v4914 = vpack.c.bf16 %v4898, %v4890
  %v4915 = vpack.c.bf16 %v4899, %v4891
  %v4916 = vpack.c.bf16 %v4900, %v4892
  %v4917 = vpack.c.bf16 %v4901, %v4893
  %v4918 = vunpack.c.h.b16 %v27
  %v4919 = vunpack.c.h.b16 %v28
  %v4920 = vunpack.c.h.b16 %v29
  %v4921 = vunpack.c.h.b16 %v30
  %v4922 = vpack.c.b16 %v4919, %v4918
  %v4923 = vpack.c.b16 %v4921, %v4920
  %4926 = vxpose.xlu0.c.b16.start [1/8] %v4922, 128
  %4927 = vxpose.xlu0.c.b16.cont [2/8] %v4923, 128
  %4928 = vxpose.xlu0.c.b16.cont [3/8] 0, 128
  %4929 = vxpose.xlu0.c.b16.cont [4/8] 0, 128
  %4930 = vxpose.xlu0.c.b16.cont [5/8] 0, 128
  %4931 = vxpose.xlu0.c.b16.cont [6/8] 0, 128
  %4932 = vxpose.xlu0.c.b16.cont [7/8] 0, 128
  %4933 = vxpose.xlu0.c.b16.end [8/8] 0, 128
  %v4934 = vpop.trf.xlu0
  %v4935 = vpop.trf.xlu0
  %v4936 = vpop.trf.xlu0
  %v4937 = vpop.trf.xlu0
  %v4938 = vpop.trf.xlu0
  %v4939 = vpop.trf.xlu0
  %v4940 = vpop.trf.xlu0
  %v4941 = vpop.trf.xlu0
  %v4943 = vsel %vm1995, %v4934, 0
  %v4946 = vsel %vm1995, %v4935, 0
  %4948 = vmatpush.bf16.msra.mxu0 0
  %4949 = vmatpush.bf16.msra.mxu0 0
  %4950 = vmatpush.bf16.msra.mxu0 0
  %4951 = vmatpush.bf16.msra.mxu0 0
  %4952 = vmatpush.bf16.msra.mxu0 0
  %4953 = vmatpush.bf16.msra.mxu0 0
  %4954 = vmatpush.bf16.msra.mxu0 %v4910
  %4955 = vmatpush.bf16.msra.mxu0 %v4902
  %4956 = vmatmul.bf16.gmra.mxu0 %v4943
  %v4957 = vpop.f32.mrf.mxu0
  %v4958 = vadd.f32 0.0, %v4957
  %v4959 = vpop.f32.mrf.mxu0
  %4960 = vmatmul.bf16.gmra.mxu0 %v4946
  %v4961 = vpop.f32.mrf.mxu0
  %v4962 = vpop.f32.mrf.mxu0
  %4963 = vdwg.mxu0
  %4964 = vmatpush.bf16.msra.mxu0 0
  %4965 = vmatpush.bf16.msra.mxu0 0
  %4966 = vmatpush.bf16.msra.mxu0 0
  %4967 = vmatpush.bf16.msra.mxu0 0
  %4968 = vmatpush.bf16.msra.mxu0 0
  %4969 = vmatpush.bf16.msra.mxu0 0
  %4970 = vmatpush.bf16.msra.mxu0 %v4911
  %4971 = vmatpush.bf16.msra.mxu0 %v4903
  %4972 = vmatmul.bf16.gmra.mxu0 %v4943
  %v4973 = vpop.f32.mrf.mxu0
  %v4974 = vadd.f32 0.0, %v4973
  %v4975 = vpop.f32.mrf.mxu0
  %4976 = vmatmul.bf16.gmra.mxu0 %v4946
  %v4977 = vpop.f32.mrf.mxu0
  %v4978 = vpop.f32.mrf.mxu0
  %4979 = vdwg.mxu0
  %4980 = vmatpush.bf16.msra.mxu0 0
  %4981 = vmatpush.bf16.msra.mxu0 0
  %4982 = vmatpush.bf16.msra.mxu0 0
  %4983 = vmatpush.bf16.msra.mxu0 0
  %4984 = vmatpush.bf16.msra.mxu0 0
  %4985 = vmatpush.bf16.msra.mxu0 0
  %4986 = vmatpush.bf16.msra.mxu0 %v4912
  %4987 = vmatpush.bf16.msra.mxu0 %v4904
  %4988 = vmatmul.bf16.gmra.mxu0 %v4943
  %v4989 = vpop.f32.mrf.mxu0
  %v4990 = vadd.f32 0.0, %v4989
  %v4991 = vpop.f32.mrf.mxu0
  %4992 = vmatmul.bf16.gmra.mxu0 %v4946
  %v4993 = vpop.f32.mrf.mxu0
  %v4994 = vpop.f32.mrf.mxu0
  %4995 = vdwg.mxu0
  %4996 = vmatpush.bf16.msra.mxu0 0
  %4997 = vmatpush.bf16.msra.mxu0 0
  %4998 = vmatpush.bf16.msra.mxu0 0
  %4999 = vmatpush.bf16.msra.mxu0 0
  %5000 = vmatpush.bf16.msra.mxu0 0
  %5001 = vmatpush.bf16.msra.mxu0 0
  %5002 = vmatpush.bf16.msra.mxu0 %v4913
  %5003 = vmatpush.bf16.msra.mxu0 %v4905
  %5004 = vmatmul.bf16.gmra.mxu0 %v4943
  %v5005 = vpop.f32.mrf.mxu0
  %v5006 = vadd.f32 0.0, %v5005
  %v5007 = vpop.f32.mrf.mxu0
  %5008 = vmatmul.bf16.gmra.mxu0 %v4946
  %v5009 = vpop.f32.mrf.mxu0
  %v5010 = vpop.f32.mrf.mxu0
  %5011 = vdwg.mxu0
  %5012 = vmatpush.bf16.msra.mxu0 0
  %5013 = vmatpush.bf16.msra.mxu0 0
  %5014 = vmatpush.bf16.msra.mxu0 0
  %5015 = vmatpush.bf16.msra.mxu0 0
  %5016 = vmatpush.bf16.msra.mxu0 0
  %5017 = vmatpush.bf16.msra.mxu0 0
  %5018 = vmatpush.bf16.msra.mxu0 %v4914
  %5019 = vmatpush.bf16.msra.mxu0 %v4906
  %5020 = vmatmul.bf16.gmra.mxu0 %v4943
  %v5021 = vpop.f32.mrf.mxu0
  %v5022 = vadd.f32 0.0, %v5021
  %v5023 = vpop.f32.mrf.mxu0
  %5024 = vmatmul.bf16.gmra.mxu0 %v4946
  %v5025 = vpop.f32.mrf.mxu0
  %v5026 = vpop.f32.mrf.mxu0
  %5027 = vdwg.mxu0
  %5028 = vmatpush.bf16.msra.mxu0 0
  %5029 = vmatpush.bf16.msra.mxu0 0
  %5030 = vmatpush.bf16.msra.mxu0 0
  %5031 = vmatpush.bf16.msra.mxu0 0
  %5032 = vmatpush.bf16.msra.mxu0 0
  %5033 = vmatpush.bf16.msra.mxu0 0
  %5034 = vmatpush.bf16.msra.mxu0 %v4915
  %5035 = vmatpush.bf16.msra.mxu0 %v4907
  %5036 = vmatmul.bf16.gmra.mxu0 %v4943
  %v5037 = vpop.f32.mrf.mxu0
  %v5038 = vadd.f32 0.0, %v5037
  %v5039 = vpop.f32.mrf.mxu0
  %5040 = vmatmul.bf16.gmra.mxu0 %v4946
  %v5041 = vpop.f32.mrf.mxu0
  %v5042 = vpop.f32.mrf.mxu0
  %5043 = vdwg.mxu0
  %5044 = vmatpush.bf16.msra.mxu0 0
  %5045 = vmatpush.bf16.msra.mxu0 0
  %5046 = vmatpush.bf16.msra.mxu0 0
  %5047 = vmatpush.bf16.msra.mxu0 0
  %5048 = vmatpush.bf16.msra.mxu0 0
  %5049 = vmatpush.bf16.msra.mxu0 0
  %5050 = vmatpush.bf16.msra.mxu0 %v4916
  %5051 = vmatpush.bf16.msra.mxu0 %v4908
  %5052 = vmatmul.bf16.gmra.mxu0 %v4943
  %v5053 = vpop.f32.mrf.mxu0
  %v5054 = vadd.f32 0.0, %v5053
  %v5055 = vpop.f32.mrf.mxu0
  %5056 = vmatmul.bf16.gmra.mxu0 %v4946
  %v5057 = vpop.f32.mrf.mxu0
  %v5058 = vpop.f32.mrf.mxu0
  %5059 = vdwg.mxu0
  %5060 = vmatpush.bf16.msra.mxu0 0
  %5061 = vmatpush.bf16.msra.mxu0 0
  %5062 = vmatpush.bf16.msra.mxu0 0
  %5063 = vmatpush.bf16.msra.mxu0 0
  %5064 = vmatpush.bf16.msra.mxu0 0
  %5065 = vmatpush.bf16.msra.mxu0 0
  %5066 = vmatpush.bf16.msra.mxu0 %v4917
  %5067 = vmatpush.bf16.msra.mxu0 %v4909
  %5068 = vmatmul.bf16.gmra.mxu0 %v4943
  %v5069 = vpop.f32.mrf.mxu0
  %v5070 = vadd.f32 0.0, %v5069
  %v5071 = vpop.f32.mrf.mxu0
  %5072 = vmatmul.bf16.gmra.mxu0 %v4946
  %v5073 = vpop.f32.mrf.mxu0
  %v5074 = vpop.f32.mrf.mxu0
  %5075 = vdwg.mxu0
  %v5076 = vunpack.c.l.bf16 %v1384
  %v5077 = vunpack.c.h.bf16 %v1384
  %v5078 = vunpack.c.l.bf16 %v1385
  %v5079 = vunpack.c.h.bf16 %v1385
  %v5080 = vunpack.c.l.bf16 %v1386
  %v5081 = vunpack.c.h.bf16 %v1386
  %v5082 = vunpack.c.l.bf16 %v1387
  %v5083 = vunpack.c.h.bf16 %v1387
  %v5084 = vadd.f32 %v4958, %v5076
  %v5085 = vadd.f32 %v4974, %v5077
  %v5086 = vadd.f32 %v4990, %v5078
  %v5087 = vadd.f32 %v5006, %v5079
  %v5088 = vadd.f32 %v5022, %v5080
  %v5089 = vadd.f32 %v5038, %v5081
  %v5090 = vadd.f32 %v5054, %v5082
  %v5091 = vadd.f32 %v5070, %v5083
  %v5100 = vrot.slane %v5085, 4
  %v5101 = vrot.slane %v5087, 4
  %v5102 = vrot.slane %v5089, 4
  %v5103 = vrot.slane %v5091, 4
  %vm5104 = vcmask 1043456
  %v5105 = vsel %vm5104, %v5084, %v5100
  %v5106 = vsel %vm5104, %v5086, %v5101
  %v5107 = vsel %vm5104, %v5088, %v5102
  %v5108 = vsel %vm5104, %v5090, %v5103
  %5113 = vst [vmem:[%s3] sm:$0x77] %v5105
  %5114 = vst [vmem:[%s3 + $0x8] sm:$0x77] %v5106
  %5115 = vst [vmem:[%s3 + $0x10] sm:$0x77] %v5107
  %5116 = vst [vmem:[%s3 + $0x18] sm:$0x77] %v5108
  // Predicated region
  $region14: #{decoder_forward.1} parent=0 // pred_check
    _
  $region15: #{decoder_forward.1} parent=0 // pred_check_branch
    %5118 = sbr.rel (0) target = $region17
  $region16: #{decoder_forward.1} parent=0 // pred_region
    _
  $region17: #{decoder_forward.1} parent=0 // pred_fallthru
    _
  // Predicated region
  $region18: #{decoder_forward.1} parent=0 // pred_check
    _
  $region19: #{decoder_forward.1} parent=0 // pred_check_branch
    %5120 = sbr.rel (0) target = $region21
  $region20: #{decoder_forward.1} parent=0 // pred_region
    _
  $region21: #{decoder_forward.1} parent=0 // pred_fallthru
    _

</llo_original>
